<compile_context>
chip_gen: v7x
topology: tpu7x:2x2x1
jax: 0.10.0
libtpu: 0.0.40
codegen_flags: <defaults>
</compile_context>

<pallas_src>
import math

import jax
import jax.numpy as jnp
from jax import lax
from jax.experimental import pallas as pl
from jax.experimental.pallas import tpu as pltpu

_NEG_SLOPE = 0.01                     # PyTorch nn.LeakyReLU() default
_VMEM_BUDGET = 24 * 1024 * 1024       # tile budget, headroom under the limit below
_VMEM_LIMIT = 32 * 1024 * 1024
_TM_CAP = 1024


def _round_up(x, m):
    return ((x + m - 1) // m) * m


def _leaky(x):
    return jnp.maximum(x, _NEG_SLOPE * x)


# ----------------------------- Pallas kernel ------------------------------- #

def _linear_bias_leaky_kernel(x_ref, w_ref, b_ref, o_ref):
    # x: [TM, Kpad] bf16, w: [Kpad, Npad] bf16 (lane-dense), b: [1, Npad] f32.
    acc = jnp.dot(x_ref[...], w_ref[...], preferred_element_type=jnp.float32)
    acc = acc + b_ref[...]                                # f32 elementwise path
    o_ref[...] = jnp.maximum(acc, _NEG_SLOPE * acc).astype(o_ref.dtype)


def _pick_tm(m8, k_pad, n_pad, out_bytes):
    """Largest M tile (<= _TM_CAP) fitting the VMEM budget."""
    # 2x double-buffered x (bf16) / out tiles + (default double-buffered)
    # resident weight (bf16) and bias (f32).
    # TODO(synk): pipeline_mode=pl.Buffered(1) on the constant-index weight/bias
    # specs would free one of their copies; left out pending support validation.
    fixed = 2 * (k_pad * n_pad * 2 + n_pad * 4)
    per_row = 2 * (k_pad * 2 + n_pad * out_bytes)
    tm = min(_TM_CAP, max(256, (_VMEM_BUDGET - fixed) // per_row))
    if m8 <= tm:
        return m8, m8                                     # single tile covers all rows
    tm = (tm // 256) * 256
    return tm, _round_up(m8, tm)


def _fused_linear_leaky(x, w_kn, b, *, out_dtype):
    """leaky_relu(x @ w + b) as one Pallas GEMM.

    x: [M, K] (cast to bf16), w_kn: [Kpad, Npad] bf16 (pre-padded / pre-transposed),
    b: [N] f32.  Returns [M, N] in out_dtype.
    """
    M, K = x.shape
    k_pad, n_pad = w_kn.shape
    N = b.shape[0]
    m8 = _round_up(max(M, 8), 8)
    tm, m_pad = _pick_tm(m8, k_pad, n_pad, jnp.dtype(out_dtype).itemsize)

    x_p = jnp.pad(x.astype(jnp.bfloat16), ((0, m_pad - M), (0, k_pad - K)))
    b_p = jnp.pad(b.astype(jnp.float32).reshape(1, N), ((0, 0), (0, n_pad - N)))

    out = pl.pallas_call(
        _linear_bias_leaky_kernel,
        out_shape=jax.ShapeDtypeStruct((m_pad, n_pad), out_dtype),
        grid_spec=pltpu.PrefetchScalarGridSpec(
            num_scalar_prefetch=0,
            grid=(m_pad // tm,),
            in_specs=[
                pl.BlockSpec((tm, k_pad), lambda i: (i, 0)),
                pl.BlockSpec((k_pad, n_pad), lambda i: (0, 0)),   # VMEM-resident
                pl.BlockSpec((1, n_pad), lambda i: (0, 0)),       # VMEM-resident
            ],
            out_specs=pl.BlockSpec((tm, n_pad), lambda i: (i, 0)),
        ),
        compiler_params=pltpu.CompilerParams(
            dimension_semantics=("parallel",),
            vmem_limit_bytes=_VMEM_LIMIT,
        ),
    )(x_p, w_kn, b_p)
    # The [:M, :N] slice + the caller's reshape fuse with the next layer's
    # patch gather inside the same jit region (no standalone copy kernel).
    return out[:M, :N]


# --------------------------- conv-as-GEMM wrapper --------------------------- #

def _im2col_nhwc(x, k, stride):
    """[B,H,W,C] -> patches [B*OH*OW, k*k*C]; K flattened in (kh, kw, c) order."""
    B, H, W, C = x.shape
    OH = (H - k) // stride + 1
    OW = (W - k) // stride + 1
    cols = []
    for i in range(k):
        for j in range(k):
            cols.append(x[:, i:i + (OH - 1) * stride + 1:stride,
                             j:j + (OW - 1) * stride + 1:stride, :])
    p = jnp.stack(cols, axis=3)                            # [B, OH, OW, k*k, C]
    return p.reshape(B * OH * OW, k * k * C), OH, OW


def _conv_leaky(h, w_kn, b, k, stride):
    """NHWC conv + bias + LeakyReLU via bf16 im2col + fused Pallas GEMM."""
    # TODO(synk): patch extraction still runs as a fused XLA gather/concat in the
    # wrapper; folding it into the kernel (per-image tile + in-VMEM patch build)
    # would remove the remaining im2col HBM blow-up.
    B = h.shape[0]
    patches, OH, OW = _im2col_nhwc(h, k, stride)
    y = _fused_linear_leaky(patches, w_kn, b, out_dtype=jnp.bfloat16)
    return y.reshape(B, OH, OW, b.shape[0])


def cnn_state_encoder_forward(x, prep):
    """x: [B, 4, H, W] (NCHW, like the PyTorch module) -> [B, output_dims] f32."""
    (w1, b1), (w2, b2), (w3, b3), (wl, bl) = prep
    h = jnp.transpose(x.astype(jnp.bfloat16), (0, 2, 3, 1))   # single tiny NCHW->NHWC
    h = _conv_leaky(h, w1, b1, k=8, stride=4)                  # [B, 20, 20, 32]
    h = _conv_leaky(h, w2, b2, k=4, stride=2)                  # [B, 9, 9, 64]
    h = _conv_leaky(h, w3, b3, k=3, stride=1)                  # [B, 7, 7, 64]
    flat = h.reshape(h.shape[0], -1)                           # NHWC flatten (wl pre-permuted)
    return _fused_linear_leaky(flat, wl, bl, out_dtype=jnp.float32)


# -------------------------- one-time param prep ----------------------------- #

def preprocess_params(params, input_hw=(84, 84)):
    """One-time layout prep: [K,N] weights, K/N zero-padded to 128, bf16; f32 biases.

    The Linear weight is additionally column-permuted from PyTorch's NCHW flatten
    order to the NHWC flatten order produced by the conv pipeline.
    """
    (w1, b1), (w2, b2), (w3, b3), (wl, bl) = params

    def pad_kn(w2d):
        K, N = w2d.shape
        kp, np_ = _round_up(K, 128), _round_up(N, 128)
        return jnp.pad(w2d, ((0, kp - K), (0, np_ - N))).astype(jnp.bfloat16)

    def prep_conv(w_oihw, b):
        c_out, c_in, kh, kw = w_oihw.shape
        # patch K order is (kh, kw, c_in): OIHW -> (KH, KW, Cin, Cout) -> [K, N]
        w2d = jnp.transpose(w_oihw, (2, 3, 1, 0)).reshape(kh * kw * c_in, c_out)
        return pad_kn(w2d), b.astype(jnp.float32)

    def out_sz(s, k, st):
        return (s - k) // st + 1

    h1 = (out_sz(input_hw[0], 8, 4), out_sz(input_hw[1], 8, 4))
    h2 = (out_sz(h1[0], 4, 2), out_sz(h1[1], 4, 2))
    h3 = (out_sz(h2[0], 3, 1), out_sz(h2[1], 3, 1))
    c3 = w3.shape[0]
    out_dims = wl.shape[0]
    assert wl.shape[1] == c3 * h3[0] * h3[1], "Linear in_features must match conv3 output"

    # torch flatten order (c, h, w)  ->  our NHWC flatten order (h, w, c)
    wl_nhwc = jnp.transpose(wl.reshape(out_dims, c3, h3[0], h3[1]), (0, 2, 3, 1))
    wl_kn = pad_kn(wl_nhwc.reshape(out_dims, h3[0] * h3[1] * c3).T)

    return (prep_conv(w1, b1), prep_conv(w2, b2), prep_conv(w3, b3),
            (wl_kn, bl.astype(jnp.float32)))


# --------------------------- init & pure-JAX refs --------------------------- #

def init_params(key, output_dims):
    """Orthogonal init (gain sqrt(2), flattened like torch.init.orthogonal_); zero biases."""
    ks = jax.random.split(key, 4)
    ortho = jax.nn.initializers.orthogonal(scale=math.sqrt(2))
    w1 = ortho(ks[0], (32, 4 * 8 * 8), jnp.float32).reshape(32, 4, 8, 8)
    w2 = ortho(ks[1], (64, 32 * 4 * 4), jnp.float32).reshape(64, 32, 4, 4)
    w3 = ortho(ks[2], (64, 64 * 3 * 3), jnp.float32).reshape(64, 64, 3, 3)
    wl = ortho(ks[3], (output_dims, 64 * 7 * 7), jnp.float32)
    b1 = jnp.zeros((32,), jnp.float32)
    b2 = jnp.zeros((64,), jnp.float32)
    b3 = jnp.zeros((64,), jnp.float32)
    bl = jnp.zeros((output_dims,), jnp.float32)
    return ((w1, b1), (w2, b2), (w3, b3), (wl, bl))


def _reference(x, params, mxu_dtype=None):
    """lax.conv reference. mxu_dtype=bf16 mirrors the kernel's bf16 operand/activation path."""
    def cast(a):
        return a if mxu_dtype is None else a.astype(mxu_dtype)

    def conv(h, w, b, s):
        y = lax.conv_general_dilated(
            cast(h), cast(w), (s, s), "VALID",
            dimension_numbers=("NCHW", "OIHW", "NCHW"),
            preferred_element_type=jnp.float32)
        return _leaky(y + b.reshape(1, -1, 1, 1))

    (w1, b1), (w2, b2), (w3, b3), (wl, bl) = params
    h = conv(x, w1, b1, 4)
    h = conv(h, w2, b2, 2)
    h = conv(h, w3, b3, 1)
    flat = h.reshape(h.shape[0], -1)
    y = jnp.dot(cast(flat), cast(wl.T), preferred_element_type=jnp.float32) + bl
    return _leaky(y)


if __name__ == "__main__":
    batch = 2
    output_dims = 32
    H = W = 84  # the 7*7*64 Linear in the module implies 84x84 inputs

    key = jax.random.PRNGKey(0)
    kx, kp = jax.random.split(key)
    x = jax.random.normal(kx, (batch, 4, H, W), dtype=jnp.float32)
    params = init_params(kp, output_dims)
    prep = preprocess_params(params, input_hw=(H, W))   # one-time weight layout prep

    fwd = jax.jit(cnn_state_encoder_forward)
    out = jax.block_until_ready(fwd(x, prep))
    assert out.shape == (batch, output_dims)

    # Check vs a JAX reference that mirrors the kernel's bf16 MXU / activation path.
    ref_bf16 = _reference(x, params, mxu_dtype=jnp.bfloat16)
    assert jnp.allclose(out, ref_bf16, atol=2e-2, rtol=2e-2), "mismatch vs bf16-matched reference"

    # Loose semantic check vs the all-f32 conv reference (difference = bf16 rounding only).
    ref_f32 = _reference(x, params, mxu_dtype=None)
    assert jnp.allclose(out, ref_f32, atol=1e-1, rtol=1e-1), "mismatch vs f32 reference"

    print("KERNEL_OK")
</pallas_src>

<mosaic_0001>
module attributes {stable_mosaic.version = 11 : i64} {
  func.func @_linear_bias_leaky_kernel(%arg0: i32, %arg1: memref<800x256xbf16, #tpu.memory_space<vmem>>, %arg2: memref<256x128xbf16, #tpu.memory_space<vmem>>, %arg3: memref<1x128xf32, #tpu.memory_space<vmem>>, %arg4: memref<800x128xbf16, #tpu.memory_space<vmem>>) attributes {dimension_semantics = [#tpu.dimension_semantics<parallel>], iteration_bounds = array<i64: 1>, scalar_prefetch = 0 : i64, scratch_operands = 0 : i64, tpu.core_type = #tpu.core_type<tc>, window_params = [{transform_indices = @transform_0, window_bounds = array<i64: 800, 256>}, {pipeline_mode = #tpu.pipeline_mode<synchronous>, transform_indices = @transform_1, window_bounds = array<i64: 256, 128>}, {pipeline_mode = #tpu.pipeline_mode<synchronous>, transform_indices = @transform_2, window_bounds = array<i64: 1, 128>}, {transform_indices = @transform_3, window_bounds = array<i64: 800, 128>}]} {
    %c0 = arith.constant 0 : index
    %c0_0 = arith.constant 0 : index
    %0 = vector.load %arg1[%c0, %c0_0] : memref<800x256xbf16, #tpu.memory_space<vmem>>, vector<800x256xbf16>
    %c0_1 = arith.constant 0 : index
    %c0_2 = arith.constant 0 : index
    %1 = vector.load %arg2[%c0_1, %c0_2] : memref<256x128xbf16, #tpu.memory_space<vmem>>, vector<256x128xbf16>
    %cst = arith.constant dense<0.000000e+00> : vector<800x128xf32>
    %2 = tpu.matmul %0, %1, %cst {dimension_numbers = #tpu.dot_dimension_numbers<[1], [0], [0], [1], [0, 0, 1, 1], [], []>} : vector<800x256xbf16>, vector<256x128xbf16>, vector<800x128xf32> -> vector<800x128xf32>
    %c0_3 = arith.constant 0 : index
    %c0_4 = arith.constant 0 : index
    %3 = vector.load %arg3[%c0_3, %c0_4] : memref<1x128xf32, #tpu.memory_space<vmem>>, vector<1x128xf32>
    %4 = vector.broadcast %3 : vector<1x128xf32> to vector<800x128xf32>
    %5 = arith.addf %2, %4 : vector<800x128xf32>
    %cst_5 = arith.constant 0.00999999977 : f32
    %6 = vector.broadcast %cst_5 : f32 to vector<800x128xf32>
    %7 = arith.mulf %6, %5 : vector<800x128xf32>
    %8 = arith.maximumf %5, %7 : vector<800x128xf32>
    %9 = arith.truncf %8 : vector<800x128xf32> to vector<800x128xbf16>
    %c0_6 = arith.constant 0 : index
    %c0_7 = arith.constant 0 : index
    %10 = vector.load %arg4[%c0_6, %c0_7] : memref<800x128xbf16, #tpu.memory_space<vmem>>, vector<800x128xbf16>
    tpu.vector_store %arg4[%c0_6, %c0_7], %9 {strides = array<i32>} : memref<800x128xbf16, #tpu.memory_space<vmem>>, vector<800x128xbf16>,
    return
  }
  func.func @transform_0(%arg0: i32) -> (i32, i32) {
    %c0_i32 = arith.constant 0 : i32
    %c0_i32_0 = arith.constant 0 : i32
    return %arg0, %c0_i32 : i32, i32
  }
  func.func @transform_1(%arg0: i32) -> (i32, i32) {
    %c0_i32 = arith.constant 0 : i32
    %c0_i32_0 = arith.constant 0 : i32
    %c0_i32_1 = arith.constant 0 : i32
    return %c0_i32, %c0_i32_0 : i32, i32
  }
  func.func @transform_2(%arg0: i32) -> (i32, i32) {
    %c0_i32 = arith.constant 0 : i32
    %c0_i32_0 = arith.constant 0 : i32
    %c0_i32_1 = arith.constant 0 : i32
    return %c0_i32, %c0_i32_0 : i32, i32
  }
  func.func @transform_3(%arg0: i32) -> (i32, i32) {
    %c0_i32 = arith.constant 0 : i32
    %c0_i32_0 = arith.constant 0 : i32
    return %arg0, %c0_i32 : i32, i32
  }
}

module attributes {stable_mosaic.version = 11 : i64} {
  func.func @_linear_bias_leaky_kernel(%arg0: i32, %arg1: memref<168x512xbf16, #tpu.memory_space<vmem>>, %arg2: memref<512x128xbf16, #tpu.memory_space<vmem>>, %arg3: memref<1x128xf32, #tpu.memory_space<vmem>>, %arg4: memref<168x128xbf16, #tpu.memory_space<vmem>>) attributes {dimension_semantics = [#tpu.dimension_semantics<parallel>], iteration_bounds = array<i64: 1>, scalar_prefetch = 0 : i64, scratch_operands = 0 : i64, tpu.core_type = #tpu.core_type<tc>, window_params = [{transform_indices = @transform_0, window_bounds = array<i64: 168, 512>}, {pipeline_mode = #tpu.pipeline_mode<synchronous>, transform_indices = @transform_1, window_bounds = array<i64: 512, 128>}, {pipeline_mode = #tpu.pipeline_mode<synchronous>, transform_indices = @transform_2, window_bounds = array<i64: 1, 128>}, {transform_indices = @transform_3, window_bounds = array<i64: 168, 128>}]} {
    %c0 = arith.constant 0 : index
    %c0_0 = arith.constant 0 : index
    %0 = vector.load %arg1[%c0, %c0_0] : memref<168x512xbf16, #tpu.memory_space<vmem>>, vector<168x512xbf16>
    %c0_1 = arith.constant 0 : index
    %c0_2 = arith.constant 0 : index
    %1 = vector.load %arg2[%c0_1, %c0_2] : memref<512x128xbf16, #tpu.memory_space<vmem>>, vector<512x128xbf16>
    %cst = arith.constant dense<0.000000e+00> : vector<168x128xf32>
    %2 = tpu.matmul %0, %1, %cst {dimension_numbers = #tpu.dot_dimension_numbers<[1], [0], [0], [1], [0, 0, 1, 1], [], []>} : vector<168x512xbf16>, vector<512x128xbf16>, vector<168x128xf32> -> vector<168x128xf32>
    %c0_3 = arith.constant 0 : index
    %c0_4 = arith.constant 0 : index
    %3 = vector.load %arg3[%c0_3, %c0_4] : memref<1x128xf32, #tpu.memory_space<vmem>>, vector<1x128xf32>
    %4 = vector.broadcast %3 : vector<1x128xf32> to vector<168x128xf32>
    %5 = arith.addf %2, %4 : vector<168x128xf32>
    %cst_5 = arith.constant 0.00999999977 : f32
    %6 = vector.broadcast %cst_5 : f32 to vector<168x128xf32>
    %7 = arith.mulf %6, %5 : vector<168x128xf32>
    %8 = arith.maximumf %5, %7 : vector<168x128xf32>
    %9 = arith.truncf %8 : vector<168x128xf32> to vector<168x128xbf16>
    %c0_6 = arith.constant 0 : index
    %c0_7 = arith.constant 0 : index
    %10 = vector.load %arg4[%c0_6, %c0_7] : memref<168x128xbf16, #tpu.memory_space<vmem>>, vector<168x128xbf16>
    tpu.vector_store %arg4[%c0_6, %c0_7], %9 {strides = array<i32>} : memref<168x128xbf16, #tpu.memory_space<vmem>>, vector<168x128xbf16>,
    return
  }
  func.func @transform_0(%arg0: i32) -> (i32, i32) {
    %c0_i32 = arith.constant 0 : i32
    %c0_i32_0 = arith.constant 0 : i32
    return %arg0, %c0_i32 : i32, i32
  }
  func.func @transform_1(%arg0: i32) -> (i32, i32) {
    %c0_i32 = arith.constant 0 : i32
    %c0_i32_0 = arith.constant 0 : i32
    %c0_i32_1 = arith.constant 0 : i32
    return %c0_i32, %c0_i32_0 : i32, i32
  }
  func.func @transform_2(%arg0: i32) -> (i32, i32) {
    %c0_i32 = arith.constant 0 : i32
    %c0_i32_0 = arith.constant 0 : i32
    %c0_i32_1 = arith.constant 0 : i32
    return %c0_i32, %c0_i32_0 : i32, i32
  }
  func.func @transform_3(%arg0: i32) -> (i32, i32) {
    %c0_i32 = arith.constant 0 : i32
    %c0_i32_0 = arith.constant 0 : i32
    return %arg0, %c0_i32 : i32, i32
  }
}

module attributes {stable_mosaic.version = 11 : i64} {
  func.func @_linear_bias_leaky_kernel(%arg0: i32, %arg1: memref<104x640xbf16, #tpu.memory_space<vmem>>, %arg2: memref<640x128xbf16, #tpu.memory_space<vmem>>, %arg3: memref<1x128xf32, #tpu.memory_space<vmem>>, %arg4: memref<104x128xbf16, #tpu.memory_space<vmem>>) attributes {dimension_semantics = [#tpu.dimension_semantics<parallel>], iteration_bounds = array<i64: 1>, scalar_prefetch = 0 : i64, scratch_operands = 0 : i64, tpu.core_type = #tpu.core_type<tc>, window_params = [{transform_indices = @transform_0, window_bounds = array<i64: 104, 640>}, {pipeline_mode = #tpu.pipeline_mode<synchronous>, transform_indices = @transform_1, window_bounds = array<i64: 640, 128>}, {pipeline_mode = #tpu.pipeline_mode<synchronous>, transform_indices = @transform_2, window_bounds = array<i64: 1, 128>}, {transform_indices = @transform_3, window_bounds = array<i64: 104, 128>}]} {
    %c0 = arith.constant 0 : index
    %c0_0 = arith.constant 0 : index
    %0 = vector.load %arg1[%c0, %c0_0] : memref<104x640xbf16, #tpu.memory_space<vmem>>, vector<104x640xbf16>
    %c0_1 = arith.constant 0 : index
    %c0_2 = arith.constant 0 : index
    %1 = vector.load %arg2[%c0_1, %c0_2] : memref<640x128xbf16, #tpu.memory_space<vmem>>, vector<640x128xbf16>
    %cst = arith.constant dense<0.000000e+00> : vector<104x128xf32>
    %2 = tpu.matmul %0, %1, %cst {dimension_numbers = #tpu.dot_dimension_numbers<[1], [0], [0], [1], [0, 0, 1, 1], [], []>} : vector<104x640xbf16>, vector<640x128xbf16>, vector<104x128xf32> -> vector<104x128xf32>
    %c0_3 = arith.constant 0 : index
    %c0_4 = arith.constant 0 : index
    %3 = vector.load %arg3[%c0_3, %c0_4] : memref<1x128xf32, #tpu.memory_space<vmem>>, vector<1x128xf32>
    %4 = vector.broadcast %3 : vector<1x128xf32> to vector<104x128xf32>
    %5 = arith.addf %2, %4 : vector<104x128xf32>
    %cst_5 = arith.constant 0.00999999977 : f32
    %6 = vector.broadcast %cst_5 : f32 to vector<104x128xf32>
    %7 = arith.mulf %6, %5 : vector<104x128xf32>
    %8 = arith.maximumf %5, %7 : vector<104x128xf32>
    %9 = arith.truncf %8 : vector<104x128xf32> to vector<104x128xbf16>
    %c0_6 = arith.constant 0 : index
    %c0_7 = arith.constant 0 : index
    %10 = vector.load %arg4[%c0_6, %c0_7] : memref<104x128xbf16, #tpu.memory_space<vmem>>, vector<104x128xbf16>
    tpu.vector_store %arg4[%c0_6, %c0_7], %9 {strides = array<i32>} : memref<104x128xbf16, #tpu.memory_space<vmem>>, vector<104x128xbf16>,
    return
  }
  func.func @transform_0(%arg0: i32) -> (i32, i32) {
    %c0_i32 = arith.constant 0 : i32
    %c0_i32_0 = arith.constant 0 : i32
    return %arg0, %c0_i32 : i32, i32
  }
  func.func @transform_1(%arg0: i32) -> (i32, i32) {
    %c0_i32 = arith.constant 0 : i32
    %c0_i32_0 = arith.constant 0 : i32
    %c0_i32_1 = arith.constant 0 : i32
    return %c0_i32, %c0_i32_0 : i32, i32
  }
  func.func @transform_2(%arg0: i32) -> (i32, i32) {
    %c0_i32 = arith.constant 0 : i32
    %c0_i32_0 = arith.constant 0 : i32
    %c0_i32_1 = arith.constant 0 : i32
    return %c0_i32, %c0_i32_0 : i32, i32
  }
  func.func @transform_3(%arg0: i32) -> (i32, i32) {
    %c0_i32 = arith.constant 0 : i32
    %c0_i32_0 = arith.constant 0 : i32
    return %arg0, %c0_i32 : i32, i32
  }
}

module attributes {stable_mosaic.version = 11 : i64} {
  func.func @_linear_bias_leaky_kernel(%arg0: i32, %arg1: memref<8x3200xbf16, #tpu.memory_space<vmem>>, %arg2: memref<3200x128xbf16, #tpu.memory_space<vmem>>, %arg3: memref<1x128xf32, #tpu.memory_space<vmem>>, %arg4: memref<8x128xf32, #tpu.memory_space<vmem>>) attributes {dimension_semantics = [#tpu.dimension_semantics<parallel>], iteration_bounds = array<i64: 1>, scalar_prefetch = 0 : i64, scratch_operands = 0 : i64, tpu.core_type = #tpu.core_type<tc>, window_params = [{transform_indices = @transform_0, window_bounds = array<i64: 8, 3200>}, {pipeline_mode = #tpu.pipeline_mode<synchronous>, transform_indices = @transform_1, window_bounds = array<i64: 3200, 128>}, {pipeline_mode = #tpu.pipeline_mode<synchronous>, transform_indices = @transform_2, window_bounds = array<i64: 1, 128>}, {transform_indices = @transform_3, window_bounds = array<i64: 8, 128>}]} {
    %c0 = arith.constant 0 : index
    %c0_0 = arith.constant 0 : index
    %0 = vector.load %arg1[%c0, %c0_0] : memref<8x3200xbf16, #tpu.memory_space<vmem>>, vector<8x3200xbf16>
    %c0_1 = arith.constant 0 : index
    %c0_2 = arith.constant 0 : index
    %1 = vector.load %arg2[%c0_1, %c0_2] : memref<3200x128xbf16, #tpu.memory_space<vmem>>, vector<3200x128xbf16>
    %cst = arith.constant dense<0.000000e+00> : vector<8x128xf32>
    %2 = tpu.matmul %0, %1, %cst {dimension_numbers = #tpu.dot_dimension_numbers<[1], [0], [0], [1], [0, 0, 1, 1], [], []>} : vector<8x3200xbf16>, vector<3200x128xbf16>, vector<8x128xf32> -> vector<8x128xf32>
    %c0_3 = arith.constant 0 : index
    %c0_4 = arith.constant 0 : index
    %3 = vector.load %arg3[%c0_3, %c0_4] : memref<1x128xf32, #tpu.memory_space<vmem>>, vector<1x128xf32>
    %4 = vector.broadcast %3 : vector<1x128xf32> to vector<8x128xf32>
    %5 = arith.addf %2, %4 : vector<8x128xf32>
    %cst_5 = arith.constant 0.00999999977 : f32
    %6 = vector.broadcast %cst_5 : f32 to vector<8x128xf32>
    %7 = arith.mulf %6, %5 : vector<8x128xf32>
    %8 = arith.maximumf %5, %7 : vector<8x128xf32>
    %c0_6 = arith.constant 0 : index
    %c0_7 = arith.constant 0 : index
    %9 = vector.load %arg4[%c0_6, %c0_7] : memref<8x128xf32, #tpu.memory_space<vmem>>, vector<8x128xf32>
    tpu.vector_store %arg4[%c0_6, %c0_7], %8 {strides = array<i32>} : memref<8x128xf32, #tpu.memory_space<vmem>>, vector<8x128xf32>,
    return
  }
  func.func @transform_0(%arg0: i32) -> (i32, i32) {
    %c0_i32 = arith.constant 0 : i32
    %c0_i32_0 = arith.constant 0 : i32
    return %arg0, %c0_i32 : i32, i32
  }
  func.func @transform_1(%arg0: i32) -> (i32, i32) {
    %c0_i32 = arith.constant 0 : i32
    %c0_i32_0 = arith.constant 0 : i32
    %c0_i32_1 = arith.constant 0 : i32
    return %c0_i32, %c0_i32_0 : i32, i32
  }
  func.func @transform_2(%arg0: i32) -> (i32, i32) {
    %c0_i32 = arith.constant 0 : i32
    %c0_i32_0 = arith.constant 0 : i32
    %c0_i32_1 = arith.constant 0 : i32
    return %c0_i32, %c0_i32_0 : i32, i32
  }
  func.func @transform_3(%arg0: i32) -> (i32, i32) {
    %c0_i32 = arith.constant 0 : i32
    %c0_i32_0 = arith.constant 0 : i32
    return %arg0, %c0_i32 : i32, i32
  }
}

</mosaic_0001>

<llo_original>
// kernel: cnn_state_encoder_forward.4
$region0: #{cnn_state_encoder_forward.4}
  #allocation0 [shape = 'u32[]', space=smem, size = 0x4, offset = 0x4, fixed_abs, tag = 'smem constant byte address 0x4 - core index']
  #allocation1 [shape = 'u32[144,128]{1,0:T(1,128)}', space=vmem, size = 0x12000, scoped, tag = 'internal scratch']
  %s0 = inlined_call_operand.vmem [shape: bf16[800,256], index: 0, kind: input, shape index: {}]
  %s1 = inlined_call_operand.vmem [shape: bf16[256,128], index: 1, kind: input, shape index: {}]
  %s2 = inlined_call_operand.vmem [shape: f32[1,128], index: 2, kind: input, shape index: {}]
  %s3 = inlined_call_operand.vmem [shape: bf16[800,128], index: 3, kind: output, shape index: {}]
  %s4 = sld [smem:[#allocation0]]
  $region22: #{cnn_state_encoder_forward.4} parent=0
    _
  %s6 = ssub.s32 1, %s4
  %s7 = scalar_select 0, %s6, %s4
  // Predicated region
  $region2: #{cnn_state_encoder_forward.4} parent=0 // pred_check
    _
  $region3: #{cnn_state_encoder_forward.4} parent=0 // pred_check_branch
    %9 = sbr.rel (0) target = $region5
  $region4: #{cnn_state_encoder_forward.4} parent=0 // pred_region
    _
  $region5: #{cnn_state_encoder_forward.4} parent=0 // pred_fallthru
    _
  // Predicated region
  $region6: #{cnn_state_encoder_forward.4} parent=0 // pred_check
    _
  $region7: #{cnn_state_encoder_forward.4} parent=0 // pred_check_branch
    %11 = sbr.rel (0) target = $region9
  $region8: #{cnn_state_encoder_forward.4} parent=0 // pred_region
    _
  $region9: #{cnn_state_encoder_forward.4} parent=0 // pred_fallthru
    _
  // Predicated region
  $region10: #{cnn_state_encoder_forward.4} parent=0 // pred_check
    _
  $region11: #{cnn_state_encoder_forward.4} parent=0 // pred_check_branch
    %13 = sbr.rel (0) target = $region13
  $region12: #{cnn_state_encoder_forward.4} parent=0 // pred_region
    _
  $region13: #{cnn_state_encoder_forward.4} parent=0 // pred_fallthru
    _
  %v15 = vld [vmem:[%s0] sm:$0xff]
  %v16 = vld [vmem:[%s0 + $0x8] sm:$0xff]
  %v17 = vld [vmem:[%s0 + $0x10] sm:$0xff]
  %v18 = vld [vmem:[%s0 + $0x18] sm:$0xff]
  %v19 = vld [vmem:[%s0 + $0x20] sm:$0xff]
  %v20 = vld [vmem:[%s0 + $0x28] sm:$0xff]
  %v21 = vld [vmem:[%s0 + $0x30] sm:$0xff]
  %v22 = vld [vmem:[%s0 + $0x38] sm:$0xff]
  %v23 = vld [vmem:[%s0 + $0x40] sm:$0xff]
  %v24 = vld [vmem:[%s0 + $0x48] sm:$0xff]
  %v25 = vld [vmem:[%s0 + $0x50] sm:$0xff]
  %v26 = vld [vmem:[%s0 + $0x58] sm:$0xff]
  %v27 = vld [vmem:[%s0 + $0x60] sm:$0xff]
  %v28 = vld [vmem:[%s0 + $0x68] sm:$0xff]
  %v29 = vld [vmem:[%s0 + $0x70] sm:$0xff]
  %v30 = vld [vmem:[%s0 + $0x78] sm:$0xff]
  %v31 = vld [vmem:[%s0 + $0x80] sm:$0xff]
  %v32 = vld [vmem:[%s0 + $0x88] sm:$0xff]
  %v33 = vld [vmem:[%s0 + $0x90] sm:$0xff]
  %v34 = vld [vmem:[%s0 + $0x98] sm:$0xff]
  %v35 = vld [vmem:[%s0 + $0xa0] sm:$0xff]
  %v36 = vld [vmem:[%s0 + $0xa8] sm:$0xff]
  %v37 = vld [vmem:[%s0 + $0xb0] sm:$0xff]
  %v38 = vld [vmem:[%s0 + $0xb8] sm:$0xff]
  %v39 = vld [vmem:[%s0 + $0xc0] sm:$0xff]
  %v40 = vld [vmem:[%s0 + $0xc8] sm:$0xff]
  %v41 = vld [vmem:[%s0 + $0xd0] sm:$0xff]
  %v42 = vld [vmem:[%s0 + $0xd8] sm:$0xff]
  %v43 = vld [vmem:[%s0 + $0xe0] sm:$0xff]
  %v44 = vld [vmem:[%s0 + $0xe8] sm:$0xff]
  %v45 = vld [vmem:[%s0 + $0xf0] sm:$0xff]
  %v46 = vld [vmem:[%s0 + $0xf8] sm:$0xff]
  %v47 = vld [vmem:[%s0 + $0x100] sm:$0xff]
  %v48 = vld [vmem:[%s0 + $0x108] sm:$0xff]
  %v49 = vld [vmem:[%s0 + $0x110] sm:$0xff]
  %v50 = vld [vmem:[%s0 + $0x118] sm:$0xff]
  %v51 = vld [vmem:[%s0 + $0x120] sm:$0xff]
  %v52 = vld [vmem:[%s0 + $0x128] sm:$0xff]
  %v53 = vld [vmem:[%s0 + $0x130] sm:$0xff]
  %v54 = vld [vmem:[%s0 + $0x138] sm:$0xff]
  %v55 = vld [vmem:[%s0 + $0x140] sm:$0xff]
  %v56 = vld [vmem:[%s0 + $0x148] sm:$0xff]
  %v57 = vld [vmem:[%s0 + $0x150] sm:$0xff]
  %v58 = vld [vmem:[%s0 + $0x158] sm:$0xff]
  %v59 = vld [vmem:[%s0 + $0x160] sm:$0xff]
  %v60 = vld [vmem:[%s0 + $0x168] sm:$0xff]
  %v61 = vld [vmem:[%s0 + $0x170] sm:$0xff]
  %v62 = vld [vmem:[%s0 + $0x178] sm:$0xff]
  %v63 = vld [vmem:[%s0 + $0x180] sm:$0xff]
  %v64 = vld [vmem:[%s0 + $0x188] sm:$0xff]
  %v65 = vld [vmem:[%s0 + $0x190] sm:$0xff]
  %v66 = vld [vmem:[%s0 + $0x198] sm:$0xff]
  %v67 = vld [vmem:[%s0 + $0x1a0] sm:$0xff]
  %v68 = vld [vmem:[%s0 + $0x1a8] sm:$0xff]
  %v69 = vld [vmem:[%s0 + $0x1b0] sm:$0xff]
  %v70 = vld [vmem:[%s0 + $0x1b8] sm:$0xff]
  %v71 = vld [vmem:[%s0 + $0x1c0] sm:$0xff]
  %v72 = vld [vmem:[%s0 + $0x1c8] sm:$0xff]
  %v73 = vld [vmem:[%s0 + $0x1d0] sm:$0xff]
  %v74 = vld [vmem:[%s0 + $0x1d8] sm:$0xff]
  %v75 = vld [vmem:[%s0 + $0x1e0] sm:$0xff]
  %v76 = vld [vmem:[%s0 + $0x1e8] sm:$0xff]
  %v77 = vld [vmem:[%s0 + $0x1f0] sm:$0xff]
  %v78 = vld [vmem:[%s0 + $0x1f8] sm:$0xff]
  %v79 = vld [vmem:[%s0 + $0x200] sm:$0xff]
  %v80 = vld [vmem:[%s0 + $0x208] sm:$0xff]
  %v81 = vld [vmem:[%s0 + $0x210] sm:$0xff]
  %v82 = vld [vmem:[%s0 + $0x218] sm:$0xff]
  %v83 = vld [vmem:[%s0 + $0x220] sm:$0xff]
  %v84 = vld [vmem:[%s0 + $0x228] sm:$0xff]
  %v85 = vld [vmem:[%s0 + $0x230] sm:$0xff]
  %v86 = vld [vmem:[%s0 + $0x238] sm:$0xff]
  %v87 = vld [vmem:[%s0 + $0x240] sm:$0xff]
  %v88 = vld [vmem:[%s0 + $0x248] sm:$0xff]
  %v89 = vld [vmem:[%s0 + $0x250] sm:$0xff]
  %v90 = vld [vmem:[%s0 + $0x258] sm:$0xff]
  %v91 = vld [vmem:[%s0 + $0x260] sm:$0xff]
  %v92 = vld [vmem:[%s0 + $0x268] sm:$0xff]
  %v93 = vld [vmem:[%s0 + $0x270] sm:$0xff]
  %v94 = vld [vmem:[%s0 + $0x278] sm:$0xff]
  %v95 = vld [vmem:[%s0 + $0x280] sm:$0xff]
  %v96 = vld [vmem:[%s0 + $0x288] sm:$0xff]
  %v97 = vld [vmem:[%s0 + $0x290] sm:$0xff]
  %v98 = vld [vmem:[%s0 + $0x298] sm:$0xff]
  %v99 = vld [vmem:[%s0 + $0x2a0] sm:$0xff]
  %v100 = vld [vmem:[%s0 + $0x2a8] sm:$0xff]
  %v101 = vld [vmem:[%s0 + $0x2b0] sm:$0xff]
  %v102 = vld [vmem:[%s0 + $0x2b8] sm:$0xff]
  %v103 = vld [vmem:[%s0 + $0x2c0] sm:$0xff]
  %v104 = vld [vmem:[%s0 + $0x2c8] sm:$0xff]
  %v105 = vld [vmem:[%s0 + $0x2d0] sm:$0xff]
  %v106 = vld [vmem:[%s0 + $0x2d8] sm:$0xff]
  %v107 = vld [vmem:[%s0 + $0x2e0] sm:$0xff]
  %v108 = vld [vmem:[%s0 + $0x2e8] sm:$0xff]
  %v109 = vld [vmem:[%s0 + $0x2f0] sm:$0xff]
  %v110 = vld [vmem:[%s0 + $0x2f8] sm:$0xff]
  %v111 = vld [vmem:[%s0 + $0x300] sm:$0xff]
  %v112 = vld [vmem:[%s0 + $0x308] sm:$0xff]
  %v113 = vld [vmem:[%s0 + $0x310] sm:$0xff]
  %v114 = vld [vmem:[%s0 + $0x318] sm:$0xff]
  %v115 = vld [vmem:[%s1] sm:$0xf]
  %v116 = vld [vmem:[%s1 + $0x4] sm:$0xf]
  %v117 = vld [vmem:[%s1 + $0x8] sm:$0xf]
  %v118 = vld [vmem:[%s1 + $0xc] sm:$0xf]
  %v119 = vld [vmem:[%s1 + $0x10] sm:$0xf]
  %v120 = vld [vmem:[%s1 + $0x14] sm:$0xf]
  %v121 = vld [vmem:[%s1 + $0x18] sm:$0xf]
  %v122 = vld [vmem:[%s1 + $0x1c] sm:$0xf]
  %v123 = vld [vmem:[%s1 + $0x20] sm:$0xf]
  %v124 = vld [vmem:[%s1 + $0x24] sm:$0xf]
  %v125 = vld [vmem:[%s1 + $0x28] sm:$0xf]
  %v126 = vld [vmem:[%s1 + $0x2c] sm:$0xf]
  %v127 = vld [vmem:[%s1 + $0x30] sm:$0xf]
  %v128 = vld [vmem:[%s1 + $0x34] sm:$0xf]
  %v129 = vld [vmem:[%s1 + $0x38] sm:$0xf]
  %v130 = vld [vmem:[%s1 + $0x3c] sm:$0xf]
  %v131 = vld [vmem:[%s1 + $0x40] sm:$0xf]
  %v132 = vld [vmem:[%s1 + $0x44] sm:$0xf]
  %v133 = vld [vmem:[%s1 + $0x48] sm:$0xf]
  %v134 = vld [vmem:[%s1 + $0x4c] sm:$0xf]
  %v135 = vld [vmem:[%s1 + $0x50] sm:$0xf]
  %v136 = vld [vmem:[%s1 + $0x54] sm:$0xf]
  %v137 = vld [vmem:[%s1 + $0x58] sm:$0xf]
  %v138 = vld [vmem:[%s1 + $0x5c] sm:$0xf]
  %v139 = vld [vmem:[%s1 + $0x60] sm:$0xf]
  %v140 = vld [vmem:[%s1 + $0x64] sm:$0xf]
  %v141 = vld [vmem:[%s1 + $0x68] sm:$0xf]
  %v142 = vld [vmem:[%s1 + $0x6c] sm:$0xf]
  %v143 = vld [vmem:[%s1 + $0x70] sm:$0xf]
  %v144 = vld [vmem:[%s1 + $0x74] sm:$0xf]
  %v145 = vld [vmem:[%s1 + $0x78] sm:$0xf]
  %v146 = vld [vmem:[%s1 + $0x7c] sm:$0xf]
  %v147 = vld [vmem:[%s2] sm:$0x1]
  %v149 = vlaneseq
  %v150 = vshrl.u32 %v149, 7
  %v151 = vsub.s32 0, %v150
  %v152 = vrot.slane %v147, %v151
  %v254 = vunpack.c.l.b16 %v15
  %v255 = vunpack.c.h.b16 %v15
  %v256 = vunpack.c.l.b16 %v16
  %v257 = vunpack.c.h.b16 %v16
  %v258 = vunpack.c.l.b16 %v17
  %v259 = vunpack.c.h.b16 %v17
  %v260 = vunpack.c.l.b16 %v18
  %v261 = vunpack.c.h.b16 %v18
  %v262 = vunpack.c.l.b16 %v19
  %v263 = vunpack.c.h.b16 %v19
  %v264 = vunpack.c.l.b16 %v20
  %v265 = vunpack.c.h.b16 %v20
  %v266 = vunpack.c.l.b16 %v21
  %v267 = vunpack.c.h.b16 %v21
  %v268 = vunpack.c.l.b16 %v22
  %v269 = vunpack.c.h.b16 %v22
  %v270 = vunpack.c.l.b16 %v23
  %v271 = vunpack.c.h.b16 %v23
  %v272 = vunpack.c.l.b16 %v24
  %v273 = vunpack.c.h.b16 %v24
  %v274 = vunpack.c.l.b16 %v25
  %v275 = vunpack.c.h.b16 %v25
  %v276 = vunpack.c.l.b16 %v26
  %v277 = vunpack.c.h.b16 %v26
  %v278 = vunpack.c.l.b16 %v27
  %v279 = vunpack.c.h.b16 %v27
  %v280 = vunpack.c.l.b16 %v28
  %v281 = vunpack.c.h.b16 %v28
  %v282 = vunpack.c.l.b16 %v29
  %v283 = vunpack.c.h.b16 %v29
  %v284 = vunpack.c.l.b16 %v30
  %v285 = vunpack.c.h.b16 %v30
  %v286 = vunpack.c.l.b16 %v31
  %v287 = vunpack.c.h.b16 %v31
  %v288 = vunpack.c.l.b16 %v32
  %v289 = vunpack.c.h.b16 %v32
  %v290 = vunpack.c.l.b16 %v33
  %v291 = vunpack.c.h.b16 %v33
  %v292 = vunpack.c.l.b16 %v34
  %v293 = vunpack.c.h.b16 %v34
  %v294 = vunpack.c.l.b16 %v35
  %v295 = vunpack.c.h.b16 %v35
  %v296 = vunpack.c.l.b16 %v36
  %v297 = vunpack.c.h.b16 %v36
  %v298 = vunpack.c.l.b16 %v37
  %v299 = vunpack.c.h.b16 %v37
  %v300 = vunpack.c.l.b16 %v38
  %v301 = vunpack.c.h.b16 %v38
  %v302 = vunpack.c.l.b16 %v39
  %v303 = vunpack.c.h.b16 %v39
  %v304 = vunpack.c.l.b16 %v40
  %v305 = vunpack.c.h.b16 %v40
  %v306 = vunpack.c.l.b16 %v41
  %v307 = vunpack.c.h.b16 %v41
  %v308 = vunpack.c.l.b16 %v42
  %v309 = vunpack.c.h.b16 %v42
  %v310 = vunpack.c.l.b16 %v43
  %v311 = vunpack.c.h.b16 %v43
  %v312 = vunpack.c.l.b16 %v44
  %v313 = vunpack.c.h.b16 %v44
  %v314 = vunpack.c.l.b16 %v45
  %v315 = vunpack.c.h.b16 %v45
  %v316 = vunpack.c.l.b16 %v46
  %v317 = vunpack.c.h.b16 %v46
  %v318 = vunpack.c.l.b16 %v47
  %v319 = vunpack.c.h.b16 %v47
  %v320 = vunpack.c.l.b16 %v48
  %v321 = vunpack.c.h.b16 %v48
  %v322 = vunpack.c.l.b16 %v49
  %v323 = vunpack.c.h.b16 %v49
  %v324 = vunpack.c.l.b16 %v50
  %v325 = vunpack.c.h.b16 %v50
  %v326 = vunpack.c.l.b16 %v51
  %v327 = vunpack.c.h.b16 %v51
  %v328 = vunpack.c.l.b16 %v52
  %v329 = vunpack.c.h.b16 %v52
  %v330 = vunpack.c.l.b16 %v53
  %v331 = vunpack.c.h.b16 %v53
  %v332 = vunpack.c.l.b16 %v54
  %v333 = vunpack.c.h.b16 %v54
  %v334 = vunpack.c.l.b16 %v55
  %v335 = vunpack.c.h.b16 %v55
  %v336 = vunpack.c.l.b16 %v56
  %v337 = vunpack.c.h.b16 %v56
  %v338 = vunpack.c.l.b16 %v57
  %v339 = vunpack.c.h.b16 %v57
  %v340 = vunpack.c.l.b16 %v58
  %v341 = vunpack.c.h.b16 %v58
  %v342 = vunpack.c.l.b16 %v59
  %v343 = vunpack.c.h.b16 %v59
  %v344 = vunpack.c.l.b16 %v60
  %v345 = vunpack.c.h.b16 %v60
  %v346 = vunpack.c.l.b16 %v61
  %v347 = vunpack.c.h.b16 %v61
  %v348 = vunpack.c.l.b16 %v62
  %v349 = vunpack.c.h.b16 %v62
  %v350 = vunpack.c.l.b16 %v63
  %v351 = vunpack.c.h.b16 %v63
  %v352 = vunpack.c.l.b16 %v64
  %v353 = vunpack.c.h.b16 %v64
  %v354 = vunpack.c.l.b16 %v65
  %v355 = vunpack.c.h.b16 %v65
  %v356 = vunpack.c.l.b16 %v66
  %v357 = vunpack.c.h.b16 %v66
  %v358 = vunpack.c.l.b16 %v67
  %v359 = vunpack.c.h.b16 %v67
  %v360 = vunpack.c.l.b16 %v68
  %v361 = vunpack.c.h.b16 %v68
  %v362 = vunpack.c.l.b16 %v69
  %v363 = vunpack.c.h.b16 %v69
  %v364 = vunpack.c.l.b16 %v70
  %v365 = vunpack.c.h.b16 %v70
  %v366 = vunpack.c.l.b16 %v71
  %v367 = vunpack.c.h.b16 %v71
  %v368 = vunpack.c.l.b16 %v72
  %v369 = vunpack.c.h.b16 %v72
  %v370 = vunpack.c.l.b16 %v73
  %v371 = vunpack.c.h.b16 %v73
  %v372 = vunpack.c.l.b16 %v74
  %v373 = vunpack.c.h.b16 %v74
  %v374 = vunpack.c.l.b16 %v75
  %v375 = vunpack.c.h.b16 %v75
  %v376 = vunpack.c.l.b16 %v76
  %v377 = vunpack.c.h.b16 %v76
  %v378 = vunpack.c.l.b16 %v77
  %v379 = vunpack.c.h.b16 %v77
  %v380 = vunpack.c.l.b16 %v78
  %v381 = vunpack.c.h.b16 %v78
  %v382 = vunpack.c.l.b16 %v79
  %v383 = vunpack.c.h.b16 %v79
  %v384 = vunpack.c.l.b16 %v80
  %v385 = vunpack.c.h.b16 %v80
  %v386 = vunpack.c.l.b16 %v81
  %v387 = vunpack.c.h.b16 %v81
  %v388 = vunpack.c.l.b16 %v82
  %v389 = vunpack.c.h.b16 %v82
  %v390 = vunpack.c.l.b16 %v83
  %v391 = vunpack.c.h.b16 %v83
  %v392 = vunpack.c.l.b16 %v84
  %v393 = vunpack.c.h.b16 %v84
  %v394 = vunpack.c.l.b16 %v85
  %v395 = vunpack.c.h.b16 %v85
  %v396 = vunpack.c.l.b16 %v86
  %v397 = vunpack.c.h.b16 %v86
  %v398 = vunpack.c.l.b16 %v87
  %v399 = vunpack.c.h.b16 %v87
  %v400 = vunpack.c.l.b16 %v88
  %v401 = vunpack.c.h.b16 %v88
  %v402 = vunpack.c.l.b16 %v89
  %v403 = vunpack.c.h.b16 %v89
  %v404 = vunpack.c.l.b16 %v90
  %v405 = vunpack.c.h.b16 %v90
  %v406 = vunpack.c.l.b16 %v91
  %v407 = vunpack.c.h.b16 %v91
  %v408 = vunpack.c.l.b16 %v92
  %v409 = vunpack.c.h.b16 %v92
  %v410 = vunpack.c.l.b16 %v93
  %v411 = vunpack.c.h.b16 %v93
  %v412 = vunpack.c.l.b16 %v94
  %v413 = vunpack.c.h.b16 %v94
  %v414 = vunpack.c.l.b16 %v95
  %v415 = vunpack.c.h.b16 %v95
  %v416 = vunpack.c.l.b16 %v96
  %v417 = vunpack.c.h.b16 %v96
  %v418 = vunpack.c.l.b16 %v97
  %v419 = vunpack.c.h.b16 %v97
  %v420 = vunpack.c.l.b16 %v98
  %v421 = vunpack.c.h.b16 %v98
  %v422 = vunpack.c.l.b16 %v99
  %v423 = vunpack.c.h.b16 %v99
  %v424 = vunpack.c.l.b16 %v100
  %v425 = vunpack.c.h.b16 %v100
  %v426 = vunpack.c.l.b16 %v101
  %v427 = vunpack.c.h.b16 %v101
  %v428 = vunpack.c.l.b16 %v102
  %v429 = vunpack.c.h.b16 %v102
  %v430 = vunpack.c.l.b16 %v103
  %v431 = vunpack.c.h.b16 %v103
  %v432 = vunpack.c.l.b16 %v104
  %v433 = vunpack.c.h.b16 %v104
  %v434 = vunpack.c.l.b16 %v105
  %v435 = vunpack.c.h.b16 %v105
  %v436 = vunpack.c.l.b16 %v106
  %v437 = vunpack.c.h.b16 %v106
  %v438 = vunpack.c.l.b16 %v107
  %v439 = vunpack.c.h.b16 %v107
  %v440 = vunpack.c.l.b16 %v108
  %v441 = vunpack.c.h.b16 %v108
  %v442 = vunpack.c.l.b16 %v109
  %v443 = vunpack.c.h.b16 %v109
  %v444 = vunpack.c.l.b16 %v110
  %v445 = vunpack.c.h.b16 %v110
  %v446 = vunpack.c.l.b16 %v111
  %v447 = vunpack.c.h.b16 %v111
  %v448 = vunpack.c.l.b16 %v112
  %v449 = vunpack.c.h.b16 %v112
  %v450 = vunpack.c.l.b16 %v113
  %v451 = vunpack.c.h.b16 %v113
  %v452 = vunpack.c.l.b16 %v114
  %v453 = vunpack.c.h.b16 %v114
  %v454 = vpack.c.b16 %v256, %v254
  %v455 = vpack.c.b16 %v257, %v255
  %v456 = vpack.c.b16 %v260, %v258
  %v457 = vpack.c.b16 %v261, %v259
  %v458 = vpack.c.b16 %v264, %v262
  %v459 = vpack.c.b16 %v265, %v263
  %v460 = vpack.c.b16 %v268, %v266
  %v461 = vpack.c.b16 %v269, %v267
  %v462 = vpack.c.b16 %v272, %v270
  %v463 = vpack.c.b16 %v273, %v271
  %v464 = vpack.c.b16 %v276, %v274
  %v465 = vpack.c.b16 %v277, %v275
  %v466 = vpack.c.b16 %v280, %v278
  %v467 = vpack.c.b16 %v281, %v279
  %v468 = vpack.c.b16 %v284, %v282
  %v469 = vpack.c.b16 %v285, %v283
  %v470 = vpack.c.b16 %v288, %v286
  %v471 = vpack.c.b16 %v289, %v287
  %v472 = vpack.c.b16 %v292, %v290
  %v473 = vpack.c.b16 %v293, %v291
  %v474 = vpack.c.b16 %v296, %v294
  %v475 = vpack.c.b16 %v297, %v295
  %v476 = vpack.c.b16 %v300, %v298
  %v477 = vpack.c.b16 %v301, %v299
  %v478 = vpack.c.b16 %v304, %v302
  %v479 = vpack.c.b16 %v305, %v303
  %v480 = vpack.c.b16 %v308, %v306
  %v481 = vpack.c.b16 %v309, %v307
  %v482 = vpack.c.b16 %v312, %v310
  %v483 = vpack.c.b16 %v313, %v311
  %v484 = vpack.c.b16 %v316, %v314
  %v485 = vpack.c.b16 %v317, %v315
  %v486 = vpack.c.b16 %v320, %v318
  %v487 = vpack.c.b16 %v321, %v319
  %v488 = vpack.c.b16 %v324, %v322
  %v489 = vpack.c.b16 %v325, %v323
  %v490 = vpack.c.b16 %v328, %v326
  %v491 = vpack.c.b16 %v329, %v327
  %v492 = vpack.c.b16 %v332, %v330
  %v493 = vpack.c.b16 %v333, %v331
  %v494 = vpack.c.b16 %v336, %v334
  %v495 = vpack.c.b16 %v337, %v335
  %v496 = vpack.c.b16 %v340, %v338
  %v497 = vpack.c.b16 %v341, %v339
  %v498 = vpack.c.b16 %v344, %v342
  %v499 = vpack.c.b16 %v345, %v343
  %v500 = vpack.c.b16 %v348, %v346
  %v501 = vpack.c.b16 %v349, %v347
  %v502 = vpack.c.b16 %v352, %v350
  %v503 = vpack.c.b16 %v353, %v351
  %v504 = vpack.c.b16 %v356, %v354
  %v505 = vpack.c.b16 %v357, %v355
  %v506 = vpack.c.b16 %v360, %v358
  %v507 = vpack.c.b16 %v361, %v359
  %v508 = vpack.c.b16 %v364, %v362
  %v509 = vpack.c.b16 %v365, %v363
  %v510 = vpack.c.b16 %v368, %v366
  %v511 = vpack.c.b16 %v369, %v367
  %v512 = vpack.c.b16 %v372, %v370
  %v513 = vpack.c.b16 %v373, %v371
  %v514 = vpack.c.b16 %v376, %v374
  %v515 = vpack.c.b16 %v377, %v375
  %v516 = vpack.c.b16 %v380, %v378
  %v517 = vpack.c.b16 %v381, %v379
  %v518 = vpack.c.b16 %v384, %v382
  %v519 = vpack.c.b16 %v385, %v383
  %v520 = vpack.c.b16 %v388, %v386
  %v521 = vpack.c.b16 %v389, %v387
  %v522 = vpack.c.b16 %v392, %v390
  %v523 = vpack.c.b16 %v393, %v391
  %v524 = vpack.c.b16 %v396, %v394
  %v525 = vpack.c.b16 %v397, %v395
  %v526 = vpack.c.b16 %v400, %v398
  %v527 = vpack.c.b16 %v401, %v399
  %v528 = vpack.c.b16 %v404, %v402
  %v529 = vpack.c.b16 %v405, %v403
  %v530 = vpack.c.b16 %v408, %v406
  %v531 = vpack.c.b16 %v409, %v407
  %v532 = vpack.c.b16 %v412, %v410
  %v533 = vpack.c.b16 %v413, %v411
  %v534 = vpack.c.b16 %v416, %v414
  %v535 = vpack.c.b16 %v417, %v415
  %v536 = vpack.c.b16 %v420, %v418
  %v537 = vpack.c.b16 %v421, %v419
  %v538 = vpack.c.b16 %v424, %v422
  %v539 = vpack.c.b16 %v425, %v423
  %v540 = vpack.c.b16 %v428, %v426
  %v541 = vpack.c.b16 %v429, %v427
  %v542 = vpack.c.b16 %v432, %v430
  %v543 = vpack.c.b16 %v433, %v431
  %v544 = vpack.c.b16 %v436, %v434
  %v545 = vpack.c.b16 %v437, %v435
  %v546 = vpack.c.b16 %v440, %v438
  %v547 = vpack.c.b16 %v441, %v439
  %v548 = vpack.c.b16 %v444, %v442
  %v549 = vpack.c.b16 %v445, %v443
  %v550 = vpack.c.b16 %v448, %v446
  %v551 = vpack.c.b16 %v449, %v447
  %v552 = vpack.c.b16 %v452, %v450
  %v553 = vpack.c.b16 %v453, %v451
  %v686 = vunpack.c.l.b16 %v115
  %v687 = vunpack.c.l.b16 %v116
  %v688 = vunpack.c.l.b16 %v117
  %v689 = vunpack.c.l.b16 %v118
  %v690 = vunpack.c.l.b16 %v119
  %v691 = vunpack.c.l.b16 %v120
  %v692 = vunpack.c.l.b16 %v121
  %v693 = vunpack.c.l.b16 %v122
  %v694 = vunpack.c.l.b16 %v123
  %v695 = vunpack.c.l.b16 %v124
  %v696 = vunpack.c.l.b16 %v125
  %v697 = vunpack.c.l.b16 %v126
  %v698 = vunpack.c.l.b16 %v127
  %v699 = vunpack.c.l.b16 %v128
  %v700 = vunpack.c.l.b16 %v129
  %v701 = vunpack.c.l.b16 %v130
  %v702 = vunpack.c.l.b16 %v131
  %v703 = vunpack.c.l.b16 %v132
  %v704 = vunpack.c.l.b16 %v133
  %v705 = vunpack.c.l.b16 %v134
  %v706 = vunpack.c.l.b16 %v135
  %v707 = vunpack.c.l.b16 %v136
  %v708 = vunpack.c.l.b16 %v137
  %v709 = vunpack.c.l.b16 %v138
  %v710 = vunpack.c.l.b16 %v139
  %v711 = vunpack.c.l.b16 %v140
  %v712 = vunpack.c.l.b16 %v141
  %v713 = vunpack.c.l.b16 %v142
  %v714 = vunpack.c.l.b16 %v143
  %v715 = vunpack.c.l.b16 %v144
  %v716 = vunpack.c.l.b16 %v145
  %v717 = vunpack.c.l.b16 %v146
  %v718 = vpack.c.b16 %v687, %v686
  %v719 = vpack.c.b16 %v689, %v688
  %v720 = vpack.c.b16 %v691, %v690
  %v721 = vpack.c.b16 %v693, %v692
  %v722 = vpack.c.b16 %v695, %v694
  %v723 = vpack.c.b16 %v697, %v696
  %v724 = vpack.c.b16 %v699, %v698
  %v725 = vpack.c.b16 %v701, %v700
  %v726 = vpack.c.b16 %v703, %v702
  %v727 = vpack.c.b16 %v705, %v704
  %v728 = vpack.c.b16 %v707, %v706
  %v729 = vpack.c.b16 %v709, %v708
  %v730 = vpack.c.b16 %v711, %v710
  %v731 = vpack.c.b16 %v713, %v712
  %v732 = vpack.c.b16 %v715, %v714
  %v733 = vpack.c.b16 %v717, %v716
  %750 = vmatprep.subr.bf16.mxu0 0
  %751 = vmatpush1.bf16.msra.mxu0 %v718
  %752 = vmatprep.subr.bf16.mxu0 0
  %753 = vmatpush1.bf16.msra.mxu0 %v719
  %754 = vmatprep.subr.bf16.mxu0 0
  %755 = vmatpush1.bf16.msra.mxu0 %v720
  %756 = vmatprep.subr.bf16.mxu0 0
  %757 = vmatpush1.bf16.msra.mxu0 %v721
  %758 = vmatprep.subr.bf16.mxu0 0
  %759 = vmatpush1.bf16.msra.mxu0 %v722
  %760 = vmatprep.subr.bf16.mxu0 0
  %761 = vmatpush1.bf16.msra.mxu0 %v723
  %762 = vmatprep.subr.bf16.mxu0 0
  %763 = vmatpush1.bf16.msra.mxu0 %v724
  %764 = vmatprep.subr.bf16.mxu0 0
  %765 = vmatpush1.bf16.msra.mxu0 %v725
  %766 = vmatprep.subr.bf16.mxu0 0
  %767 = vmatpush1.bf16.msra.mxu0 %v726
  %768 = vmatprep.subr.bf16.mxu0 0
  %769 = vmatpush1.bf16.msra.mxu0 %v727
  %770 = vmatprep.subr.bf16.mxu0 0
  %771 = vmatpush1.bf16.msra.mxu0 %v728
  %772 = vmatprep.subr.bf16.mxu0 0
  %773 = vmatpush1.bf16.msra.mxu0 %v729
  %774 = vmatprep.subr.bf16.mxu0 0
  %775 = vmatpush1.bf16.msra.mxu0 %v730
  %776 = vmatprep.subr.bf16.mxu0 0
  %777 = vmatpush1.bf16.msra.mxu0 %v731
  %778 = vmatprep.subr.bf16.mxu0 0
  %779 = vmatpush1.bf16.msra.mxu0 %v732
  %780 = vmatprep.subr.bf16.mxu0 0
  %781 = vmatpush1.bf16.msra.mxu0 %v733
  %782 = vmatprep.mubr.bf16.mxu0 %v455
  %783 = vmatmul.mubr.bf16.gmra.mrb[0].mxu0 %v454
  %v784 = vpop.f32.mrb[0].mxu0
  %v785 = vadd.f32 %v152, %v784
  %v786 = vpop.f32.mrb[0].mxu0
  %v787 = vpop.f32.mrb[0].mxu0
  %v788 = vadd.f32 %v152, %v787
  %v789 = vpop.f32.mrb[0].mxu0
  %790 = vmatprep.mubr.bf16.mxu0 %v457
  %791 = vmatmul.mubr.bf16.gmra.mrb[0].mxu0 %v456
  %v792 = vpop.f32.mrb[0].mxu0
  %v793 = vadd.f32 %v152, %v792
  %v794 = vpop.f32.mrb[0].mxu0
  %v795 = vpop.f32.mrb[0].mxu0
  %v796 = vadd.f32 %v152, %v795
  %v797 = vpop.f32.mrb[0].mxu0
  %798 = vmatprep.mubr.bf16.mxu0 %v459
  %799 = vmatmul.mubr.bf16.gmra.mrb[0].mxu0 %v458
  %v800 = vpop.f32.mrb[0].mxu0
  %v801 = vadd.f32 %v152, %v800
  %v802 = vpop.f32.mrb[0].mxu0
  %v803 = vpop.f32.mrb[0].mxu0
  %v804 = vadd.f32 %v152, %v803
  %v805 = vpop.f32.mrb[0].mxu0
  %806 = vmatprep.mubr.bf16.mxu0 %v461
  %807 = vmatmul.mubr.bf16.gmra.mrb[0].mxu0 %v460
  %v808 = vpop.f32.mrb[0].mxu0
  %v809 = vadd.f32 %v152, %v808
  %v810 = vpop.f32.mrb[0].mxu0
  %v811 = vpop.f32.mrb[0].mxu0
  %v812 = vadd.f32 %v152, %v811
  %v813 = vpop.f32.mrb[0].mxu0
  %814 = vmatprep.mubr.bf16.mxu0 %v463
  %815 = vmatmul.mubr.bf16.gmra.mrb[0].mxu0 %v462
  %v816 = vpop.f32.mrb[0].mxu0
  %v817 = vadd.f32 %v152, %v816
  %v818 = vpop.f32.mrb[0].mxu0
  %v819 = vpop.f32.mrb[0].mxu0
  %v820 = vadd.f32 %v152, %v819
  %v821 = vpop.f32.mrb[0].mxu0
  %822 = vmatprep.mubr.bf16.mxu0 %v465
  %823 = vmatmul.mubr.bf16.gmra.mrb[0].mxu0 %v464
  %v824 = vpop.f32.mrb[0].mxu0
  %v825 = vadd.f32 %v152, %v824
  %v826 = vpop.f32.mrb[0].mxu0
  %v827 = vpop.f32.mrb[0].mxu0
  %v828 = vadd.f32 %v152, %v827
  %v829 = vpop.f32.mrb[0].mxu0
  %830 = vmatprep.mubr.bf16.mxu0 %v467
  %831 = vmatmul.mubr.bf16.gmra.mrb[0].mxu0 %v466
  %v832 = vpop.f32.mrb[0].mxu0
  %v833 = vadd.f32 %v152, %v832
  %v834 = vpop.f32.mrb[0].mxu0
  %v835 = vpop.f32.mrb[0].mxu0
  %v836 = vadd.f32 %v152, %v835
  %v837 = vpop.f32.mrb[0].mxu0
  %838 = vmatprep.mubr.bf16.mxu0 %v469
  %839 = vmatmul.mubr.bf16.gmra.mrb[0].mxu0 %v468
  %v840 = vpop.f32.mrb[0].mxu0
  %v841 = vadd.f32 %v152, %v840
  %v842 = vpop.f32.mrb[0].mxu0
  %v843 = vpop.f32.mrb[0].mxu0
  %v844 = vadd.f32 %v152, %v843
  %v845 = vpop.f32.mrb[0].mxu0
  %846 = vmatprep.mubr.bf16.mxu0 %v471
  %847 = vmatmul.mubr.bf16.gmra.mrb[0].mxu0 %v470
  %v848 = vpop.f32.mrb[0].mxu0
  %v849 = vadd.f32 %v152, %v848
  %v850 = vpop.f32.mrb[0].mxu0
  %v851 = vpop.f32.mrb[0].mxu0
  %v852 = vadd.f32 %v152, %v851
  %v853 = vpop.f32.mrb[0].mxu0
  %854 = vmatprep.mubr.bf16.mxu0 %v473
  %855 = vmatmul.mubr.bf16.gmra.mrb[0].mxu0 %v472
  %v856 = vpop.f32.mrb[0].mxu0
  %v857 = vadd.f32 %v152, %v856
  %v858 = vpop.f32.mrb[0].mxu0
  %v859 = vpop.f32.mrb[0].mxu0
  %v860 = vadd.f32 %v152, %v859
  %v861 = vpop.f32.mrb[0].mxu0
  %862 = vmatprep.mubr.bf16.mxu0 %v475
  %863 = vmatmul.mubr.bf16.gmra.mrb[0].mxu0 %v474
  %v864 = vpop.f32.mrb[0].mxu0
  %v865 = vadd.f32 %v152, %v864
  %v866 = vpop.f32.mrb[0].mxu0
  %v867 = vpop.f32.mrb[0].mxu0
  %v868 = vadd.f32 %v152, %v867
  %v869 = vpop.f32.mrb[0].mxu0
  %870 = vmatprep.mubr.bf16.mxu0 %v477
  %871 = vmatmul.mubr.bf16.gmra.mrb[0].mxu0 %v476
  %v872 = vpop.f32.mrb[0].mxu0
  %v873 = vadd.f32 %v152, %v872
  %v874 = vpop.f32.mrb[0].mxu0
  %v875 = vpop.f32.mrb[0].mxu0
  %v876 = vadd.f32 %v152, %v875
  %v877 = vpop.f32.mrb[0].mxu0
  %878 = vmatprep.mubr.bf16.mxu0 %v479
  %879 = vmatmul.mubr.bf16.gmra.mrb[0].mxu0 %v478
  %v880 = vpop.f32.mrb[0].mxu0
  %v881 = vadd.f32 %v152, %v880
  %v882 = vpop.f32.mrb[0].mxu0
  %v883 = vpop.f32.mrb[0].mxu0
  %v884 = vadd.f32 %v152, %v883
  %v885 = vpop.f32.mrb[0].mxu0
  %886 = vmatprep.mubr.bf16.mxu0 %v481
  %887 = vmatmul.mubr.bf16.gmra.mrb[0].mxu0 %v480
  %v888 = vpop.f32.mrb[0].mxu0
  %v889 = vadd.f32 %v152, %v888
  %v890 = vpop.f32.mrb[0].mxu0
  %v891 = vpop.f32.mrb[0].mxu0
  %v892 = vadd.f32 %v152, %v891
  %v893 = vpop.f32.mrb[0].mxu0
  %894 = vmatprep.mubr.bf16.mxu0 %v483
  %895 = vmatmul.mubr.bf16.gmra.mrb[0].mxu0 %v482
  %v896 = vpop.f32.mrb[0].mxu0
  %v897 = vadd.f32 %v152, %v896
  %v898 = vpop.f32.mrb[0].mxu0
  %v899 = vpop.f32.mrb[0].mxu0
  %v900 = vadd.f32 %v152, %v899
  %v901 = vpop.f32.mrb[0].mxu0
  %902 = vmatprep.mubr.bf16.mxu0 %v485
  %903 = vmatmul.mubr.bf16.gmra.mrb[0].mxu0 %v484
  %v904 = vpop.f32.mrb[0].mxu0
  %v905 = vadd.f32 %v152, %v904
  %v906 = vpop.f32.mrb[0].mxu0
  %v907 = vpop.f32.mrb[0].mxu0
  %v908 = vadd.f32 %v152, %v907
  %v909 = vpop.f32.mrb[0].mxu0
  %910 = vmatprep.mubr.bf16.mxu0 %v487
  %911 = vmatmul.mubr.bf16.gmra.mrb[0].mxu0 %v486
  %v912 = vpop.f32.mrb[0].mxu0
  %v913 = vadd.f32 %v152, %v912
  %v914 = vpop.f32.mrb[0].mxu0
  %v915 = vpop.f32.mrb[0].mxu0
  %v916 = vadd.f32 %v152, %v915
  %v917 = vpop.f32.mrb[0].mxu0
  %918 = vmatprep.mubr.bf16.mxu0 %v489
  %919 = vmatmul.mubr.bf16.gmra.mrb[0].mxu0 %v488
  %v920 = vpop.f32.mrb[0].mxu0
  %v921 = vadd.f32 %v152, %v920
  %v922 = vpop.f32.mrb[0].mxu0
  %v923 = vpop.f32.mrb[0].mxu0
  %v924 = vadd.f32 %v152, %v923
  %v925 = vpop.f32.mrb[0].mxu0
  %926 = vmatprep.mubr.bf16.mxu0 %v491
  %927 = vmatmul.mubr.bf16.gmra.mrb[0].mxu0 %v490
  %v928 = vpop.f32.mrb[0].mxu0
  %v929 = vadd.f32 %v152, %v928
  %v930 = vpop.f32.mrb[0].mxu0
  %v931 = vpop.f32.mrb[0].mxu0
  %v932 = vadd.f32 %v152, %v931
  %v933 = vpop.f32.mrb[0].mxu0
  %934 = vmatprep.mubr.bf16.mxu0 %v493
  %935 = vmatmul.mubr.bf16.gmra.mrb[0].mxu0 %v492
  %v936 = vpop.f32.mrb[0].mxu0
  %v937 = vadd.f32 %v152, %v936
  %v938 = vpop.f32.mrb[0].mxu0
  %v939 = vpop.f32.mrb[0].mxu0
  %v940 = vadd.f32 %v152, %v939
  %v941 = vpop.f32.mrb[0].mxu0
  %942 = vmatprep.mubr.bf16.mxu0 %v495
  %943 = vmatmul.mubr.bf16.gmra.mrb[0].mxu0 %v494
  %v944 = vpop.f32.mrb[0].mxu0
  %v945 = vadd.f32 %v152, %v944
  %v946 = vpop.f32.mrb[0].mxu0
  %v947 = vpop.f32.mrb[0].mxu0
  %v948 = vadd.f32 %v152, %v947
  %v949 = vpop.f32.mrb[0].mxu0
  %950 = vmatprep.mubr.bf16.mxu0 %v497
  %951 = vmatmul.mubr.bf16.gmra.mrb[0].mxu0 %v496
  %v952 = vpop.f32.mrb[0].mxu0
  %v953 = vadd.f32 %v152, %v952
  %v954 = vpop.f32.mrb[0].mxu0
  %v955 = vpop.f32.mrb[0].mxu0
  %v956 = vadd.f32 %v152, %v955
  %v957 = vpop.f32.mrb[0].mxu0
  %958 = vmatprep.mubr.bf16.mxu0 %v499
  %959 = vmatmul.mubr.bf16.gmra.mrb[0].mxu0 %v498
  %v960 = vpop.f32.mrb[0].mxu0
  %v961 = vadd.f32 %v152, %v960
  %v962 = vpop.f32.mrb[0].mxu0
  %v963 = vpop.f32.mrb[0].mxu0
  %v964 = vadd.f32 %v152, %v963
  %v965 = vpop.f32.mrb[0].mxu0
  %966 = vmatprep.mubr.bf16.mxu0 %v501
  %967 = vmatmul.mubr.bf16.gmra.mrb[0].mxu0 %v500
  %v968 = vpop.f32.mrb[0].mxu0
  %v969 = vadd.f32 %v152, %v968
  %v970 = vpop.f32.mrb[0].mxu0
  %v971 = vpop.f32.mrb[0].mxu0
  %v972 = vadd.f32 %v152, %v971
  %v973 = vpop.f32.mrb[0].mxu0
  %974 = vmatprep.mubr.bf16.mxu0 %v503
  %975 = vmatmul.mubr.bf16.gmra.mrb[0].mxu0 %v502
  %v976 = vpop.f32.mrb[0].mxu0
  %v977 = vadd.f32 %v152, %v976
  %v978 = vpop.f32.mrb[0].mxu0
  %v979 = vpop.f32.mrb[0].mxu0
  %v980 = vadd.f32 %v152, %v979
  %v981 = vpop.f32.mrb[0].mxu0
  %982 = vmatprep.mubr.bf16.mxu0 %v505
  %983 = vmatmul.mubr.bf16.gmra.mrb[0].mxu0 %v504
  %v984 = vpop.f32.mrb[0].mxu0
  %v985 = vadd.f32 %v152, %v984
  %v986 = vpop.f32.mrb[0].mxu0
  %v987 = vpop.f32.mrb[0].mxu0
  %v988 = vadd.f32 %v152, %v987
  %v989 = vpop.f32.mrb[0].mxu0
  %990 = vmatprep.mubr.bf16.mxu0 %v507
  %991 = vmatmul.mubr.bf16.gmra.mrb[0].mxu0 %v506
  %v992 = vpop.f32.mrb[0].mxu0
  %v993 = vadd.f32 %v152, %v992
  %v994 = vpop.f32.mrb[0].mxu0
  %v995 = vpop.f32.mrb[0].mxu0
  %v996 = vadd.f32 %v152, %v995
  %v997 = vpop.f32.mrb[0].mxu0
  %998 = vmatprep.mubr.bf16.mxu0 %v509
  %999 = vmatmul.mubr.bf16.gmra.mrb[0].mxu0 %v508
  %v1000 = vpop.f32.mrb[0].mxu0
  %v1001 = vadd.f32 %v152, %v1000
  %v1002 = vpop.f32.mrb[0].mxu0
  %v1003 = vpop.f32.mrb[0].mxu0
  %v1004 = vadd.f32 %v152, %v1003
  %v1005 = vpop.f32.mrb[0].mxu0
  %1006 = vmatprep.mubr.bf16.mxu0 %v511
  %1007 = vmatmul.mubr.bf16.gmra.mrb[0].mxu0 %v510
  %v1008 = vpop.f32.mrb[0].mxu0
  %v1009 = vadd.f32 %v152, %v1008
  %v1010 = vpop.f32.mrb[0].mxu0
  %v1011 = vpop.f32.mrb[0].mxu0
  %v1012 = vadd.f32 %v152, %v1011
  %v1013 = vpop.f32.mrb[0].mxu0
  %1014 = vmatprep.mubr.bf16.mxu0 %v513
  %1015 = vmatmul.mubr.bf16.gmra.mrb[0].mxu0 %v512
  %v1016 = vpop.f32.mrb[0].mxu0
  %v1017 = vadd.f32 %v152, %v1016
  %v1018 = vpop.f32.mrb[0].mxu0
  %v1019 = vpop.f32.mrb[0].mxu0
  %v1020 = vadd.f32 %v152, %v1019
  %v1021 = vpop.f32.mrb[0].mxu0
  %1022 = vmatprep.mubr.bf16.mxu0 %v515
  %1023 = vmatmul.mubr.bf16.gmra.mrb[0].mxu0 %v514
  %v1024 = vpop.f32.mrb[0].mxu0
  %v1025 = vadd.f32 %v152, %v1024
  %v1026 = vpop.f32.mrb[0].mxu0
  %v1027 = vpop.f32.mrb[0].mxu0
  %v1028 = vadd.f32 %v152, %v1027
  %v1029 = vpop.f32.mrb[0].mxu0
  %1030 = vmatprep.mubr.bf16.mxu0 %v517
  %1031 = vmatmul.mubr.bf16.gmra.mrb[0].mxu0 %v516
  %v1032 = vpop.f32.mrb[0].mxu0
  %v1033 = vadd.f32 %v152, %v1032
  %v1034 = vpop.f32.mrb[0].mxu0
  %v1035 = vpop.f32.mrb[0].mxu0
  %v1036 = vadd.f32 %v152, %v1035
  %v1037 = vpop.f32.mrb[0].mxu0
  %1038 = vmatprep.mubr.bf16.mxu0 %v519
  %1039 = vmatmul.mubr.bf16.gmra.mrb[0].mxu0 %v518
  %v1040 = vpop.f32.mrb[0].mxu0
  %v1041 = vadd.f32 %v152, %v1040
  %v1042 = vpop.f32.mrb[0].mxu0
  %v1043 = vpop.f32.mrb[0].mxu0
  %v1044 = vadd.f32 %v152, %v1043
  %v1045 = vpop.f32.mrb[0].mxu0
  %1046 = vmatprep.mubr.bf16.mxu0 %v521
  %1047 = vmatmul.mubr.bf16.gmra.mrb[0].mxu0 %v520
  %v1048 = vpop.f32.mrb[0].mxu0
  %v1049 = vadd.f32 %v152, %v1048
  %v1050 = vpop.f32.mrb[0].mxu0
  %v1051 = vpop.f32.mrb[0].mxu0
  %v1052 = vadd.f32 %v152, %v1051
  %v1053 = vpop.f32.mrb[0].mxu0
  %1054 = vmatprep.mubr.bf16.mxu0 %v523
  %1055 = vmatmul.mubr.bf16.gmra.mrb[0].mxu0 %v522
  %v1056 = vpop.f32.mrb[0].mxu0
  %v1057 = vadd.f32 %v152, %v1056
  %v1058 = vpop.f32.mrb[0].mxu0
  %v1059 = vpop.f32.mrb[0].mxu0
  %v1060 = vadd.f32 %v152, %v1059
  %v1061 = vpop.f32.mrb[0].mxu0
  %1062 = vmatprep.mubr.bf16.mxu0 %v525
  %1063 = vmatmul.mubr.bf16.gmra.mrb[0].mxu0 %v524
  %v1064 = vpop.f32.mrb[0].mxu0
  %v1065 = vadd.f32 %v152, %v1064
  %v1066 = vpop.f32.mrb[0].mxu0
  %v1067 = vpop.f32.mrb[0].mxu0
  %v1068 = vadd.f32 %v152, %v1067
  %v1069 = vpop.f32.mrb[0].mxu0
  %1070 = vmatprep.mubr.bf16.mxu0 %v527
  %1071 = vmatmul.mubr.bf16.gmra.mrb[0].mxu0 %v526
  %v1072 = vpop.f32.mrb[0].mxu0
  %v1073 = vadd.f32 %v152, %v1072
  %v1074 = vpop.f32.mrb[0].mxu0
  %v1075 = vpop.f32.mrb[0].mxu0
  %v1076 = vadd.f32 %v152, %v1075
  %v1077 = vpop.f32.mrb[0].mxu0
  %1078 = vmatprep.mubr.bf16.mxu0 %v529
  %1079 = vmatmul.mubr.bf16.gmra.mrb[0].mxu0 %v528
  %v1080 = vpop.f32.mrb[0].mxu0
  %v1081 = vadd.f32 %v152, %v1080
  %v1082 = vpop.f32.mrb[0].mxu0
  %v1083 = vpop.f32.mrb[0].mxu0
  %v1084 = vadd.f32 %v152, %v1083
  %v1085 = vpop.f32.mrb[0].mxu0
  %1086 = vmatprep.mubr.bf16.mxu0 %v531
  %1087 = vmatmul.mubr.bf16.gmra.mrb[0].mxu0 %v530
  %v1088 = vpop.f32.mrb[0].mxu0
  %v1089 = vadd.f32 %v152, %v1088
  %v1090 = vpop.f32.mrb[0].mxu0
  %v1091 = vpop.f32.mrb[0].mxu0
  %v1092 = vadd.f32 %v152, %v1091
  %v1093 = vpop.f32.mrb[0].mxu0
  %1094 = vmatprep.mubr.bf16.mxu0 %v533
  %1095 = vmatmul.mubr.bf16.gmra.mrb[0].mxu0 %v532
  %v1096 = vpop.f32.mrb[0].mxu0
  %v1097 = vadd.f32 %v152, %v1096
  %v1098 = vpop.f32.mrb[0].mxu0
  %v1099 = vpop.f32.mrb[0].mxu0
  %v1100 = vadd.f32 %v152, %v1099
  %v1101 = vpop.f32.mrb[0].mxu0
  %1102 = vmatprep.mubr.bf16.mxu0 %v535
  %1103 = vmatmul.mubr.bf16.gmra.mrb[0].mxu0 %v534
  %v1104 = vpop.f32.mrb[0].mxu0
  %v1105 = vadd.f32 %v152, %v1104
  %v1106 = vpop.f32.mrb[0].mxu0
  %v1107 = vpop.f32.mrb[0].mxu0
  %v1108 = vadd.f32 %v152, %v1107
  %v1109 = vpop.f32.mrb[0].mxu0
  %1110 = vmatprep.mubr.bf16.mxu0 %v537
  %1111 = vmatmul.mubr.bf16.gmra.mrb[0].mxu0 %v536
  %v1112 = vpop.f32.mrb[0].mxu0
  %v1113 = vadd.f32 %v152, %v1112
  %v1114 = vpop.f32.mrb[0].mxu0
  %v1115 = vpop.f32.mrb[0].mxu0
  %v1116 = vadd.f32 %v152, %v1115
  %v1117 = vpop.f32.mrb[0].mxu0
  %1118 = vmatprep.mubr.bf16.mxu0 %v539
  %1119 = vmatmul.mubr.bf16.gmra.mrb[0].mxu0 %v538
  %v1120 = vpop.f32.mrb[0].mxu0
  %v1121 = vadd.f32 %v152, %v1120
  %v1122 = vpop.f32.mrb[0].mxu0
  %v1123 = vpop.f32.mrb[0].mxu0
  %v1124 = vadd.f32 %v152, %v1123
  %v1125 = vpop.f32.mrb[0].mxu0
  %1126 = vmatprep.mubr.bf16.mxu0 %v541
  %1127 = vmatmul.mubr.bf16.gmra.mrb[0].mxu0 %v540
  %v1128 = vpop.f32.mrb[0].mxu0
  %v1129 = vadd.f32 %v152, %v1128
  %v1130 = vpop.f32.mrb[0].mxu0
  %v1131 = vpop.f32.mrb[0].mxu0
  %v1132 = vadd.f32 %v152, %v1131
  %v1133 = vpop.f32.mrb[0].mxu0
  %1134 = vmatprep.mubr.bf16.mxu0 %v543
  %1135 = vmatmul.mubr.bf16.gmra.mrb[0].mxu0 %v542
  %v1136 = vpop.f32.mrb[0].mxu0
  %v1137 = vadd.f32 %v152, %v1136
  %v1138 = vpop.f32.mrb[0].mxu0
  %v1139 = vpop.f32.mrb[0].mxu0
  %v1140 = vadd.f32 %v152, %v1139
  %v1141 = vpop.f32.mrb[0].mxu0
  %1142 = vmatprep.mubr.bf16.mxu0 %v545
  %1143 = vmatmul.mubr.bf16.gmra.mrb[0].mxu0 %v544
  %v1144 = vpop.f32.mrb[0].mxu0
  %v1145 = vadd.f32 %v152, %v1144
  %v1146 = vpop.f32.mrb[0].mxu0
  %v1147 = vpop.f32.mrb[0].mxu0
  %v1148 = vadd.f32 %v152, %v1147
  %v1149 = vpop.f32.mrb[0].mxu0
  %1150 = vmatprep.mubr.bf16.mxu0 %v547
  %1151 = vmatmul.mubr.bf16.gmra.mrb[0].mxu0 %v546
  %v1152 = vpop.f32.mrb[0].mxu0
  %v1153 = vadd.f32 %v152, %v1152
  %v1154 = vpop.f32.mrb[0].mxu0
  %v1155 = vpop.f32.mrb[0].mxu0
  %v1156 = vadd.f32 %v152, %v1155
  %v1157 = vpop.f32.mrb[0].mxu0
  %1158 = vmatprep.mubr.bf16.mxu0 %v549
  %1159 = vmatmul.mubr.bf16.gmra.mrb[0].mxu0 %v548
  %v1160 = vpop.f32.mrb[0].mxu0
  %v1161 = vadd.f32 %v152, %v1160
  %v1162 = vpop.f32.mrb[0].mxu0
  %v1163 = vpop.f32.mrb[0].mxu0
  %v1164 = vadd.f32 %v152, %v1163
  %v1165 = vpop.f32.mrb[0].mxu0
  %1166 = vmatprep.mubr.bf16.mxu0 %v551
  %1167 = vmatmul.mubr.bf16.gmra.mrb[0].mxu0 %v550
  %v1168 = vpop.f32.mrb[0].mxu0
  %v1169 = vadd.f32 %v152, %v1168
  %v1170 = vpop.f32.mrb[0].mxu0
  %v1171 = vpop.f32.mrb[0].mxu0
  %v1172 = vadd.f32 %v152, %v1171
  %v1173 = vpop.f32.mrb[0].mxu0
  %1174 = vmatprep.mubr.bf16.mxu0 %v553
  %1175 = vmatmul.mubr.bf16.gmra.mrb[0].mxu0 %v552
  %v1176 = vpop.f32.mrb[0].mxu0
  %v1177 = vadd.f32 %v152, %v1176
  %v1178 = vpop.f32.mrb[0].mxu0
  %v1179 = vpop.f32.mrb[0].mxu0
  %v1180 = vadd.f32 %v152, %v1179
  %v1181 = vpop.f32.mrb[0].mxu0
  %1182 = vdwg.mxu0
  %v1183 = vmul.f32 %v785, 0.01
  %v1184 = vmul.f32 %v788, 0.01
  %v1185 = vmul.f32 %v793, 0.01
  %v1186 = vmul.f32 %v796, 0.01
  %v1187 = vmul.f32 %v801, 0.01
  %v1188 = vmul.f32 %v804, 0.01
  %v1189 = vmul.f32 %v809, 0.01
  %v1190 = vmul.f32 %v812, 0.01
  %v1191 = vmul.f32 %v817, 0.01
  %v1192 = vmul.f32 %v820, 0.01
  %v1193 = vmul.f32 %v825, 0.01
  %v1194 = vmul.f32 %v828, 0.01
  %v1195 = vmul.f32 %v833, 0.01
  %v1196 = vmul.f32 %v836, 0.01
  %v1197 = vmul.f32 %v841, 0.01
  %v1198 = vmul.f32 %v844, 0.01
  %v1199 = vmul.f32 %v849, 0.01
  %v1200 = vmul.f32 %v852, 0.01
  %v1201 = vmul.f32 %v857, 0.01
  %v1202 = vmul.f32 %v860, 0.01
  %v1203 = vmul.f32 %v865, 0.01
  %v1204 = vmul.f32 %v868, 0.01
  %v1205 = vmul.f32 %v873, 0.01
  %v1206 = vmul.f32 %v876, 0.01
  %v1207 = vmul.f32 %v881, 0.01
  %v1208 = vmul.f32 %v884, 0.01
  %v1209 = vmul.f32 %v889, 0.01
  %v1210 = vmul.f32 %v892, 0.01
  %v1211 = vmul.f32 %v897, 0.01
  %v1212 = vmul.f32 %v900, 0.01
  %v1213 = vmul.f32 %v905, 0.01
  %v1214 = vmul.f32 %v908, 0.01
  %v1215 = vmul.f32 %v913, 0.01
  %v1216 = vmul.f32 %v916, 0.01
  %v1217 = vmul.f32 %v921, 0.01
  %v1218 = vmul.f32 %v924, 0.01
  %v1219 = vmul.f32 %v929, 0.01
  %v1220 = vmul.f32 %v932, 0.01
  %v1221 = vmul.f32 %v937, 0.01
  %v1222 = vmul.f32 %v940, 0.01
  %v1223 = vmul.f32 %v945, 0.01
  %v1224 = vmul.f32 %v948, 0.01
  %v1225 = vmul.f32 %v953, 0.01
  %v1226 = vmul.f32 %v956, 0.01
  %v1227 = vmul.f32 %v961, 0.01
  %v1228 = vmul.f32 %v964, 0.01
  %v1229 = vmul.f32 %v969, 0.01
  %v1230 = vmul.f32 %v972, 0.01
  %v1231 = vmul.f32 %v977, 0.01
  %v1232 = vmul.f32 %v980, 0.01
  %v1233 = vmul.f32 %v985, 0.01
  %v1234 = vmul.f32 %v988, 0.01
  %v1235 = vmul.f32 %v993, 0.01
  %v1236 = vmul.f32 %v996, 0.01
  %v1237 = vmul.f32 %v1001, 0.01
  %v1238 = vmul.f32 %v1004, 0.01
  %v1239 = vmul.f32 %v1009, 0.01
  %v1240 = vmul.f32 %v1012, 0.01
  %v1241 = vmul.f32 %v1017, 0.01
  %v1242 = vmul.f32 %v1020, 0.01
  %v1243 = vmul.f32 %v1025, 0.01
  %v1244 = vmul.f32 %v1028, 0.01
  %v1245 = vmul.f32 %v1033, 0.01
  %v1246 = vmul.f32 %v1036, 0.01
  %v1247 = vmul.f32 %v1041, 0.01
  %v1248 = vmul.f32 %v1044, 0.01
  %v1249 = vmul.f32 %v1049, 0.01
  %v1250 = vmul.f32 %v1052, 0.01
  %v1251 = vmul.f32 %v1057, 0.01
  %v1252 = vmul.f32 %v1060, 0.01
  %v1253 = vmul.f32 %v1065, 0.01
  %v1254 = vmul.f32 %v1068, 0.01
  %v1255 = vmul.f32 %v1073, 0.01
  %v1256 = vmul.f32 %v1076, 0.01
  %v1257 = vmul.f32 %v1081, 0.01
  %v1258 = vmul.f32 %v1084, 0.01
  %v1259 = vmul.f32 %v1089, 0.01
  %v1260 = vmul.f32 %v1092, 0.01
  %v1261 = vmul.f32 %v1097, 0.01
  %v1262 = vmul.f32 %v1100, 0.01
  %v1263 = vmul.f32 %v1105, 0.01
  %v1264 = vmul.f32 %v1108, 0.01
  %v1265 = vmul.f32 %v1113, 0.01
  %v1266 = vmul.f32 %v1116, 0.01
  %v1267 = vmul.f32 %v1121, 0.01
  %v1268 = vmul.f32 %v1124, 0.01
  %v1269 = vmul.f32 %v1129, 0.01
  %v1270 = vmul.f32 %v1132, 0.01
  %v1271 = vmul.f32 %v1137, 0.01
  %v1272 = vmul.f32 %v1140, 0.01
  %v1273 = vmul.f32 %v1145, 0.01
  %v1274 = vmul.f32 %v1148, 0.01
  %v1275 = vmul.f32 %v1153, 0.01
  %v1276 = vmul.f32 %v1156, 0.01
  %v1277 = vmul.f32 %v1161, 0.01
  %v1278 = vmul.f32 %v1164, 0.01
  %v1279 = vmul.f32 %v1169, 0.01
  %v1280 = vmul.f32 %v1172, 0.01
  %v1281 = vmul.f32 %v1177, 0.01
  %v1282 = vmul.f32 %v1180, 0.01
  %v1283 = vmax.f32 %v785, %v1183
  %v1284 = vmax.f32 %v788, %v1184
  %v1285 = vmax.f32 %v793, %v1185
  %v1286 = vmax.f32 %v796, %v1186
  %v1287 = vmax.f32 %v801, %v1187
  %v1288 = vmax.f32 %v804, %v1188
  %v1289 = vmax.f32 %v809, %v1189
  %v1290 = vmax.f32 %v812, %v1190
  %v1291 = vmax.f32 %v817, %v1191
  %v1292 = vmax.f32 %v820, %v1192
  %v1293 = vmax.f32 %v825, %v1193
  %v1294 = vmax.f32 %v828, %v1194
  %v1295 = vmax.f32 %v833, %v1195
  %v1296 = vmax.f32 %v836, %v1196
  %v1297 = vmax.f32 %v841, %v1197
  %v1298 = vmax.f32 %v844, %v1198
  %v1299 = vmax.f32 %v849, %v1199
  %v1300 = vmax.f32 %v852, %v1200
  %v1301 = vmax.f32 %v857, %v1201
  %v1302 = vmax.f32 %v860, %v1202
  %v1303 = vmax.f32 %v865, %v1203
  %v1304 = vmax.f32 %v868, %v1204
  %v1305 = vmax.f32 %v873, %v1205
  %v1306 = vmax.f32 %v876, %v1206
  %v1307 = vmax.f32 %v881, %v1207
  %v1308 = vmax.f32 %v884, %v1208
  %v1309 = vmax.f32 %v889, %v1209
  %v1310 = vmax.f32 %v892, %v1210
  %v1311 = vmax.f32 %v897, %v1211
  %v1312 = vmax.f32 %v900, %v1212
  %v1313 = vmax.f32 %v905, %v1213
  %v1314 = vmax.f32 %v908, %v1214
  %v1315 = vmax.f32 %v913, %v1215
  %v1316 = vmax.f32 %v916, %v1216
  %v1317 = vmax.f32 %v921, %v1217
  %v1318 = vmax.f32 %v924, %v1218
  %v1319 = vmax.f32 %v929, %v1219
  %v1320 = vmax.f32 %v932, %v1220
  %v1321 = vmax.f32 %v937, %v1221
  %v1322 = vmax.f32 %v940, %v1222
  %v1323 = vmax.f32 %v945, %v1223
  %v1324 = vmax.f32 %v948, %v1224
  %v1325 = vmax.f32 %v953, %v1225
  %v1326 = vmax.f32 %v956, %v1226
  %v1327 = vmax.f32 %v961, %v1227
  %v1328 = vmax.f32 %v964, %v1228
  %v1329 = vmax.f32 %v969, %v1229
  %v1330 = vmax.f32 %v972, %v1230
  %v1331 = vmax.f32 %v977, %v1231
  %v1332 = vmax.f32 %v980, %v1232
  %v1333 = vmax.f32 %v985, %v1233
  %v1334 = vmax.f32 %v988, %v1234
  %v1335 = vmax.f32 %v993, %v1235
  %v1336 = vmax.f32 %v996, %v1236
  %v1337 = vmax.f32 %v1001, %v1237
  %v1338 = vmax.f32 %v1004, %v1238
  %v1339 = vmax.f32 %v1009, %v1239
  %v1340 = vmax.f32 %v1012, %v1240
  %v1341 = vmax.f32 %v1017, %v1241
  %v1342 = vmax.f32 %v1020, %v1242
  %v1343 = vmax.f32 %v1025, %v1243
  %v1344 = vmax.f32 %v1028, %v1244
  %v1345 = vmax.f32 %v1033, %v1245
  %v1346 = vmax.f32 %v1036, %v1246
  %v1347 = vmax.f32 %v1041, %v1247
  %v1348 = vmax.f32 %v1044, %v1248
  %v1349 = vmax.f32 %v1049, %v1249
  %v1350 = vmax.f32 %v1052, %v1250
  %v1351 = vmax.f32 %v1057, %v1251
  %v1352 = vmax.f32 %v1060, %v1252
  %v1353 = vmax.f32 %v1065, %v1253
  %v1354 = vmax.f32 %v1068, %v1254
  %v1355 = vmax.f32 %v1073, %v1255
  %v1356 = vmax.f32 %v1076, %v1256
  %v1357 = vmax.f32 %v1081, %v1257
  %v1358 = vmax.f32 %v1084, %v1258
  %v1359 = vmax.f32 %v1089, %v1259
  %v1360 = vmax.f32 %v1092, %v1260
  %v1361 = vmax.f32 %v1097, %v1261
  %v1362 = vmax.f32 %v1100, %v1262
  %v1363 = vmax.f32 %v1105, %v1263
  %v1364 = vmax.f32 %v1108, %v1264
  %v1365 = vmax.f32 %v1113, %v1265
  %v1366 = vmax.f32 %v1116, %v1266
  %v1367 = vmax.f32 %v1121, %v1267
  %v1368 = vmax.f32 %v1124, %v1268
  %v1369 = vmax.f32 %v1129, %v1269
  %v1370 = vmax.f32 %v1132, %v1270
  %v1371 = vmax.f32 %v1137, %v1271
  %v1372 = vmax.f32 %v1140, %v1272
  %v1373 = vmax.f32 %v1145, %v1273
  %v1374 = vmax.f32 %v1148, %v1274
  %v1375 = vmax.f32 %v1153, %v1275
  %v1376 = vmax.f32 %v1156, %v1276
  %v1377 = vmax.f32 %v1161, %v1277
  %v1378 = vmax.f32 %v1164, %v1278
  %v1379 = vmax.f32 %v1169, %v1279
  %v1380 = vmax.f32 %v1172, %v1280
  %v1381 = vmax.f32 %v1177, %v1281
  %v1382 = vmax.f32 %v1180, %v1282
  %v1383 = vpack.c.bf16 %v1284, %v1283
  %v1384 = vpack.c.bf16 %v1286, %v1285
  %v1385 = vpack.c.bf16 %v1288, %v1287
  %v1386 = vpack.c.bf16 %v1290, %v1289
  %v1387 = vpack.c.bf16 %v1292, %v1291
  %v1388 = vpack.c.bf16 %v1294, %v1293
  %v1389 = vpack.c.bf16 %v1296, %v1295
  %v1390 = vpack.c.bf16 %v1298, %v1297
  %v1391 = vpack.c.bf16 %v1300, %v1299
  %v1392 = vpack.c.bf16 %v1302, %v1301
  %v1393 = vpack.c.bf16 %v1304, %v1303
  %v1394 = vpack.c.bf16 %v1306, %v1305
  %v1395 = vpack.c.bf16 %v1308, %v1307
  %v1396 = vpack.c.bf16 %v1310, %v1309
  %v1397 = vpack.c.bf16 %v1312, %v1311
  %v1398 = vpack.c.bf16 %v1314, %v1313
  %v1399 = vpack.c.bf16 %v1316, %v1315
  %v1400 = vpack.c.bf16 %v1318, %v1317
  %v1401 = vpack.c.bf16 %v1320, %v1319
  %v1402 = vpack.c.bf16 %v1322, %v1321
  %v1403 = vpack.c.bf16 %v1324, %v1323
  %v1404 = vpack.c.bf16 %v1326, %v1325
  %v1405 = vpack.c.bf16 %v1328, %v1327
  %v1406 = vpack.c.bf16 %v1330, %v1329
  %v1407 = vpack.c.bf16 %v1332, %v1331
  %v1408 = vpack.c.bf16 %v1334, %v1333
  %v1409 = vpack.c.bf16 %v1336, %v1335
  %v1410 = vpack.c.bf16 %v1338, %v1337
  %v1411 = vpack.c.bf16 %v1340, %v1339
  %v1412 = vpack.c.bf16 %v1342, %v1341
  %v1413 = vpack.c.bf16 %v1344, %v1343
  %v1414 = vpack.c.bf16 %v1346, %v1345
  %v1415 = vpack.c.bf16 %v1348, %v1347
  %v1416 = vpack.c.bf16 %v1350, %v1349
  %v1417 = vpack.c.bf16 %v1352, %v1351
  %v1418 = vpack.c.bf16 %v1354, %v1353
  %v1419 = vpack.c.bf16 %v1356, %v1355
  %v1420 = vpack.c.bf16 %v1358, %v1357
  %v1421 = vpack.c.bf16 %v1360, %v1359
  %v1422 = vpack.c.bf16 %v1362, %v1361
  %v1423 = vpack.c.bf16 %v1364, %v1363
  %v1424 = vpack.c.bf16 %v1366, %v1365
  %v1425 = vpack.c.bf16 %v1368, %v1367
  %v1426 = vpack.c.bf16 %v1370, %v1369
  %v1427 = vpack.c.bf16 %v1372, %v1371
  %v1428 = vpack.c.bf16 %v1374, %v1373
  %v1429 = vpack.c.bf16 %v1376, %v1375
  %v1430 = vpack.c.bf16 %v1378, %v1377
  %v1431 = vpack.c.bf16 %v1380, %v1379
  %v1432 = vpack.c.bf16 %v1382, %v1381
  %v1483 = vunpack.c.l.b16 %v1383
  %v1484 = vunpack.c.h.b16 %v1383
  %v1485 = vunpack.c.l.b16 %v1384
  %v1486 = vunpack.c.h.b16 %v1384
  %v1487 = vunpack.c.l.b16 %v1385
  %v1488 = vunpack.c.h.b16 %v1385
  %v1489 = vunpack.c.l.b16 %v1386
  %v1490 = vunpack.c.h.b16 %v1386
  %v1491 = vunpack.c.l.b16 %v1387
  %v1492 = vunpack.c.h.b16 %v1387
  %v1493 = vunpack.c.l.b16 %v1388
  %v1494 = vunpack.c.h.b16 %v1388
  %v1495 = vunpack.c.l.b16 %v1389
  %v1496 = vunpack.c.h.b16 %v1389
  %v1497 = vunpack.c.l.b16 %v1390
  %v1498 = vunpack.c.h.b16 %v1390
  %v1499 = vunpack.c.l.b16 %v1391
  %v1500 = vunpack.c.h.b16 %v1391
  %v1501 = vunpack.c.l.b16 %v1392
  %v1502 = vunpack.c.h.b16 %v1392
  %v1503 = vunpack.c.l.b16 %v1393
  %v1504 = vunpack.c.h.b16 %v1393
  %v1505 = vunpack.c.l.b16 %v1394
  %v1506 = vunpack.c.h.b16 %v1394
  %v1507 = vunpack.c.l.b16 %v1395
  %v1508 = vunpack.c.h.b16 %v1395
  %v1509 = vunpack.c.l.b16 %v1396
  %v1510 = vunpack.c.h.b16 %v1396
  %v1511 = vunpack.c.l.b16 %v1397
  %v1512 = vunpack.c.h.b16 %v1397
  %v1513 = vunpack.c.l.b16 %v1398
  %v1514 = vunpack.c.h.b16 %v1398
  %v1515 = vunpack.c.l.b16 %v1399
  %v1516 = vunpack.c.h.b16 %v1399
  %v1517 = vunpack.c.l.b16 %v1400
  %v1518 = vunpack.c.h.b16 %v1400
  %v1519 = vunpack.c.l.b16 %v1401
  %v1520 = vunpack.c.h.b16 %v1401
  %v1521 = vunpack.c.l.b16 %v1402
  %v1522 = vunpack.c.h.b16 %v1402
  %v1523 = vunpack.c.l.b16 %v1403
  %v1524 = vunpack.c.h.b16 %v1403
  %v1525 = vunpack.c.l.b16 %v1404
  %v1526 = vunpack.c.h.b16 %v1404
  %v1527 = vunpack.c.l.b16 %v1405
  %v1528 = vunpack.c.h.b16 %v1405
  %v1529 = vunpack.c.l.b16 %v1406
  %v1530 = vunpack.c.h.b16 %v1406
  %v1531 = vunpack.c.l.b16 %v1407
  %v1532 = vunpack.c.h.b16 %v1407
  %v1533 = vunpack.c.l.b16 %v1408
  %v1534 = vunpack.c.h.b16 %v1408
  %v1535 = vunpack.c.l.b16 %v1409
  %v1536 = vunpack.c.h.b16 %v1409
  %v1537 = vunpack.c.l.b16 %v1410
  %v1538 = vunpack.c.h.b16 %v1410
  %v1539 = vunpack.c.l.b16 %v1411
  %v1540 = vunpack.c.h.b16 %v1411
  %v1541 = vunpack.c.l.b16 %v1412
  %v1542 = vunpack.c.h.b16 %v1412
  %v1543 = vunpack.c.l.b16 %v1413
  %v1544 = vunpack.c.h.b16 %v1413
  %v1545 = vunpack.c.l.b16 %v1414
  %v1546 = vunpack.c.h.b16 %v1414
  %v1547 = vunpack.c.l.b16 %v1415
  %v1548 = vunpack.c.h.b16 %v1415
  %v1549 = vunpack.c.l.b16 %v1416
  %v1550 = vunpack.c.h.b16 %v1416
  %v1551 = vunpack.c.l.b16 %v1417
  %v1552 = vunpack.c.h.b16 %v1417
  %v1553 = vunpack.c.l.b16 %v1418
  %v1554 = vunpack.c.h.b16 %v1418
  %v1555 = vunpack.c.l.b16 %v1419
  %v1556 = vunpack.c.h.b16 %v1419
  %v1557 = vunpack.c.l.b16 %v1420
  %v1558 = vunpack.c.h.b16 %v1420
  %v1559 = vunpack.c.l.b16 %v1421
  %v1560 = vunpack.c.h.b16 %v1421
  %v1561 = vunpack.c.l.b16 %v1422
  %v1562 = vunpack.c.h.b16 %v1422
  %v1563 = vunpack.c.l.b16 %v1423
  %v1564 = vunpack.c.h.b16 %v1423
  %v1565 = vunpack.c.l.b16 %v1424
  %v1566 = vunpack.c.h.b16 %v1424
  %v1567 = vunpack.c.l.b16 %v1425
  %v1568 = vunpack.c.h.b16 %v1425
  %v1569 = vunpack.c.l.b16 %v1426
  %v1570 = vunpack.c.h.b16 %v1426
  %v1571 = vunpack.c.l.b16 %v1427
  %v1572 = vunpack.c.h.b16 %v1427
  %v1573 = vunpack.c.l.b16 %v1428
  %v1574 = vunpack.c.h.b16 %v1428
  %v1575 = vunpack.c.l.b16 %v1429
  %v1576 = vunpack.c.h.b16 %v1429
  %v1577 = vunpack.c.l.b16 %v1430
  %v1578 = vunpack.c.h.b16 %v1430
  %v1579 = vunpack.c.l.b16 %v1431
  %v1580 = vunpack.c.h.b16 %v1431
  %v1581 = vunpack.c.l.b16 %v1432
  %v1582 = vunpack.c.h.b16 %v1432
  %v1583 = vpack.c.b16 %v1483, %v1483
  %v1584 = vpack.c.b16 %v1484, %v1484
  %v1585 = vpack.c.b16 %v1485, %v1485
  %v1586 = vpack.c.b16 %v1486, %v1486
  %v1587 = vpack.c.b16 %v1487, %v1487
  %v1588 = vpack.c.b16 %v1488, %v1488
  %v1589 = vpack.c.b16 %v1489, %v1489
  %v1590 = vpack.c.b16 %v1490, %v1490
  %v1591 = vpack.c.b16 %v1491, %v1491
  %v1592 = vpack.c.b16 %v1492, %v1492
  %v1593 = vpack.c.b16 %v1493, %v1493
  %v1594 = vpack.c.b16 %v1494, %v1494
  %v1595 = vpack.c.b16 %v1495, %v1495
  %v1596 = vpack.c.b16 %v1496, %v1496
  %v1597 = vpack.c.b16 %v1497, %v1497
  %v1598 = vpack.c.b16 %v1498, %v1498
  %v1599 = vpack.c.b16 %v1499, %v1499
  %v1600 = vpack.c.b16 %v1500, %v1500
  %v1601 = vpack.c.b16 %v1501, %v1501
  %v1602 = vpack.c.b16 %v1502, %v1502
  %v1603 = vpack.c.b16 %v1503, %v1503
  %v1604 = vpack.c.b16 %v1504, %v1504
  %v1605 = vpack.c.b16 %v1505, %v1505
  %v1606 = vpack.c.b16 %v1506, %v1506
  %v1607 = vpack.c.b16 %v1507, %v1507
  %v1608 = vpack.c.b16 %v1508, %v1508
  %v1609 = vpack.c.b16 %v1509, %v1509
  %v1610 = vpack.c.b16 %v1510, %v1510
  %v1611 = vpack.c.b16 %v1511, %v1511
  %v1612 = vpack.c.b16 %v1512, %v1512
  %v1613 = vpack.c.b16 %v1513, %v1513
  %v1614 = vpack.c.b16 %v1514, %v1514
  %v1615 = vpack.c.b16 %v1515, %v1515
  %v1616 = vpack.c.b16 %v1516, %v1516
  %v1617 = vpack.c.b16 %v1517, %v1517
  %v1618 = vpack.c.b16 %v1518, %v1518
  %v1619 = vpack.c.b16 %v1519, %v1519
  %v1620 = vpack.c.b16 %v1520, %v1520
  %v1621 = vpack.c.b16 %v1521, %v1521
  %v1622 = vpack.c.b16 %v1522, %v1522
  %v1623 = vpack.c.b16 %v1523, %v1523
  %v1624 = vpack.c.b16 %v1524, %v1524
  %v1625 = vpack.c.b16 %v1525, %v1525
  %v1626 = vpack.c.b16 %v1526, %v1526
  %v1627 = vpack.c.b16 %v1527, %v1527
  %v1628 = vpack.c.b16 %v1528, %v1528
  %v1629 = vpack.c.b16 %v1529, %v1529
  %v1630 = vpack.c.b16 %v1530, %v1530
  %v1631 = vpack.c.b16 %v1531, %v1531
  %v1632 = vpack.c.b16 %v1532, %v1532
  %v1633 = vpack.c.b16 %v1533, %v1533
  %v1634 = vpack.c.b16 %v1534, %v1534
  %v1635 = vpack.c.b16 %v1535, %v1535
  %v1636 = vpack.c.b16 %v1536, %v1536
  %v1637 = vpack.c.b16 %v1537, %v1537
  %v1638 = vpack.c.b16 %v1538, %v1538
  %v1639 = vpack.c.b16 %v1539, %v1539
  %v1640 = vpack.c.b16 %v1540, %v1540
  %v1641 = vpack.c.b16 %v1541, %v1541
  %v1642 = vpack.c.b16 %v1542, %v1542
  %v1643 = vpack.c.b16 %v1543, %v1543
  %v1644 = vpack.c.b16 %v1544, %v1544
  %v1645 = vpack.c.b16 %v1545, %v1545
  %v1646 = vpack.c.b16 %v1546, %v1546
  %v1647 = vpack.c.b16 %v1547, %v1547
  %v1648 = vpack.c.b16 %v1548, %v1548
  %v1649 = vpack.c.b16 %v1549, %v1549
  %v1650 = vpack.c.b16 %v1550, %v1550
  %v1651 = vpack.c.b16 %v1551, %v1551
  %v1652 = vpack.c.b16 %v1552, %v1552
  %v1653 = vpack.c.b16 %v1553, %v1553
  %v1654 = vpack.c.b16 %v1554, %v1554
  %v1655 = vpack.c.b16 %v1555, %v1555
  %v1656 = vpack.c.b16 %v1556, %v1556
  %v1657 = vpack.c.b16 %v1557, %v1557
  %v1658 = vpack.c.b16 %v1558, %v1558
  %v1659 = vpack.c.b16 %v1559, %v1559
  %v1660 = vpack.c.b16 %v1560, %v1560
  %v1661 = vpack.c.b16 %v1561, %v1561
  %v1662 = vpack.c.b16 %v1562, %v1562
  %v1663 = vpack.c.b16 %v1563, %v1563
  %v1664 = vpack.c.b16 %v1564, %v1564
  %v1665 = vpack.c.b16 %v1565, %v1565
  %v1666 = vpack.c.b16 %v1566, %v1566
  %v1667 = vpack.c.b16 %v1567, %v1567
  %v1668 = vpack.c.b16 %v1568, %v1568
  %v1669 = vpack.c.b16 %v1569, %v1569
  %v1670 = vpack.c.b16 %v1570, %v1570
  %v1671 = vpack.c.b16 %v1571, %v1571
  %v1672 = vpack.c.b16 %v1572, %v1572
  %v1673 = vpack.c.b16 %v1573, %v1573
  %v1674 = vpack.c.b16 %v1574, %v1574
  %v1675 = vpack.c.b16 %v1575, %v1575
  %v1676 = vpack.c.b16 %v1576, %v1576
  %v1677 = vpack.c.b16 %v1577, %v1577
  %v1678 = vpack.c.b16 %v1578, %v1578
  %v1679 = vpack.c.b16 %v1579, %v1579
  %v1680 = vpack.c.b16 %v1580, %v1580
  %v1681 = vpack.c.b16 %v1581, %v1581
  %v1682 = vpack.c.b16 %v1582, %v1582
  %1783 = vst [vmem:[%s3] sm:$0xf] %v1583
  %1784 = vst [vmem:[%s3 + $0x4] sm:$0xf] %v1584
  %1785 = vst [vmem:[%s3 + $0x8] sm:$0xf] %v1585
  %1786 = vst [vmem:[%s3 + $0xc] sm:$0xf] %v1586
  %1787 = vst [vmem:[%s3 + $0x10] sm:$0xf] %v1587
  %1788 = vst [vmem:[%s3 + $0x14] sm:$0xf] %v1588
  %1789 = vst [vmem:[%s3 + $0x18] sm:$0xf] %v1589
  %1790 = vst [vmem:[%s3 + $0x1c] sm:$0xf] %v1590
  %1791 = vst [vmem:[%s3 + $0x20] sm:$0xf] %v1591
  %1792 = vst [vmem:[%s3 + $0x24] sm:$0xf] %v1592
  %1793 = vst [vmem:[%s3 + $0x28] sm:$0xf] %v1593
  %1794 = vst [vmem:[%s3 + $0x2c] sm:$0xf] %v1594
  %1795 = vst [vmem:[%s3 + $0x30] sm:$0xf] %v1595
  %1796 = vst [vmem:[%s3 + $0x34] sm:$0xf] %v1596
  %1797 = vst [vmem:[%s3 + $0x38] sm:$0xf] %v1597
  %1798 = vst [vmem:[%s3 + $0x3c] sm:$0xf] %v1598
  %1799 = vst [vmem:[%s3 + $0x40] sm:$0xf] %v1599
  %1800 = vst [vmem:[%s3 + $0x44] sm:$0xf] %v1600
  %1801 = vst [vmem:[%s3 + $0x48] sm:$0xf] %v1601
  %1802 = vst [vmem:[%s3 + $0x4c] sm:$0xf] %v1602
  %1803 = vst [vmem:[%s3 + $0x50] sm:$0xf] %v1603
  %1804 = vst [vmem:[%s3 + $0x54] sm:$0xf] %v1604
  %1805 = vst [vmem:[%s3 + $0x58] sm:$0xf] %v1605
  %1806 = vst [vmem:[%s3 + $0x5c] sm:$0xf] %v1606
  %1807 = vst [vmem:[%s3 + $0x60] sm:$0xf] %v1607
  %1808 = vst [vmem:[%s3 + $0x64] sm:$0xf] %v1608
  %1809 = vst [vmem:[%s3 + $0x68] sm:$0xf] %v1609
  %1810 = vst [vmem:[%s3 + $0x6c] sm:$0xf] %v1610
  %1811 = vst [vmem:[%s3 + $0x70] sm:$0xf] %v1611
  %1812 = vst [vmem:[%s3 + $0x74] sm:$0xf] %v1612
  %1813 = vst [vmem:[%s3 + $0x78] sm:$0xf] %v1613
  %1814 = vst [vmem:[%s3 + $0x7c] sm:$0xf] %v1614
  %1815 = vst [vmem:[%s3 + $0x80] sm:$0xf] %v1615
  %1816 = vst [vmem:[%s3 + $0x84] sm:$0xf] %v1616
  %1817 = vst [vmem:[%s3 + $0x88] sm:$0xf] %v1617
  %1818 = vst [vmem:[%s3 + $0x8c] sm:$0xf] %v1618
  %1819 = vst [vmem:[%s3 + $0x90] sm:$0xf] %v1619
  %1820 = vst [vmem:[%s3 + $0x94] sm:$0xf] %v1620
  %1821 = vst [vmem:[%s3 + $0x98] sm:$0xf] %v1621
  %1822 = vst [vmem:[%s3 + $0x9c] sm:$0xf] %v1622
  %1823 = vst [vmem:[%s3 + $0xa0] sm:$0xf] %v1623
  %1824 = vst [vmem:[%s3 + $0xa4] sm:$0xf] %v1624
  %1825 = vst [vmem:[%s3 + $0xa8] sm:$0xf] %v1625
  %1826 = vst [vmem:[%s3 + $0xac] sm:$0xf] %v1626
  %1827 = vst [vmem:[%s3 + $0xb0] sm:$0xf] %v1627
  %1828 = vst [vmem:[%s3 + $0xb4] sm:$0xf] %v1628
  %1829 = vst [vmem:[%s3 + $0xb8] sm:$0xf] %v1629
  %1830 = vst [vmem:[%s3 + $0xbc] sm:$0xf] %v1630
  %1831 = vst [vmem:[%s3 + $0xc0] sm:$0xf] %v1631
  %1832 = vst [vmem:[%s3 + $0xc4] sm:$0xf] %v1632
  %1833 = vst [vmem:[%s3 + $0xc8] sm:$0xf] %v1633
  %1834 = vst [vmem:[%s3 + $0xcc] sm:$0xf] %v1634
  %1835 = vst [vmem:[%s3 + $0xd0] sm:$0xf] %v1635
  %1836 = vst [vmem:[%s3 + $0xd4] sm:$0xf] %v1636
  %1837 = vst [vmem:[%s3 + $0xd8] sm:$0xf] %v1637
  %1838 = vst [vmem:[%s3 + $0xdc] sm:$0xf] %v1638
  %1839 = vst [vmem:[%s3 + $0xe0] sm:$0xf] %v1639
  %1840 = vst [vmem:[%s3 + $0xe4] sm:$0xf] %v1640
  %1841 = vst [vmem:[%s3 + $0xe8] sm:$0xf] %v1641
  %1842 = vst [vmem:[%s3 + $0xec] sm:$0xf] %v1642
  %1843 = vst [vmem:[%s3 + $0xf0] sm:$0xf] %v1643
  %1844 = vst [vmem:[%s3 + $0xf4] sm:$0xf] %v1644
  %1845 = vst [vmem:[%s3 + $0xf8] sm:$0xf] %v1645
  %1846 = vst [vmem:[%s3 + $0xfc] sm:$0xf] %v1646
  %1847 = vst [vmem:[%s3 + $0x100] sm:$0xf] %v1647
  %1848 = vst [vmem:[%s3 + $0x104] sm:$0xf] %v1648
  %1849 = vst [vmem:[%s3 + $0x108] sm:$0xf] %v1649
  %1850 = vst [vmem:[%s3 + $0x10c] sm:$0xf] %v1650
  %1851 = vst [vmem:[%s3 + $0x110] sm:$0xf] %v1651
  %1852 = vst [vmem:[%s3 + $0x114] sm:$0xf] %v1652
  %1853 = vst [vmem:[%s3 + $0x118] sm:$0xf] %v1653
  %1854 = vst [vmem:[%s3 + $0x11c] sm:$0xf] %v1654
  %1855 = vst [vmem:[%s3 + $0x120] sm:$0xf] %v1655
  %1856 = vst [vmem:[%s3 + $0x124] sm:$0xf] %v1656
  %1857 = vst [vmem:[%s3 + $0x128] sm:$0xf] %v1657
  %1858 = vst [vmem:[%s3 + $0x12c] sm:$0xf] %v1658
  %1859 = vst [vmem:[%s3 + $0x130] sm:$0xf] %v1659
  %1860 = vst [vmem:[%s3 + $0x134] sm:$0xf] %v1660
  %1861 = vst [vmem:[%s3 + $0x138] sm:$0xf] %v1661
  %1862 = vst [vmem:[%s3 + $0x13c] sm:$0xf] %v1662
  %1863 = vst [vmem:[%s3 + $0x140] sm:$0xf] %v1663
  %1864 = vst [vmem:[%s3 + $0x144] sm:$0xf] %v1664
  %1865 = vst [vmem:[%s3 + $0x148] sm:$0xf] %v1665
  %1866 = vst [vmem:[%s3 + $0x14c] sm:$0xf] %v1666
  %1867 = vst [vmem:[%s3 + $0x150] sm:$0xf] %v1667
  %1868 = vst [vmem:[%s3 + $0x154] sm:$0xf] %v1668
  %1869 = vst [vmem:[%s3 + $0x158] sm:$0xf] %v1669
  %1870 = vst [vmem:[%s3 + $0x15c] sm:$0xf] %v1670
  %1871 = vst [vmem:[%s3 + $0x160] sm:$0xf] %v1671
  %1872 = vst [vmem:[%s3 + $0x164] sm:$0xf] %v1672
  %1873 = vst [vmem:[%s3 + $0x168] sm:$0xf] %v1673
  %1874 = vst [vmem:[%s3 + $0x16c] sm:$0xf] %v1674
  %1875 = vst [vmem:[%s3 + $0x170] sm:$0xf] %v1675
  %1876 = vst [vmem:[%s3 + $0x174] sm:$0xf] %v1676
  %1877 = vst [vmem:[%s3 + $0x178] sm:$0xf] %v1677
  %1878 = vst [vmem:[%s3 + $0x17c] sm:$0xf] %v1678
  %1879 = vst [vmem:[%s3 + $0x180] sm:$0xf] %v1679
  %1880 = vst [vmem:[%s3 + $0x184] sm:$0xf] %v1680
  %1881 = vst [vmem:[%s3 + $0x188] sm:$0xf] %v1681
  %1882 = vst [vmem:[%s3 + $0x18c] sm:$0xf] %v1682
  // Predicated region
  $region14: #{cnn_state_encoder_forward.4} parent=0 // pred_check
    _
  $region15: #{cnn_state_encoder_forward.4} parent=0 // pred_check_branch
    %1884 = sbr.rel (0) target = $region17
  $region16: #{cnn_state_encoder_forward.4} parent=0 // pred_region
    _
  $region17: #{cnn_state_encoder_forward.4} parent=0 // pred_fallthru
    _
  // Predicated region
  $region18: #{cnn_state_encoder_forward.4} parent=0 // pred_check
    _
  $region19: #{cnn_state_encoder_forward.4} parent=0 // pred_check_branch
    %1886 = sbr.rel (0) target = $region21
  $region20: #{cnn_state_encoder_forward.4} parent=0 // pred_region
    _
  $region21: #{cnn_state_encoder_forward.4} parent=0 // pred_fallthru
    _

// kernel: cnn_state_encoder_forward.5
$region0: #{cnn_state_encoder_forward.5}
  #allocation0 [shape = 'u32[]', space=smem, size = 0x4, offset = 0x4, fixed_abs, tag = 'smem constant byte address 0x4 - core index']
  #allocation1 [shape = 'u32[144,128]{1,0:T(1,128)}', space=vmem, size = 0x12000, scoped, tag = 'internal scratch']
  %s0 = inlined_call_operand.vmem [shape: bf16[168,512], index: 0, kind: input, shape index: {}]
  %s1 = inlined_call_operand.vmem [shape: bf16[512,128], index: 1, kind: input, shape index: {}]
  %s2 = inlined_call_operand.vmem [shape: f32[1,128], index: 2, kind: input, shape index: {}]
  %s3 = inlined_call_operand.vmem [shape: bf16[168,128], index: 3, kind: output, shape index: {}]
  %s4 = sld [smem:[#allocation0]]
  $region22: #{cnn_state_encoder_forward.5} parent=0
    _
  %s6 = ssub.s32 1, %s4
  %s7 = scalar_select 0, %s6, %s4
  // Predicated region
  $region2: #{cnn_state_encoder_forward.5} parent=0 // pred_check
    _
  $region3: #{cnn_state_encoder_forward.5} parent=0 // pred_check_branch
    %9 = sbr.rel (0) target = $region5
  $region4: #{cnn_state_encoder_forward.5} parent=0 // pred_region
    _
  $region5: #{cnn_state_encoder_forward.5} parent=0 // pred_fallthru
    _
  // Predicated region
  $region6: #{cnn_state_encoder_forward.5} parent=0 // pred_check
    _
  $region7: #{cnn_state_encoder_forward.5} parent=0 // pred_check_branch
    %11 = sbr.rel (0) target = $region9
  $region8: #{cnn_state_encoder_forward.5} parent=0 // pred_region
    _
  $region9: #{cnn_state_encoder_forward.5} parent=0 // pred_fallthru
    _
  // Predicated region
  $region10: #{cnn_state_encoder_forward.5} parent=0 // pred_check
    _
  $region11: #{cnn_state_encoder_forward.5} parent=0 // pred_check_branch
    %13 = sbr.rel (0) target = $region13
  $region12: #{cnn_state_encoder_forward.5} parent=0 // pred_region
    _
  $region13: #{cnn_state_encoder_forward.5} parent=0 // pred_fallthru
    _
  %v15 = vld [vmem:[%s0] sm:$0xff]
  %v16 = vld [vmem:[%s0 + $0x8] sm:$0xff]
  %v17 = vld [vmem:[%s0 + $0x10] sm:$0xff]
  %v18 = vld [vmem:[%s0 + $0x18] sm:$0xff]
  %v19 = vld [vmem:[%s0 + $0x20] sm:$0xff]
  %v20 = vld [vmem:[%s0 + $0x28] sm:$0xff]
  %v21 = vld [vmem:[%s0 + $0x30] sm:$0xff]
  %v22 = vld [vmem:[%s0 + $0x38] sm:$0xff]
  %v23 = vld [vmem:[%s0 + $0x40] sm:$0xff]
  %v24 = vld [vmem:[%s0 + $0x48] sm:$0xff]
  %v25 = vld [vmem:[%s0 + $0x50] sm:$0xff]
  %v26 = vld [vmem:[%s0 + $0x58] sm:$0xff]
  %v27 = vld [vmem:[%s0 + $0x60] sm:$0xff]
  %v28 = vld [vmem:[%s0 + $0x68] sm:$0xff]
  %v29 = vld [vmem:[%s0 + $0x70] sm:$0xff]
  %v30 = vld [vmem:[%s0 + $0x78] sm:$0xff]
  %v31 = vld [vmem:[%s0 + $0x80] sm:$0xff]
  %v32 = vld [vmem:[%s0 + $0x88] sm:$0xff]
  %v33 = vld [vmem:[%s0 + $0x90] sm:$0xff]
  %v34 = vld [vmem:[%s0 + $0x98] sm:$0xff]
  %v35 = vld [vmem:[%s0 + $0xa0] sm:$0xff]
  %v36 = vld [vmem:[%s0 + $0xa8] sm:$0xff]
  %v37 = vld [vmem:[%s0 + $0xb0] sm:$0xff]
  %v38 = vld [vmem:[%s0 + $0xb8] sm:$0xff]
  %v39 = vld [vmem:[%s0 + $0xc0] sm:$0xff]
  %v40 = vld [vmem:[%s0 + $0xc8] sm:$0xff]
  %v41 = vld [vmem:[%s0 + $0xd0] sm:$0xff]
  %v42 = vld [vmem:[%s0 + $0xd8] sm:$0xff]
  %v43 = vld [vmem:[%s0 + $0xe0] sm:$0xff]
  %v44 = vld [vmem:[%s0 + $0xe8] sm:$0xff]
  %v45 = vld [vmem:[%s0 + $0xf0] sm:$0xff]
  %v46 = vld [vmem:[%s0 + $0xf8] sm:$0xff]
  %v47 = vld [vmem:[%s0 + $0x100] sm:$0xff]
  %v48 = vld [vmem:[%s0 + $0x108] sm:$0xff]
  %v49 = vld [vmem:[%s0 + $0x110] sm:$0xff]
  %v50 = vld [vmem:[%s0 + $0x118] sm:$0xff]
  %v51 = vld [vmem:[%s0 + $0x120] sm:$0xff]
  %v52 = vld [vmem:[%s0 + $0x128] sm:$0xff]
  %v53 = vld [vmem:[%s0 + $0x130] sm:$0xff]
  %v54 = vld [vmem:[%s0 + $0x138] sm:$0xff]
  %v55 = vld [vmem:[%s0 + $0x140] sm:$0xff]
  %v56 = vld [vmem:[%s0 + $0x148] sm:$0xff]
  %v57 = vld [vmem:[%s1] sm:$0xf]
  %v58 = vld [vmem:[%s1 + $0x4] sm:$0xf]
  %v59 = vld [vmem:[%s1 + $0x8] sm:$0xf]
  %v60 = vld [vmem:[%s1 + $0xc] sm:$0xf]
  %v61 = vld [vmem:[%s1 + $0x10] sm:$0xf]
  %v62 = vld [vmem:[%s1 + $0x14] sm:$0xf]
  %v63 = vld [vmem:[%s1 + $0x18] sm:$0xf]
  %v64 = vld [vmem:[%s1 + $0x1c] sm:$0xf]
  %v65 = vld [vmem:[%s1 + $0x20] sm:$0xf]
  %v66 = vld [vmem:[%s1 + $0x24] sm:$0xf]
  %v67 = vld [vmem:[%s1 + $0x28] sm:$0xf]
  %v68 = vld [vmem:[%s1 + $0x2c] sm:$0xf]
  %v69 = vld [vmem:[%s1 + $0x30] sm:$0xf]
  %v70 = vld [vmem:[%s1 + $0x34] sm:$0xf]
  %v71 = vld [vmem:[%s1 + $0x38] sm:$0xf]
  %v72 = vld [vmem:[%s1 + $0x3c] sm:$0xf]
  %v73 = vld [vmem:[%s1 + $0x40] sm:$0xf]
  %v74 = vld [vmem:[%s1 + $0x44] sm:$0xf]
  %v75 = vld [vmem:[%s1 + $0x48] sm:$0xf]
  %v76 = vld [vmem:[%s1 + $0x4c] sm:$0xf]
  %v77 = vld [vmem:[%s1 + $0x50] sm:$0xf]
  %v78 = vld [vmem:[%s1 + $0x54] sm:$0xf]
  %v79 = vld [vmem:[%s1 + $0x58] sm:$0xf]
  %v80 = vld [vmem:[%s1 + $0x5c] sm:$0xf]
  %v81 = vld [vmem:[%s1 + $0x60] sm:$0xf]
  %v82 = vld [vmem:[%s1 + $0x64] sm:$0xf]
  %v83 = vld [vmem:[%s1 + $0x68] sm:$0xf]
  %v84 = vld [vmem:[%s1 + $0x6c] sm:$0xf]
  %v85 = vld [vmem:[%s1 + $0x70] sm:$0xf]
  %v86 = vld [vmem:[%s1 + $0x74] sm:$0xf]
  %v87 = vld [vmem:[%s1 + $0x78] sm:$0xf]
  %v88 = vld [vmem:[%s1 + $0x7c] sm:$0xf]
  %v89 = vld [vmem:[%s1 + $0x80] sm:$0xf]
  %v90 = vld [vmem:[%s1 + $0x84] sm:$0xf]
  %v91 = vld [vmem:[%s1 + $0x88] sm:$0xf]
  %v92 = vld [vmem:[%s1 + $0x8c] sm:$0xf]
  %v93 = vld [vmem:[%s1 + $0x90] sm:$0xf]
  %v94 = vld [vmem:[%s1 + $0x94] sm:$0xf]
  %v95 = vld [vmem:[%s1 + $0x98] sm:$0xf]
  %v96 = vld [vmem:[%s1 + $0x9c] sm:$0xf]
  %v97 = vld [vmem:[%s1 + $0xa0] sm:$0xf]
  %v98 = vld [vmem:[%s1 + $0xa4] sm:$0xf]
  %v99 = vld [vmem:[%s1 + $0xa8] sm:$0xf]
  %v100 = vld [vmem:[%s1 + $0xac] sm:$0xf]
  %v101 = vld [vmem:[%s1 + $0xb0] sm:$0xf]
  %v102 = vld [vmem:[%s1 + $0xb4] sm:$0xf]
  %v103 = vld [vmem:[%s1 + $0xb8] sm:$0xf]
  %v104 = vld [vmem:[%s1 + $0xbc] sm:$0xf]
  %v105 = vld [vmem:[%s1 + $0xc0] sm:$0xf]
  %v106 = vld [vmem:[%s1 + $0xc4] sm:$0xf]
  %v107 = vld [vmem:[%s1 + $0xc8] sm:$0xf]
  %v108 = vld [vmem:[%s1 + $0xcc] sm:$0xf]
  %v109 = vld [vmem:[%s1 + $0xd0] sm:$0xf]
  %v110 = vld [vmem:[%s1 + $0xd4] sm:$0xf]
  %v111 = vld [vmem:[%s1 + $0xd8] sm:$0xf]
  %v112 = vld [vmem:[%s1 + $0xdc] sm:$0xf]
  %v113 = vld [vmem:[%s1 + $0xe0] sm:$0xf]
  %v114 = vld [vmem:[%s1 + $0xe4] sm:$0xf]
  %v115 = vld [vmem:[%s1 + $0xe8] sm:$0xf]
  %v116 = vld [vmem:[%s1 + $0xec] sm:$0xf]
  %v117 = vld [vmem:[%s1 + $0xf0] sm:$0xf]
  %v118 = vld [vmem:[%s1 + $0xf4] sm:$0xf]
  %v119 = vld [vmem:[%s1 + $0xf8] sm:$0xf]
  %v120 = vld [vmem:[%s1 + $0xfc] sm:$0xf]
  %v121 = vld [vmem:[%s2] sm:$0x1]
  %v123 = vlaneseq
  %v124 = vshrl.u32 %v123, 7
  %v125 = vsub.s32 0, %v124
  %v126 = vrot.slane %v121, %v125
  %v170 = vunpack.c.l.b16 %v15
  %v171 = vunpack.c.h.b16 %v15
  %v172 = vunpack.c.l.b16 %v16
  %v173 = vunpack.c.h.b16 %v16
  %v174 = vunpack.c.l.b16 %v17
  %v175 = vunpack.c.h.b16 %v17
  %v176 = vunpack.c.l.b16 %v18
  %v177 = vunpack.c.h.b16 %v18
  %v178 = vunpack.c.l.b16 %v19
  %v179 = vunpack.c.h.b16 %v19
  %v180 = vunpack.c.l.b16 %v20
  %v181 = vunpack.c.h.b16 %v20
  %v182 = vunpack.c.l.b16 %v21
  %v183 = vunpack.c.h.b16 %v21
  %v184 = vunpack.c.l.b16 %v22
  %v185 = vunpack.c.h.b16 %v22
  %v186 = vunpack.c.l.b16 %v23
  %v187 = vunpack.c.h.b16 %v23
  %v188 = vunpack.c.l.b16 %v24
  %v189 = vunpack.c.h.b16 %v24
  %v190 = vunpack.c.l.b16 %v25
  %v191 = vunpack.c.h.b16 %v25
  %v192 = vunpack.c.l.b16 %v26
  %v193 = vunpack.c.h.b16 %v26
  %v194 = vunpack.c.l.b16 %v27
  %v195 = vunpack.c.h.b16 %v27
  %v196 = vunpack.c.l.b16 %v28
  %v197 = vunpack.c.h.b16 %v28
  %v198 = vunpack.c.l.b16 %v29
  %v199 = vunpack.c.h.b16 %v29
  %v200 = vunpack.c.l.b16 %v30
  %v201 = vunpack.c.h.b16 %v30
  %v202 = vunpack.c.l.b16 %v31
  %v203 = vunpack.c.h.b16 %v31
  %v204 = vunpack.c.l.b16 %v32
  %v205 = vunpack.c.h.b16 %v32
  %v206 = vunpack.c.l.b16 %v33
  %v207 = vunpack.c.h.b16 %v33
  %v208 = vunpack.c.l.b16 %v34
  %v209 = vunpack.c.h.b16 %v34
  %v210 = vunpack.c.l.b16 %v35
  %v211 = vunpack.c.h.b16 %v35
  %v212 = vunpack.c.l.b16 %v36
  %v213 = vunpack.c.h.b16 %v36
  %v214 = vunpack.c.l.b16 %v37
  %v215 = vunpack.c.h.b16 %v37
  %v216 = vunpack.c.l.b16 %v38
  %v217 = vunpack.c.h.b16 %v38
  %v218 = vunpack.c.l.b16 %v39
  %v219 = vunpack.c.h.b16 %v39
  %v220 = vunpack.c.l.b16 %v40
  %v221 = vunpack.c.h.b16 %v40
  %v222 = vunpack.c.l.b16 %v41
  %v223 = vunpack.c.h.b16 %v41
  %v224 = vunpack.c.l.b16 %v42
  %v225 = vunpack.c.h.b16 %v42
  %v226 = vunpack.c.l.b16 %v43
  %v227 = vunpack.c.h.b16 %v43
  %v228 = vunpack.c.l.b16 %v44
  %v229 = vunpack.c.h.b16 %v44
  %v230 = vunpack.c.l.b16 %v45
  %v231 = vunpack.c.h.b16 %v45
  %v232 = vunpack.c.l.b16 %v46
  %v233 = vunpack.c.h.b16 %v46
  %v234 = vunpack.c.l.b16 %v47
  %v235 = vunpack.c.h.b16 %v47
  %v236 = vunpack.c.l.b16 %v48
  %v237 = vunpack.c.h.b16 %v48
  %v238 = vunpack.c.l.b16 %v49
  %v239 = vunpack.c.h.b16 %v49
  %v240 = vunpack.c.l.b16 %v50
  %v241 = vunpack.c.h.b16 %v50
  %v242 = vunpack.c.l.b16 %v51
  %v243 = vunpack.c.h.b16 %v51
  %v244 = vunpack.c.l.b16 %v52
  %v245 = vunpack.c.h.b16 %v52
  %v246 = vunpack.c.l.b16 %v53
  %v247 = vunpack.c.h.b16 %v53
  %v248 = vunpack.c.l.b16 %v54
  %v249 = vunpack.c.h.b16 %v54
  %v250 = vunpack.c.l.b16 %v55
  %v251 = vunpack.c.h.b16 %v55
  %v252 = vunpack.c.l.b16 %v56
  %v253 = vunpack.c.h.b16 %v56
  %v254 = vpack.c.b16 %v174, %v170
  %v255 = vpack.c.b16 %v175, %v171
  %v256 = vpack.c.b16 %v176, %v172
  %v257 = vpack.c.b16 %v177, %v173
  %v258 = vpack.c.b16 %v182, %v178
  %v259 = vpack.c.b16 %v183, %v179
  %v260 = vpack.c.b16 %v184, %v180
  %v261 = vpack.c.b16 %v185, %v181
  %v262 = vpack.c.b16 %v190, %v186
  %v263 = vpack.c.b16 %v191, %v187
  %v264 = vpack.c.b16 %v192, %v188
  %v265 = vpack.c.b16 %v193, %v189
  %v266 = vpack.c.b16 %v198, %v194
  %v267 = vpack.c.b16 %v199, %v195
  %v268 = vpack.c.b16 %v200, %v196
  %v269 = vpack.c.b16 %v201, %v197
  %v270 = vpack.c.b16 %v206, %v202
  %v271 = vpack.c.b16 %v207, %v203
  %v272 = vpack.c.b16 %v208, %v204
  %v273 = vpack.c.b16 %v209, %v205
  %v274 = vpack.c.b16 %v214, %v210
  %v275 = vpack.c.b16 %v215, %v211
  %v276 = vpack.c.b16 %v216, %v212
  %v277 = vpack.c.b16 %v217, %v213
  %v278 = vpack.c.b16 %v222, %v218
  %v279 = vpack.c.b16 %v223, %v219
  %v280 = vpack.c.b16 %v224, %v220
  %v281 = vpack.c.b16 %v225, %v221
  %v282 = vpack.c.b16 %v230, %v226
  %v283 = vpack.c.b16 %v231, %v227
  %v284 = vpack.c.b16 %v232, %v228
  %v285 = vpack.c.b16 %v233, %v229
  %v286 = vpack.c.b16 %v238, %v234
  %v287 = vpack.c.b16 %v239, %v235
  %v288 = vpack.c.b16 %v240, %v236
  %v289 = vpack.c.b16 %v241, %v237
  %v290 = vpack.c.b16 %v246, %v242
  %v291 = vpack.c.b16 %v247, %v243
  %v292 = vpack.c.b16 %v248, %v244
  %v293 = vpack.c.b16 %v249, %v245
  %v294 = vpack.c.b16 %v250, %v250
  %v295 = vpack.c.b16 %v251, %v251
  %v296 = vpack.c.b16 %v252, %v252
  %v297 = vpack.c.b16 %v253, %v253
  %v406 = vunpack.c.l.b16 %v57
  %v407 = vunpack.c.l.b16 %v58
  %v408 = vunpack.c.l.b16 %v59
  %v409 = vunpack.c.l.b16 %v60
  %v410 = vunpack.c.l.b16 %v61
  %v411 = vunpack.c.l.b16 %v62
  %v412 = vunpack.c.l.b16 %v63
  %v413 = vunpack.c.l.b16 %v64
  %v414 = vunpack.c.l.b16 %v65
  %v415 = vunpack.c.l.b16 %v66
  %v416 = vunpack.c.l.b16 %v67
  %v417 = vunpack.c.l.b16 %v68
  %v418 = vunpack.c.l.b16 %v69
  %v419 = vunpack.c.l.b16 %v70
  %v420 = vunpack.c.l.b16 %v71
  %v421 = vunpack.c.l.b16 %v72
  %v422 = vunpack.c.l.b16 %v73
  %v423 = vunpack.c.l.b16 %v74
  %v424 = vunpack.c.l.b16 %v75
  %v425 = vunpack.c.l.b16 %v76
  %v426 = vunpack.c.l.b16 %v77
  %v427 = vunpack.c.l.b16 %v78
  %v428 = vunpack.c.l.b16 %v79
  %v429 = vunpack.c.l.b16 %v80
  %v430 = vunpack.c.l.b16 %v81
  %v431 = vunpack.c.l.b16 %v82
  %v432 = vunpack.c.l.b16 %v83
  %v433 = vunpack.c.l.b16 %v84
  %v434 = vunpack.c.l.b16 %v85
  %v435 = vunpack.c.l.b16 %v86
  %v436 = vunpack.c.l.b16 %v87
  %v437 = vunpack.c.l.b16 %v88
  %v438 = vunpack.c.l.b16 %v89
  %v439 = vunpack.c.l.b16 %v90
  %v440 = vunpack.c.l.b16 %v91
  %v441 = vunpack.c.l.b16 %v92
  %v442 = vunpack.c.l.b16 %v93
  %v443 = vunpack.c.l.b16 %v94
  %v444 = vunpack.c.l.b16 %v95
  %v445 = vunpack.c.l.b16 %v96
  %v446 = vunpack.c.l.b16 %v97
  %v447 = vunpack.c.l.b16 %v98
  %v448 = vunpack.c.l.b16 %v99
  %v449 = vunpack.c.l.b16 %v100
  %v450 = vunpack.c.l.b16 %v101
  %v451 = vunpack.c.l.b16 %v102
  %v452 = vunpack.c.l.b16 %v103
  %v453 = vunpack.c.l.b16 %v104
  %v454 = vunpack.c.l.b16 %v105
  %v455 = vunpack.c.l.b16 %v106
  %v456 = vunpack.c.l.b16 %v107
  %v457 = vunpack.c.l.b16 %v108
  %v458 = vunpack.c.l.b16 %v109
  %v459 = vunpack.c.l.b16 %v110
  %v460 = vunpack.c.l.b16 %v111
  %v461 = vunpack.c.l.b16 %v112
  %v462 = vunpack.c.l.b16 %v113
  %v463 = vunpack.c.l.b16 %v114
  %v464 = vunpack.c.l.b16 %v115
  %v465 = vunpack.c.l.b16 %v116
  %v466 = vunpack.c.l.b16 %v117
  %v467 = vunpack.c.l.b16 %v118
  %v468 = vunpack.c.l.b16 %v119
  %v469 = vunpack.c.l.b16 %v120
  %v470 = vpack.c.b16 %v407, %v406
  %v471 = vpack.c.b16 %v409, %v408
  %v472 = vpack.c.b16 %v411, %v410
  %v473 = vpack.c.b16 %v413, %v412
  %v474 = vpack.c.b16 %v415, %v414
  %v475 = vpack.c.b16 %v417, %v416
  %v476 = vpack.c.b16 %v419, %v418
  %v477 = vpack.c.b16 %v421, %v420
  %v478 = vpack.c.b16 %v423, %v422
  %v479 = vpack.c.b16 %v425, %v424
  %v480 = vpack.c.b16 %v427, %v426
  %v481 = vpack.c.b16 %v429, %v428
  %v482 = vpack.c.b16 %v431, %v430
  %v483 = vpack.c.b16 %v433, %v432
  %v484 = vpack.c.b16 %v435, %v434
  %v485 = vpack.c.b16 %v437, %v436
  %v486 = vpack.c.b16 %v439, %v438
  %v487 = vpack.c.b16 %v441, %v440
  %v488 = vpack.c.b16 %v443, %v442
  %v489 = vpack.c.b16 %v445, %v444
  %v490 = vpack.c.b16 %v447, %v446
  %v491 = vpack.c.b16 %v449, %v448
  %v492 = vpack.c.b16 %v451, %v450
  %v493 = vpack.c.b16 %v453, %v452
  %v494 = vpack.c.b16 %v455, %v454
  %v495 = vpack.c.b16 %v457, %v456
  %v496 = vpack.c.b16 %v459, %v458
  %v497 = vpack.c.b16 %v461, %v460
  %v498 = vpack.c.b16 %v463, %v462
  %v499 = vpack.c.b16 %v465, %v464
  %v500 = vpack.c.b16 %v467, %v466
  %v501 = vpack.c.b16 %v469, %v468
  %534 = vmatprep.subr.bf16.mxu0 0
  %535 = vmatpush1.bf16.msra.mxu0 %v470
  %536 = vmatprep.subr.bf16.mxu0 0
  %537 = vmatpush1.bf16.msra.mxu0 %v471
  %538 = vmatprep.subr.bf16.mxu0 0
  %539 = vmatpush1.bf16.msra.mxu0 %v472
  %540 = vmatprep.subr.bf16.mxu0 0
  %541 = vmatpush1.bf16.msra.mxu0 %v473
  %542 = vmatprep.subr.bf16.mxu0 0
  %543 = vmatpush1.bf16.msra.mxu0 %v474
  %544 = vmatprep.subr.bf16.mxu0 0
  %545 = vmatpush1.bf16.msra.mxu0 %v475
  %546 = vmatprep.subr.bf16.mxu0 0
  %547 = vmatpush1.bf16.msra.mxu0 %v476
  %548 = vmatprep.subr.bf16.mxu0 0
  %549 = vmatpush1.bf16.msra.mxu0 %v477
  %550 = vmatprep.subr.bf16.mxu0 0
  %551 = vmatpush1.bf16.msra.mxu0 %v478
  %552 = vmatprep.subr.bf16.mxu0 0
  %553 = vmatpush1.bf16.msra.mxu0 %v479
  %554 = vmatprep.subr.bf16.mxu0 0
  %555 = vmatpush1.bf16.msra.mxu0 %v480
  %556 = vmatprep.subr.bf16.mxu0 0
  %557 = vmatpush1.bf16.msra.mxu0 %v481
  %558 = vmatprep.subr.bf16.mxu0 0
  %559 = vmatpush1.bf16.msra.mxu0 %v482
  %560 = vmatprep.subr.bf16.mxu0 0
  %561 = vmatpush1.bf16.msra.mxu0 %v483
  %562 = vmatprep.subr.bf16.mxu0 0
  %563 = vmatpush1.bf16.msra.mxu0 %v484
  %564 = vmatprep.subr.bf16.mxu0 0
  %565 = vmatpush1.bf16.msra.mxu0 %v485
  %566 = vmatprep.mubr.bf16.mxu0 %v255
  %567 = vmatmul.mubr.bf16.gmra.mrb[0].mxu0 %v254
  %v568 = vpop.f32.mrb[0].mxu0
  %v569 = vadd.f32 %v126, %v568
  %v570 = vpop.f32.mrb[0].mxu0
  %v571 = vpop.f32.mrb[0].mxu0
  %v572 = vadd.f32 %v126, %v571
  %v573 = vpop.f32.mrb[0].mxu0
  %574 = vmatprep.mubr.bf16.mxu0 %v259
  %575 = vmatmul.mubr.bf16.gmra.mrb[0].mxu0 %v258
  %v576 = vpop.f32.mrb[0].mxu0
  %v577 = vadd.f32 %v126, %v576
  %v578 = vpop.f32.mrb[0].mxu0
  %v579 = vpop.f32.mrb[0].mxu0
  %v580 = vadd.f32 %v126, %v579
  %v581 = vpop.f32.mrb[0].mxu0
  %582 = vmatprep.mubr.bf16.mxu0 %v263
  %583 = vmatmul.mubr.bf16.gmra.mrb[0].mxu0 %v262
  %v584 = vpop.f32.mrb[0].mxu0
  %v585 = vadd.f32 %v126, %v584
  %v586 = vpop.f32.mrb[0].mxu0
  %v587 = vpop.f32.mrb[0].mxu0
  %v588 = vadd.f32 %v126, %v587
  %v589 = vpop.f32.mrb[0].mxu0
  %590 = vmatprep.mubr.bf16.mxu0 %v267
  %591 = vmatmul.mubr.bf16.gmra.mrb[0].mxu0 %v266
  %v592 = vpop.f32.mrb[0].mxu0
  %v593 = vadd.f32 %v126, %v592
  %v594 = vpop.f32.mrb[0].mxu0
  %v595 = vpop.f32.mrb[0].mxu0
  %v596 = vadd.f32 %v126, %v595
  %v597 = vpop.f32.mrb[0].mxu0
  %598 = vmatprep.mubr.bf16.mxu0 %v271
  %599 = vmatmul.mubr.bf16.gmra.mrb[0].mxu0 %v270
  %v600 = vpop.f32.mrb[0].mxu0
  %v601 = vadd.f32 %v126, %v600
  %v602 = vpop.f32.mrb[0].mxu0
  %v603 = vpop.f32.mrb[0].mxu0
  %v604 = vadd.f32 %v126, %v603
  %v605 = vpop.f32.mrb[0].mxu0
  %606 = vmatprep.mubr.bf16.mxu0 %v275
  %607 = vmatmul.mubr.bf16.gmra.mrb[0].mxu0 %v274
  %v608 = vpop.f32.mrb[0].mxu0
  %v609 = vadd.f32 %v126, %v608
  %v610 = vpop.f32.mrb[0].mxu0
  %v611 = vpop.f32.mrb[0].mxu0
  %v612 = vadd.f32 %v126, %v611
  %v613 = vpop.f32.mrb[0].mxu0
  %614 = vmatprep.mubr.bf16.mxu0 %v279
  %615 = vmatmul.mubr.bf16.gmra.mrb[0].mxu0 %v278
  %v616 = vpop.f32.mrb[0].mxu0
  %v617 = vadd.f32 %v126, %v616
  %v618 = vpop.f32.mrb[0].mxu0
  %v619 = vpop.f32.mrb[0].mxu0
  %v620 = vadd.f32 %v126, %v619
  %v621 = vpop.f32.mrb[0].mxu0
  %622 = vmatprep.mubr.bf16.mxu0 %v283
  %623 = vmatmul.mubr.bf16.gmra.mrb[0].mxu0 %v282
  %v624 = vpop.f32.mrb[0].mxu0
  %v625 = vadd.f32 %v126, %v624
  %v626 = vpop.f32.mrb[0].mxu0
  %v627 = vpop.f32.mrb[0].mxu0
  %v628 = vadd.f32 %v126, %v627
  %v629 = vpop.f32.mrb[0].mxu0
  %630 = vmatprep.mubr.bf16.mxu0 %v287
  %631 = vmatmul.mubr.bf16.gmra.mrb[0].mxu0 %v286
  %v632 = vpop.f32.mrb[0].mxu0
  %v633 = vadd.f32 %v126, %v632
  %v634 = vpop.f32.mrb[0].mxu0
  %v635 = vpop.f32.mrb[0].mxu0
  %v636 = vadd.f32 %v126, %v635
  %v637 = vpop.f32.mrb[0].mxu0
  %638 = vmatprep.mubr.bf16.mxu0 %v291
  %639 = vmatmul.mubr.bf16.gmra.mrb[0].mxu0 %v290
  %v640 = vpop.f32.mrb[0].mxu0
  %v641 = vadd.f32 %v126, %v640
  %v642 = vpop.f32.mrb[0].mxu0
  %v643 = vpop.f32.mrb[0].mxu0
  %v644 = vadd.f32 %v126, %v643
  %v645 = vpop.f32.mrb[0].mxu0
  %646 = vmatprep.mubr.bf16.mxu0 %v295
  %647 = vmatmul.mubr.bf16.gmra.mrb[0].mxu0 %v294
  %v648 = vpop.f32.mrb[0].mxu0
  %v649 = vadd.f32 %v126, %v648
  %v650 = vpop.f32.mrb[0].mxu0
  %v651 = vpop.f32.mrb[0].mxu0
  %v652 = vpop.f32.mrb[0].mxu0
  %653 = vdwg.mxu0
  %654 = vmatprep.subr.bf16.mxu0 0
  %655 = vmatpush1.bf16.msra.mxu0 %v486
  %656 = vmatprep.subr.bf16.mxu0 0
  %657 = vmatpush1.bf16.msra.mxu0 %v487
  %658 = vmatprep.subr.bf16.mxu0 0
  %659 = vmatpush1.bf16.msra.mxu0 %v488
  %660 = vmatprep.subr.bf16.mxu0 0
  %661 = vmatpush1.bf16.msra.mxu0 %v489
  %662 = vmatprep.subr.bf16.mxu0 0
  %663 = vmatpush1.bf16.msra.mxu0 %v490
  %664 = vmatprep.subr.bf16.mxu0 0
  %665 = vmatpush1.bf16.msra.mxu0 %v491
  %666 = vmatprep.subr.bf16.mxu0 0
  %667 = vmatpush1.bf16.msra.mxu0 %v492
  %668 = vmatprep.subr.bf16.mxu0 0
  %669 = vmatpush1.bf16.msra.mxu0 %v493
  %670 = vmatprep.subr.bf16.mxu0 0
  %671 = vmatpush1.bf16.msra.mxu0 %v494
  %672 = vmatprep.subr.bf16.mxu0 0
  %673 = vmatpush1.bf16.msra.mxu0 %v495
  %674 = vmatprep.subr.bf16.mxu0 0
  %675 = vmatpush1.bf16.msra.mxu0 %v496
  %676 = vmatprep.subr.bf16.mxu0 0
  %677 = vmatpush1.bf16.msra.mxu0 %v497
  %678 = vmatprep.subr.bf16.mxu0 0
  %679 = vmatpush1.bf16.msra.mxu0 %v498
  %680 = vmatprep.subr.bf16.mxu0 0
  %681 = vmatpush1.bf16.msra.mxu0 %v499
  %682 = vmatprep.subr.bf16.mxu0 0
  %683 = vmatpush1.bf16.msra.mxu0 %v500
  %684 = vmatprep.subr.bf16.mxu0 0
  %685 = vmatpush1.bf16.msra.mxu0 %v501
  %686 = vmatprep.mubr.bf16.mxu0 %v257
  %687 = vmatmul.mubr.bf16.gmra.mrb[0].mxu0 %v256
  %v688 = vpop.f32.mrb[0].mxu0
  %v689 = vadd.f32 %v569, %v688
  %v690 = vpop.f32.mrb[0].mxu0
  %v691 = vpop.f32.mrb[0].mxu0
  %v692 = vadd.f32 %v572, %v691
  %v693 = vpop.f32.mrb[0].mxu0
  %694 = vmatprep.mubr.bf16.mxu0 %v261
  %695 = vmatmul.mubr.bf16.gmra.mrb[0].mxu0 %v260
  %v696 = vpop.f32.mrb[0].mxu0
  %v697 = vadd.f32 %v577, %v696
  %v698 = vpop.f32.mrb[0].mxu0
  %v699 = vpop.f32.mrb[0].mxu0
  %v700 = vadd.f32 %v580, %v699
  %v701 = vpop.f32.mrb[0].mxu0
  %702 = vmatprep.mubr.bf16.mxu0 %v265
  %703 = vmatmul.mubr.bf16.gmra.mrb[0].mxu0 %v264
  %v704 = vpop.f32.mrb[0].mxu0
  %v705 = vadd.f32 %v585, %v704
  %v706 = vpop.f32.mrb[0].mxu0
  %v707 = vpop.f32.mrb[0].mxu0
  %v708 = vadd.f32 %v588, %v707
  %v709 = vpop.f32.mrb[0].mxu0
  %710 = vmatprep.mubr.bf16.mxu0 %v269
  %711 = vmatmul.mubr.bf16.gmra.mrb[0].mxu0 %v268
  %v712 = vpop.f32.mrb[0].mxu0
  %v713 = vadd.f32 %v593, %v712
  %v714 = vpop.f32.mrb[0].mxu0
  %v715 = vpop.f32.mrb[0].mxu0
  %v716 = vadd.f32 %v596, %v715
  %v717 = vpop.f32.mrb[0].mxu0
  %718 = vmatprep.mubr.bf16.mxu0 %v273
  %719 = vmatmul.mubr.bf16.gmra.mrb[0].mxu0 %v272
  %v720 = vpop.f32.mrb[0].mxu0
  %v721 = vadd.f32 %v601, %v720
  %v722 = vpop.f32.mrb[0].mxu0
  %v723 = vpop.f32.mrb[0].mxu0
  %v724 = vadd.f32 %v604, %v723
  %v725 = vpop.f32.mrb[0].mxu0
  %726 = vmatprep.mubr.bf16.mxu0 %v277
  %727 = vmatmul.mubr.bf16.gmra.mrb[0].mxu0 %v276
  %v728 = vpop.f32.mrb[0].mxu0
  %v729 = vadd.f32 %v609, %v728
  %v730 = vpop.f32.mrb[0].mxu0
  %v731 = vpop.f32.mrb[0].mxu0
  %v732 = vadd.f32 %v612, %v731
  %v733 = vpop.f32.mrb[0].mxu0
  %734 = vmatprep.mubr.bf16.mxu0 %v281
  %735 = vmatmul.mubr.bf16.gmra.mrb[0].mxu0 %v280
  %v736 = vpop.f32.mrb[0].mxu0
  %v737 = vadd.f32 %v617, %v736
  %v738 = vpop.f32.mrb[0].mxu0
  %v739 = vpop.f32.mrb[0].mxu0
  %v740 = vadd.f32 %v620, %v739
  %v741 = vpop.f32.mrb[0].mxu0
  %742 = vmatprep.mubr.bf16.mxu0 %v285
  %743 = vmatmul.mubr.bf16.gmra.mrb[0].mxu0 %v284
  %v744 = vpop.f32.mrb[0].mxu0
  %v745 = vadd.f32 %v625, %v744
  %v746 = vpop.f32.mrb[0].mxu0
  %v747 = vpop.f32.mrb[0].mxu0
  %v748 = vadd.f32 %v628, %v747
  %v749 = vpop.f32.mrb[0].mxu0
  %750 = vmatprep.mubr.bf16.mxu0 %v289
  %751 = vmatmul.mubr.bf16.gmra.mrb[0].mxu0 %v288
  %v752 = vpop.f32.mrb[0].mxu0
  %v753 = vadd.f32 %v633, %v752
  %v754 = vpop.f32.mrb[0].mxu0
  %v755 = vpop.f32.mrb[0].mxu0
  %v756 = vadd.f32 %v636, %v755
  %v757 = vpop.f32.mrb[0].mxu0
  %758 = vmatprep.mubr.bf16.mxu0 %v293
  %759 = vmatmul.mubr.bf16.gmra.mrb[0].mxu0 %v292
  %v760 = vpop.f32.mrb[0].mxu0
  %v761 = vadd.f32 %v641, %v760
  %v762 = vpop.f32.mrb[0].mxu0
  %v763 = vpop.f32.mrb[0].mxu0
  %v764 = vadd.f32 %v644, %v763
  %v765 = vpop.f32.mrb[0].mxu0
  %766 = vmatprep.mubr.bf16.mxu0 %v297
  %767 = vmatmul.mubr.bf16.gmra.mrb[0].mxu0 %v296
  %v768 = vpop.f32.mrb[0].mxu0
  %v769 = vadd.f32 %v649, %v768
  %v770 = vpop.f32.mrb[0].mxu0
  %v771 = vpop.f32.mrb[0].mxu0
  %v772 = vpop.f32.mrb[0].mxu0
  %773 = vdwg.mxu0
  %v774 = vmul.f32 %v689, 0.01
  %v775 = vmul.f32 %v692, 0.01
  %v776 = vmul.f32 %v697, 0.01
  %v777 = vmul.f32 %v700, 0.01
  %v778 = vmul.f32 %v705, 0.01
  %v779 = vmul.f32 %v708, 0.01
  %v780 = vmul.f32 %v713, 0.01
  %v781 = vmul.f32 %v716, 0.01
  %v782 = vmul.f32 %v721, 0.01
  %v783 = vmul.f32 %v724, 0.01
  %v784 = vmul.f32 %v729, 0.01
  %v785 = vmul.f32 %v732, 0.01
  %v786 = vmul.f32 %v737, 0.01
  %v787 = vmul.f32 %v740, 0.01
  %v788 = vmul.f32 %v745, 0.01
  %v789 = vmul.f32 %v748, 0.01
  %v790 = vmul.f32 %v753, 0.01
  %v791 = vmul.f32 %v756, 0.01
  %v792 = vmul.f32 %v761, 0.01
  %v793 = vmul.f32 %v764, 0.01
  %v794 = vmul.f32 %v769, 0.01
  %v795 = vmax.f32 %v689, %v774
  %v796 = vmax.f32 %v692, %v775
  %v797 = vmax.f32 %v697, %v776
  %v798 = vmax.f32 %v700, %v777
  %v799 = vmax.f32 %v705, %v778
  %v800 = vmax.f32 %v708, %v779
  %v801 = vmax.f32 %v713, %v780
  %v802 = vmax.f32 %v716, %v781
  %v803 = vmax.f32 %v721, %v782
  %v804 = vmax.f32 %v724, %v783
  %v805 = vmax.f32 %v729, %v784
  %v806 = vmax.f32 %v732, %v785
  %v807 = vmax.f32 %v737, %v786
  %v808 = vmax.f32 %v740, %v787
  %v809 = vmax.f32 %v745, %v788
  %v810 = vmax.f32 %v748, %v789
  %v811 = vmax.f32 %v753, %v790
  %v812 = vmax.f32 %v756, %v791
  %v813 = vmax.f32 %v761, %v792
  %v814 = vmax.f32 %v764, %v793
  %v815 = vmax.f32 %v769, %v794
  %v816 = vpack.c.bf16 %v796, %v795
  %v817 = vpack.c.bf16 %v798, %v797
  %v818 = vpack.c.bf16 %v800, %v799
  %v819 = vpack.c.bf16 %v802, %v801
  %v820 = vpack.c.bf16 %v804, %v803
  %v821 = vpack.c.bf16 %v806, %v805
  %v822 = vpack.c.bf16 %v808, %v807
  %v823 = vpack.c.bf16 %v810, %v809
  %v824 = vpack.c.bf16 %v812, %v811
  %v825 = vpack.c.bf16 %v814, %v813
  %v826 = vpack.c.bf16 %v815, %v815
  %v838 = vunpack.c.l.b16 %v816
  %v839 = vunpack.c.h.b16 %v816
  %v840 = vunpack.c.l.b16 %v817
  %v841 = vunpack.c.h.b16 %v817
  %v842 = vunpack.c.l.b16 %v818
  %v843 = vunpack.c.h.b16 %v818
  %v844 = vunpack.c.l.b16 %v819
  %v845 = vunpack.c.h.b16 %v819
  %v846 = vunpack.c.l.b16 %v820
  %v847 = vunpack.c.h.b16 %v820
  %v848 = vunpack.c.l.b16 %v821
  %v849 = vunpack.c.h.b16 %v821
  %v850 = vunpack.c.l.b16 %v822
  %v851 = vunpack.c.h.b16 %v822
  %v852 = vunpack.c.l.b16 %v823
  %v853 = vunpack.c.h.b16 %v823
  %v854 = vunpack.c.l.b16 %v824
  %v855 = vunpack.c.h.b16 %v824
  %v856 = vunpack.c.l.b16 %v825
  %v857 = vunpack.c.h.b16 %v825
  %v858 = vunpack.c.l.b16 %v826
  %v859 = vpack.c.b16 %v838, %v838
  %v860 = vpack.c.b16 %v839, %v839
  %v861 = vpack.c.b16 %v840, %v840
  %v862 = vpack.c.b16 %v841, %v841
  %v863 = vpack.c.b16 %v842, %v842
  %v864 = vpack.c.b16 %v843, %v843
  %v865 = vpack.c.b16 %v844, %v844
  %v866 = vpack.c.b16 %v845, %v845
  %v867 = vpack.c.b16 %v846, %v846
  %v868 = vpack.c.b16 %v847, %v847
  %v869 = vpack.c.b16 %v848, %v848
  %v870 = vpack.c.b16 %v849, %v849
  %v871 = vpack.c.b16 %v850, %v850
  %v872 = vpack.c.b16 %v851, %v851
  %v873 = vpack.c.b16 %v852, %v852
  %v874 = vpack.c.b16 %v853, %v853
  %v875 = vpack.c.b16 %v854, %v854
  %v876 = vpack.c.b16 %v855, %v855
  %v877 = vpack.c.b16 %v856, %v856
  %v878 = vpack.c.b16 %v857, %v857
  %v879 = vpack.c.b16 %v858, %v858
  %901 = vst [vmem:[%s3] sm:$0xf] %v859
  %902 = vst [vmem:[%s3 + $0x4] sm:$0xf] %v860
  %903 = vst [vmem:[%s3 + $0x8] sm:$0xf] %v861
  %904 = vst [vmem:[%s3 + $0xc] sm:$0xf] %v862
  %905 = vst [vmem:[%s3 + $0x10] sm:$0xf] %v863
  %906 = vst [vmem:[%s3 + $0x14] sm:$0xf] %v864
  %907 = vst [vmem:[%s3 + $0x18] sm:$0xf] %v865
  %908 = vst [vmem:[%s3 + $0x1c] sm:$0xf] %v866
  %909 = vst [vmem:[%s3 + $0x20] sm:$0xf] %v867
  %910 = vst [vmem:[%s3 + $0x24] sm:$0xf] %v868
  %911 = vst [vmem:[%s3 + $0x28] sm:$0xf] %v869
  %912 = vst [vmem:[%s3 + $0x2c] sm:$0xf] %v870
  %913 = vst [vmem:[%s3 + $0x30] sm:$0xf] %v871
  %914 = vst [vmem:[%s3 + $0x34] sm:$0xf] %v872
  %915 = vst [vmem:[%s3 + $0x38] sm:$0xf] %v873
  %916 = vst [vmem:[%s3 + $0x3c] sm:$0xf] %v874
  %917 = vst [vmem:[%s3 + $0x40] sm:$0xf] %v875
  %918 = vst [vmem:[%s3 + $0x44] sm:$0xf] %v876
  %919 = vst [vmem:[%s3 + $0x48] sm:$0xf] %v877
  %920 = vst [vmem:[%s3 + $0x4c] sm:$0xf] %v878
  %921 = vst [vmem:[%s3 + $0x50] sm:$0xf] %v879
  // Predicated region
  $region14: #{cnn_state_encoder_forward.5} parent=0 // pred_check
    _
  $region15: #{cnn_state_encoder_forward.5} parent=0 // pred_check_branch
    %923 = sbr.rel (0) target = $region17
  $region16: #{cnn_state_encoder_forward.5} parent=0 // pred_region
    _
  $region17: #{cnn_state_encoder_forward.5} parent=0 // pred_fallthru
    _
  // Predicated region
  $region18: #{cnn_state_encoder_forward.5} parent=0 // pred_check
    _
  $region19: #{cnn_state_encoder_forward.5} parent=0 // pred_check_branch
    %925 = sbr.rel (0) target = $region21
  $region20: #{cnn_state_encoder_forward.5} parent=0 // pred_region
    _
  $region21: #{cnn_state_encoder_forward.5} parent=0 // pred_fallthru
    _

// kernel: cnn_state_encoder_forward.6
$region0: #{cnn_state_encoder_forward.6}
  #allocation0 [shape = 'u32[]', space=smem, size = 0x4, offset = 0x4, fixed_abs, tag = 'smem constant byte address 0x4 - core index']
  #allocation1 [shape = 'u32[144,128]{1,0:T(1,128)}', space=vmem, size = 0x12000, scoped, tag = 'internal scratch']
  %s0 = inlined_call_operand.vmem [shape: bf16[104,640], index: 0, kind: input, shape index: {}]
  %s1 = inlined_call_operand.vmem [shape: bf16[640,128], index: 1, kind: input, shape index: {}]
  %s2 = inlined_call_operand.vmem [shape: f32[1,128], index: 2, kind: input, shape index: {}]
  %s3 = inlined_call_operand.vmem [shape: bf16[104,128], index: 3, kind: output, shape index: {}]
  %s4 = sld [smem:[#allocation0]]
  $region22: #{cnn_state_encoder_forward.6} parent=0
    _
  %s6 = ssub.s32 1, %s4
  %s7 = scalar_select 0, %s6, %s4
  // Predicated region
  $region2: #{cnn_state_encoder_forward.6} parent=0 // pred_check
    _
  $region3: #{cnn_state_encoder_forward.6} parent=0 // pred_check_branch
    %9 = sbr.rel (0) target = $region5
  $region4: #{cnn_state_encoder_forward.6} parent=0 // pred_region
    _
  $region5: #{cnn_state_encoder_forward.6} parent=0 // pred_fallthru
    _
  // Predicated region
  $region6: #{cnn_state_encoder_forward.6} parent=0 // pred_check
    _
  $region7: #{cnn_state_encoder_forward.6} parent=0 // pred_check_branch
    %11 = sbr.rel (0) target = $region9
  $region8: #{cnn_state_encoder_forward.6} parent=0 // pred_region
    _
  $region9: #{cnn_state_encoder_forward.6} parent=0 // pred_fallthru
    _
  // Predicated region
  $region10: #{cnn_state_encoder_forward.6} parent=0 // pred_check
    _
  $region11: #{cnn_state_encoder_forward.6} parent=0 // pred_check_branch
    %13 = sbr.rel (0) target = $region13
  $region12: #{cnn_state_encoder_forward.6} parent=0 // pred_region
    _
  $region13: #{cnn_state_encoder_forward.6} parent=0 // pred_fallthru
    _
  %v15 = vld [vmem:[%s0] sm:$0xff]
  %v16 = vld [vmem:[%s0 + $0x8] sm:$0xff]
  %v17 = vld [vmem:[%s0 + $0x10] sm:$0xf]
  %v18 = vld [vmem:[%s0 + $0x14] sm:$0xff]
  %v19 = vld [vmem:[%s0 + $0x1c] sm:$0xff]
  %v20 = vld [vmem:[%s0 + $0x24] sm:$0xf]
  %v21 = vld [vmem:[%s0 + $0x28] sm:$0xff]
  %v22 = vld [vmem:[%s0 + $0x30] sm:$0xff]
  %v23 = vld [vmem:[%s0 + $0x38] sm:$0xf]
  %v24 = vld [vmem:[%s0 + $0x3c] sm:$0xff]
  %v25 = vld [vmem:[%s0 + $0x44] sm:$0xff]
  %v26 = vld [vmem:[%s0 + $0x4c] sm:$0xf]
  %v27 = vld [vmem:[%s0 + $0x50] sm:$0xff]
  %v28 = vld [vmem:[%s0 + $0x58] sm:$0xff]
  %v29 = vld [vmem:[%s0 + $0x60] sm:$0xf]
  %v30 = vld [vmem:[%s0 + $0x64] sm:$0xff]
  %v31 = vld [vmem:[%s0 + $0x6c] sm:$0xff]
  %v32 = vld [vmem:[%s0 + $0x74] sm:$0xf]
  %v33 = vld [vmem:[%s0 + $0x78] sm:$0xff]
  %v34 = vld [vmem:[%s0 + $0x80] sm:$0xff]
  %v35 = vld [vmem:[%s0 + $0x88] sm:$0xf]
  %v36 = vld [vmem:[%s0 + $0x8c] sm:$0xff]
  %v37 = vld [vmem:[%s0 + $0x94] sm:$0xff]
  %v38 = vld [vmem:[%s0 + $0x9c] sm:$0xf]
  %v39 = vld [vmem:[%s0 + $0xa0] sm:$0xff]
  %v40 = vld [vmem:[%s0 + $0xa8] sm:$0xff]
  %v41 = vld [vmem:[%s0 + $0xb0] sm:$0xf]
  %v42 = vld [vmem:[%s0 + $0xb4] sm:$0xff]
  %v43 = vld [vmem:[%s0 + $0xbc] sm:$0xff]
  %v44 = vld [vmem:[%s0 + $0xc4] sm:$0xf]
  %v45 = vld [vmem:[%s0 + $0xc8] sm:$0xff]
  %v46 = vld [vmem:[%s0 + $0xd0] sm:$0xff]
  %v47 = vld [vmem:[%s0 + $0xd8] sm:$0xf]
  %v48 = vld [vmem:[%s0 + $0xdc] sm:$0xff]
  %v49 = vld [vmem:[%s0 + $0xe4] sm:$0xff]
  %v50 = vld [vmem:[%s0 + $0xec] sm:$0xf]
  %v51 = vld [vmem:[%s0 + $0xf0] sm:$0xff]
  %v52 = vld [vmem:[%s0 + $0xf8] sm:$0xff]
  %v53 = vld [vmem:[%s0 + $0x100] sm:$0xf]
  %v54 = vld [vmem:[%s1] sm:$0xf]
  %v55 = vld [vmem:[%s1 + $0x4] sm:$0xf]
  %v56 = vld [vmem:[%s1 + $0x8] sm:$0xf]
  %v57 = vld [vmem:[%s1 + $0xc] sm:$0xf]
  %v58 = vld [vmem:[%s1 + $0x10] sm:$0xf]
  %v59 = vld [vmem:[%s1 + $0x14] sm:$0xf]
  %v60 = vld [vmem:[%s1 + $0x18] sm:$0xf]
  %v61 = vld [vmem:[%s1 + $0x1c] sm:$0xf]
  %v62 = vld [vmem:[%s1 + $0x20] sm:$0xf]
  %v63 = vld [vmem:[%s1 + $0x24] sm:$0xf]
  %v64 = vld [vmem:[%s1 + $0x28] sm:$0xf]
  %v65 = vld [vmem:[%s1 + $0x2c] sm:$0xf]
  %v66 = vld [vmem:[%s1 + $0x30] sm:$0xf]
  %v67 = vld [vmem:[%s1 + $0x34] sm:$0xf]
  %v68 = vld [vmem:[%s1 + $0x38] sm:$0xf]
  %v69 = vld [vmem:[%s1 + $0x3c] sm:$0xf]
  %v70 = vld [vmem:[%s1 + $0x40] sm:$0xf]
  %v71 = vld [vmem:[%s1 + $0x44] sm:$0xf]
  %v72 = vld [vmem:[%s1 + $0x48] sm:$0xf]
  %v73 = vld [vmem:[%s1 + $0x4c] sm:$0xf]
  %v74 = vld [vmem:[%s1 + $0x50] sm:$0xf]
  %v75 = vld [vmem:[%s1 + $0x54] sm:$0xf]
  %v76 = vld [vmem:[%s1 + $0x58] sm:$0xf]
  %v77 = vld [vmem:[%s1 + $0x5c] sm:$0xf]
  %v78 = vld [vmem:[%s1 + $0x60] sm:$0xf]
  %v79 = vld [vmem:[%s1 + $0x64] sm:$0xf]
  %v80 = vld [vmem:[%s1 + $0x68] sm:$0xf]
  %v81 = vld [vmem:[%s1 + $0x6c] sm:$0xf]
  %v82 = vld [vmem:[%s1 + $0x70] sm:$0xf]
  %v83 = vld [vmem:[%s1 + $0x74] sm:$0xf]
  %v84 = vld [vmem:[%s1 + $0x78] sm:$0xf]
  %v85 = vld [vmem:[%s1 + $0x7c] sm:$0xf]
  %v86 = vld [vmem:[%s1 + $0x80] sm:$0xf]
  %v87 = vld [vmem:[%s1 + $0x84] sm:$0xf]
  %v88 = vld [vmem:[%s1 + $0x88] sm:$0xf]
  %v89 = vld [vmem:[%s1 + $0x8c] sm:$0xf]
  %v90 = vld [vmem:[%s1 + $0x90] sm:$0xf]
  %v91 = vld [vmem:[%s1 + $0x94] sm:$0xf]
  %v92 = vld [vmem:[%s1 + $0x98] sm:$0xf]
  %v93 = vld [vmem:[%s1 + $0x9c] sm:$0xf]
  %v94 = vld [vmem:[%s1 + $0xa0] sm:$0xf]
  %v95 = vld [vmem:[%s1 + $0xa4] sm:$0xf]
  %v96 = vld [vmem:[%s1 + $0xa8] sm:$0xf]
  %v97 = vld [vmem:[%s1 + $0xac] sm:$0xf]
  %v98 = vld [vmem:[%s1 + $0xb0] sm:$0xf]
  %v99 = vld [vmem:[%s1 + $0xb4] sm:$0xf]
  %v100 = vld [vmem:[%s1 + $0xb8] sm:$0xf]
  %v101 = vld [vmem:[%s1 + $0xbc] sm:$0xf]
  %v102 = vld [vmem:[%s1 + $0xc0] sm:$0xf]
  %v103 = vld [vmem:[%s1 + $0xc4] sm:$0xf]
  %v104 = vld [vmem:[%s1 + $0xc8] sm:$0xf]
  %v105 = vld [vmem:[%s1 + $0xcc] sm:$0xf]
  %v106 = vld [vmem:[%s1 + $0xd0] sm:$0xf]
  %v107 = vld [vmem:[%s1 + $0xd4] sm:$0xf]
  %v108 = vld [vmem:[%s1 + $0xd8] sm:$0xf]
  %v109 = vld [vmem:[%s1 + $0xdc] sm:$0xf]
  %v110 = vld [vmem:[%s1 + $0xe0] sm:$0xf]
  %v111 = vld [vmem:[%s1 + $0xe4] sm:$0xf]
  %v112 = vld [vmem:[%s1 + $0xe8] sm:$0xf]
  %v113 = vld [vmem:[%s1 + $0xec] sm:$0xf]
  %v114 = vld [vmem:[%s1 + $0xf0] sm:$0xf]
  %v115 = vld [vmem:[%s1 + $0xf4] sm:$0xf]
  %v116 = vld [vmem:[%s1 + $0xf8] sm:$0xf]
  %v117 = vld [vmem:[%s1 + $0xfc] sm:$0xf]
  %v118 = vld [vmem:[%s1 + $0x100] sm:$0xf]
  %v119 = vld [vmem:[%s1 + $0x104] sm:$0xf]
  %v120 = vld [vmem:[%s1 + $0x108] sm:$0xf]
  %v121 = vld [vmem:[%s1 + $0x10c] sm:$0xf]
  %v122 = vld [vmem:[%s1 + $0x110] sm:$0xf]
  %v123 = vld [vmem:[%s1 + $0x114] sm:$0xf]
  %v124 = vld [vmem:[%s1 + $0x118] sm:$0xf]
  %v125 = vld [vmem:[%s1 + $0x11c] sm:$0xf]
  %v126 = vld [vmem:[%s1 + $0x120] sm:$0xf]
  %v127 = vld [vmem:[%s1 + $0x124] sm:$0xf]
  %v128 = vld [vmem:[%s1 + $0x128] sm:$0xf]
  %v129 = vld [vmem:[%s1 + $0x12c] sm:$0xf]
  %v130 = vld [vmem:[%s1 + $0x130] sm:$0xf]
  %v131 = vld [vmem:[%s1 + $0x134] sm:$0xf]
  %v132 = vld [vmem:[%s1 + $0x138] sm:$0xf]
  %v133 = vld [vmem:[%s1 + $0x13c] sm:$0xf]
  %v134 = vld [vmem:[%s2] sm:$0x1]
  %v136 = vlaneseq
  %v137 = vshrl.u32 %v136, 7
  %v138 = vsub.s32 0, %v137
  %v139 = vrot.slane %v134, %v138
  %v180 = vunpack.c.l.b16 %v15
  %v181 = vunpack.c.h.b16 %v15
  %v182 = vunpack.c.l.b16 %v16
  %v183 = vunpack.c.h.b16 %v16
  %v184 = vunpack.c.l.b16 %v17
  %v185 = vunpack.c.l.b16 %v18
  %v186 = vunpack.c.h.b16 %v18
  %v187 = vunpack.c.l.b16 %v19
  %v188 = vunpack.c.h.b16 %v19
  %v189 = vunpack.c.l.b16 %v20
  %v190 = vunpack.c.l.b16 %v21
  %v191 = vunpack.c.h.b16 %v21
  %v192 = vunpack.c.l.b16 %v22
  %v193 = vunpack.c.h.b16 %v22
  %v194 = vunpack.c.l.b16 %v23
  %v195 = vunpack.c.l.b16 %v24
  %v196 = vunpack.c.h.b16 %v24
  %v197 = vunpack.c.l.b16 %v25
  %v198 = vunpack.c.h.b16 %v25
  %v199 = vunpack.c.l.b16 %v26
  %v200 = vunpack.c.l.b16 %v27
  %v201 = vunpack.c.h.b16 %v27
  %v202 = vunpack.c.l.b16 %v28
  %v203 = vunpack.c.h.b16 %v28
  %v204 = vunpack.c.l.b16 %v29
  %v205 = vunpack.c.l.b16 %v30
  %v206 = vunpack.c.h.b16 %v30
  %v207 = vunpack.c.l.b16 %v31
  %v208 = vunpack.c.h.b16 %v31
  %v209 = vunpack.c.l.b16 %v32
  %v210 = vunpack.c.l.b16 %v33
  %v211 = vunpack.c.h.b16 %v33
  %v212 = vunpack.c.l.b16 %v34
  %v213 = vunpack.c.h.b16 %v34
  %v214 = vunpack.c.l.b16 %v35
  %v215 = vunpack.c.l.b16 %v36
  %v216 = vunpack.c.h.b16 %v36
  %v217 = vunpack.c.l.b16 %v37
  %v218 = vunpack.c.h.b16 %v37
  %v219 = vunpack.c.l.b16 %v38
  %v220 = vunpack.c.l.b16 %v39
  %v221 = vunpack.c.h.b16 %v39
  %v222 = vunpack.c.l.b16 %v40
  %v223 = vunpack.c.h.b16 %v40
  %v224 = vunpack.c.l.b16 %v41
  %v225 = vunpack.c.l.b16 %v42
  %v226 = vunpack.c.h.b16 %v42
  %v227 = vunpack.c.l.b16 %v43
  %v228 = vunpack.c.h.b16 %v43
  %v229 = vunpack.c.l.b16 %v44
  %v230 = vunpack.c.l.b16 %v45
  %v231 = vunpack.c.h.b16 %v45
  %v232 = vunpack.c.l.b16 %v46
  %v233 = vunpack.c.h.b16 %v46
  %v234 = vunpack.c.l.b16 %v47
  %v235 = vunpack.c.l.b16 %v48
  %v236 = vunpack.c.h.b16 %v48
  %v237 = vunpack.c.l.b16 %v49
  %v238 = vunpack.c.h.b16 %v49
  %v239 = vunpack.c.l.b16 %v50
  %v240 = vunpack.c.l.b16 %v51
  %v241 = vunpack.c.h.b16 %v51
  %v242 = vunpack.c.l.b16 %v52
  %v243 = vunpack.c.h.b16 %v52
  %v244 = vunpack.c.l.b16 %v53
  %v245 = vpack.c.b16 %v185, %v180
  %v246 = vpack.c.b16 %v186, %v181
  %v247 = vpack.c.b16 %v187, %v182
  %v248 = vpack.c.b16 %v188, %v183
  %v249 = vpack.c.b16 %v189, %v184
  %v250 = vpack.c.b16 %v195, %v190
  %v251 = vpack.c.b16 %v196, %v191
  %v252 = vpack.c.b16 %v197, %v192
  %v253 = vpack.c.b16 %v198, %v193
  %v254 = vpack.c.b16 %v199, %v194
  %v255 = vpack.c.b16 %v205, %v200
  %v256 = vpack.c.b16 %v206, %v201
  %v257 = vpack.c.b16 %v207, %v202
  %v258 = vpack.c.b16 %v208, %v203
  %v259 = vpack.c.b16 %v209, %v204
  %v260 = vpack.c.b16 %v215, %v210
  %v261 = vpack.c.b16 %v216, %v211
  %v262 = vpack.c.b16 %v217, %v212
  %v263 = vpack.c.b16 %v218, %v213
  %v264 = vpack.c.b16 %v219, %v214
  %v265 = vpack.c.b16 %v225, %v220
  %v266 = vpack.c.b16 %v226, %v221
  %v267 = vpack.c.b16 %v227, %v222
  %v268 = vpack.c.b16 %v228, %v223
  %v269 = vpack.c.b16 %v229, %v224
  %v270 = vpack.c.b16 %v235, %v230
  %v271 = vpack.c.b16 %v236, %v231
  %v272 = vpack.c.b16 %v237, %v232
  %v273 = vpack.c.b16 %v238, %v233
  %v274 = vpack.c.b16 %v239, %v234
  %v275 = vpack.c.b16 %v240, %v240
  %v276 = vpack.c.b16 %v241, %v241
  %v277 = vpack.c.b16 %v242, %v242
  %v278 = vpack.c.b16 %v243, %v243
  %v279 = vpack.c.b16 %v244, %v244
  %v395 = vunpack.c.l.b16 %v54
  %v396 = vunpack.c.l.b16 %v55
  %v397 = vunpack.c.l.b16 %v56
  %v398 = vunpack.c.l.b16 %v57
  %v399 = vunpack.c.l.b16 %v58
  %v400 = vunpack.c.l.b16 %v59
  %v401 = vunpack.c.l.b16 %v60
  %v402 = vunpack.c.l.b16 %v61
  %v403 = vunpack.c.l.b16 %v62
  %v404 = vunpack.c.l.b16 %v63
  %v405 = vunpack.c.l.b16 %v64
  %v406 = vunpack.c.l.b16 %v65
  %v407 = vunpack.c.l.b16 %v66
  %v408 = vunpack.c.l.b16 %v67
  %v409 = vunpack.c.l.b16 %v68
  %v410 = vunpack.c.l.b16 %v69
  %v411 = vunpack.c.l.b16 %v70
  %v412 = vunpack.c.l.b16 %v71
  %v413 = vunpack.c.l.b16 %v72
  %v414 = vunpack.c.l.b16 %v73
  %v415 = vunpack.c.l.b16 %v74
  %v416 = vunpack.c.l.b16 %v75
  %v417 = vunpack.c.l.b16 %v76
  %v418 = vunpack.c.l.b16 %v77
  %v419 = vunpack.c.l.b16 %v78
  %v420 = vunpack.c.l.b16 %v79
  %v421 = vunpack.c.l.b16 %v80
  %v422 = vunpack.c.l.b16 %v81
  %v423 = vunpack.c.l.b16 %v82
  %v424 = vunpack.c.l.b16 %v83
  %v425 = vunpack.c.l.b16 %v84
  %v426 = vunpack.c.l.b16 %v85
  %v427 = vunpack.c.l.b16 %v86
  %v428 = vunpack.c.l.b16 %v87
  %v429 = vunpack.c.l.b16 %v88
  %v430 = vunpack.c.l.b16 %v89
  %v431 = vunpack.c.l.b16 %v90
  %v432 = vunpack.c.l.b16 %v91
  %v433 = vunpack.c.l.b16 %v92
  %v434 = vunpack.c.l.b16 %v93
  %v435 = vunpack.c.l.b16 %v94
  %v436 = vunpack.c.l.b16 %v95
  %v437 = vunpack.c.l.b16 %v96
  %v438 = vunpack.c.l.b16 %v97
  %v439 = vunpack.c.l.b16 %v98
  %v440 = vunpack.c.l.b16 %v99
  %v441 = vunpack.c.l.b16 %v100
  %v442 = vunpack.c.l.b16 %v101
  %v443 = vunpack.c.l.b16 %v102
  %v444 = vunpack.c.l.b16 %v103
  %v445 = vunpack.c.l.b16 %v104
  %v446 = vunpack.c.l.b16 %v105
  %v447 = vunpack.c.l.b16 %v106
  %v448 = vunpack.c.l.b16 %v107
  %v449 = vunpack.c.l.b16 %v108
  %v450 = vunpack.c.l.b16 %v109
  %v451 = vunpack.c.l.b16 %v110
  %v452 = vunpack.c.l.b16 %v111
  %v453 = vunpack.c.l.b16 %v112
  %v454 = vunpack.c.l.b16 %v113
  %v455 = vunpack.c.l.b16 %v114
  %v456 = vunpack.c.l.b16 %v115
  %v457 = vunpack.c.l.b16 %v116
  %v458 = vunpack.c.l.b16 %v117
  %v459 = vunpack.c.l.b16 %v118
  %v460 = vunpack.c.l.b16 %v119
  %v461 = vunpack.c.l.b16 %v120
  %v462 = vunpack.c.l.b16 %v121
  %v463 = vunpack.c.l.b16 %v122
  %v464 = vunpack.c.l.b16 %v123
  %v465 = vunpack.c.l.b16 %v124
  %v466 = vunpack.c.l.b16 %v125
  %v467 = vunpack.c.l.b16 %v126
  %v468 = vunpack.c.l.b16 %v127
  %v469 = vunpack.c.l.b16 %v128
  %v470 = vunpack.c.l.b16 %v129
  %v471 = vunpack.c.l.b16 %v130
  %v472 = vunpack.c.l.b16 %v131
  %v473 = vunpack.c.l.b16 %v132
  %v474 = vunpack.c.l.b16 %v133
  %v475 = vpack.c.b16 %v396, %v395
  %v476 = vpack.c.b16 %v398, %v397
  %v477 = vpack.c.b16 %v400, %v399
  %v478 = vpack.c.b16 %v402, %v401
  %v479 = vpack.c.b16 %v404, %v403
  %v480 = vpack.c.b16 %v406, %v405
  %v481 = vpack.c.b16 %v408, %v407
  %v482 = vpack.c.b16 %v410, %v409
  %v483 = vpack.c.b16 %v412, %v411
  %v484 = vpack.c.b16 %v414, %v413
  %v485 = vpack.c.b16 %v416, %v415
  %v486 = vpack.c.b16 %v418, %v417
  %v487 = vpack.c.b16 %v420, %v419
  %v488 = vpack.c.b16 %v422, %v421
  %v489 = vpack.c.b16 %v424, %v423
  %v490 = vpack.c.b16 %v426, %v425
  %v491 = vpack.c.b16 %v428, %v427
  %v492 = vpack.c.b16 %v430, %v429
  %v493 = vpack.c.b16 %v432, %v431
  %v494 = vpack.c.b16 %v434, %v433
  %v495 = vpack.c.b16 %v436, %v435
  %v496 = vpack.c.b16 %v438, %v437
  %v497 = vpack.c.b16 %v440, %v439
  %v498 = vpack.c.b16 %v442, %v441
  %v499 = vpack.c.b16 %v444, %v443
  %v500 = vpack.c.b16 %v446, %v445
  %v501 = vpack.c.b16 %v448, %v447
  %v502 = vpack.c.b16 %v450, %v449
  %v503 = vpack.c.b16 %v452, %v451
  %v504 = vpack.c.b16 %v454, %v453
  %v505 = vpack.c.b16 %v456, %v455
  %v506 = vpack.c.b16 %v458, %v457
  %v507 = vpack.c.b16 %v460, %v459
  %v508 = vpack.c.b16 %v462, %v461
  %v509 = vpack.c.b16 %v464, %v463
  %v510 = vpack.c.b16 %v466, %v465
  %v511 = vpack.c.b16 %v468, %v467
  %v512 = vpack.c.b16 %v470, %v469
  %v513 = vpack.c.b16 %v472, %v471
  %v514 = vpack.c.b16 %v474, %v473
  %555 = vmatprep.subr.bf16.mxu0 0
  %556 = vmatpush1.bf16.msra.mxu0 %v475
  %557 = vmatprep.subr.bf16.mxu0 0
  %558 = vmatpush1.bf16.msra.mxu0 %v476
  %559 = vmatprep.subr.bf16.mxu0 0
  %560 = vmatpush1.bf16.msra.mxu0 %v477
  %561 = vmatprep.subr.bf16.mxu0 0
  %562 = vmatpush1.bf16.msra.mxu0 %v478
  %563 = vmatprep.subr.bf16.mxu0 0
  %564 = vmatpush1.bf16.msra.mxu0 %v479
  %565 = vmatprep.subr.bf16.mxu0 0
  %566 = vmatpush1.bf16.msra.mxu0 %v480
  %567 = vmatprep.subr.bf16.mxu0 0
  %568 = vmatpush1.bf16.msra.mxu0 %v481
  %569 = vmatprep.subr.bf16.mxu0 0
  %570 = vmatpush1.bf16.msra.mxu0 %v482
  %571 = vmatprep.subr.bf16.mxu0 0
  %572 = vmatpush1.bf16.msra.mxu0 %v483
  %573 = vmatprep.subr.bf16.mxu0 0
  %574 = vmatpush1.bf16.msra.mxu0 %v484
  %575 = vmatprep.subr.bf16.mxu0 0
  %576 = vmatpush1.bf16.msra.mxu0 %v485
  %577 = vmatprep.subr.bf16.mxu0 0
  %578 = vmatpush1.bf16.msra.mxu0 %v486
  %579 = vmatprep.subr.bf16.mxu0 0
  %580 = vmatpush1.bf16.msra.mxu0 %v487
  %581 = vmatprep.subr.bf16.mxu0 0
  %582 = vmatpush1.bf16.msra.mxu0 %v488
  %583 = vmatprep.subr.bf16.mxu0 0
  %584 = vmatpush1.bf16.msra.mxu0 %v489
  %585 = vmatprep.subr.bf16.mxu0 0
  %586 = vmatpush1.bf16.msra.mxu0 %v490
  %587 = vmatprep.mubr.bf16.mxu0 %v246
  %588 = vmatmul.mubr.bf16.gmra.mrb[0].mxu0 %v245
  %v589 = vpop.f32.mrb[0].mxu0
  %v590 = vadd.f32 %v139, %v589
  %v591 = vpop.f32.mrb[0].mxu0
  %v592 = vpop.f32.mrb[0].mxu0
  %v593 = vadd.f32 %v139, %v592
  %v594 = vpop.f32.mrb[0].mxu0
  %595 = vmatprep.mubr.bf16.mxu0 %v251
  %596 = vmatmul.mubr.bf16.gmra.mrb[0].mxu0 %v250
  %v597 = vpop.f32.mrb[0].mxu0
  %v598 = vadd.f32 %v139, %v597
  %v599 = vpop.f32.mrb[0].mxu0
  %v600 = vpop.f32.mrb[0].mxu0
  %v601 = vadd.f32 %v139, %v600
  %v602 = vpop.f32.mrb[0].mxu0
  %603 = vmatprep.mubr.bf16.mxu0 %v256
  %604 = vmatmul.mubr.bf16.gmra.mrb[0].mxu0 %v255
  %v605 = vpop.f32.mrb[0].mxu0
  %v606 = vadd.f32 %v139, %v605
  %v607 = vpop.f32.mrb[0].mxu0
  %v608 = vpop.f32.mrb[0].mxu0
  %v609 = vadd.f32 %v139, %v608
  %v610 = vpop.f32.mrb[0].mxu0
  %611 = vmatprep.mubr.bf16.mxu0 %v261
  %612 = vmatmul.mubr.bf16.gmra.mrb[0].mxu0 %v260
  %v613 = vpop.f32.mrb[0].mxu0
  %v614 = vadd.f32 %v139, %v613
  %v615 = vpop.f32.mrb[0].mxu0
  %v616 = vpop.f32.mrb[0].mxu0
  %v617 = vadd.f32 %v139, %v616
  %v618 = vpop.f32.mrb[0].mxu0
  %619 = vmatprep.mubr.bf16.mxu0 %v266
  %620 = vmatmul.mubr.bf16.gmra.mrb[0].mxu0 %v265
  %v621 = vpop.f32.mrb[0].mxu0
  %v622 = vadd.f32 %v139, %v621
  %v623 = vpop.f32.mrb[0].mxu0
  %v624 = vpop.f32.mrb[0].mxu0
  %v625 = vadd.f32 %v139, %v624
  %v626 = vpop.f32.mrb[0].mxu0
  %627 = vmatprep.mubr.bf16.mxu0 %v271
  %628 = vmatmul.mubr.bf16.gmra.mrb[0].mxu0 %v270
  %v629 = vpop.f32.mrb[0].mxu0
  %v630 = vadd.f32 %v139, %v629
  %v631 = vpop.f32.mrb[0].mxu0
  %v632 = vpop.f32.mrb[0].mxu0
  %v633 = vadd.f32 %v139, %v632
  %v634 = vpop.f32.mrb[0].mxu0
  %635 = vmatprep.mubr.bf16.mxu0 %v276
  %636 = vmatmul.mubr.bf16.gmra.mrb[0].mxu0 %v275
  %v637 = vpop.f32.mrb[0].mxu0
  %v638 = vadd.f32 %v139, %v637
  %v639 = vpop.f32.mrb[0].mxu0
  %v640 = vpop.f32.mrb[0].mxu0
  %v641 = vpop.f32.mrb[0].mxu0
  %642 = vdwg.mxu0
  %643 = vmatprep.subr.bf16.mxu0 0
  %644 = vmatpush1.bf16.msra.mxu0 %v491
  %645 = vmatprep.subr.bf16.mxu0 0
  %646 = vmatpush1.bf16.msra.mxu0 %v492
  %647 = vmatprep.subr.bf16.mxu0 0
  %648 = vmatpush1.bf16.msra.mxu0 %v493
  %649 = vmatprep.subr.bf16.mxu0 0
  %650 = vmatpush1.bf16.msra.mxu0 %v494
  %651 = vmatprep.subr.bf16.mxu0 0
  %652 = vmatpush1.bf16.msra.mxu0 %v495
  %653 = vmatprep.subr.bf16.mxu0 0
  %654 = vmatpush1.bf16.msra.mxu0 %v496
  %655 = vmatprep.subr.bf16.mxu0 0
  %656 = vmatpush1.bf16.msra.mxu0 %v497
  %657 = vmatprep.subr.bf16.mxu0 0
  %658 = vmatpush1.bf16.msra.mxu0 %v498
  %659 = vmatprep.subr.bf16.mxu0 0
  %660 = vmatpush1.bf16.msra.mxu0 %v499
  %661 = vmatprep.subr.bf16.mxu0 0
  %662 = vmatpush1.bf16.msra.mxu0 %v500
  %663 = vmatprep.subr.bf16.mxu0 0
  %664 = vmatpush1.bf16.msra.mxu0 %v501
  %665 = vmatprep.subr.bf16.mxu0 0
  %666 = vmatpush1.bf16.msra.mxu0 %v502
  %667 = vmatprep.subr.bf16.mxu0 0
  %668 = vmatpush1.bf16.msra.mxu0 %v503
  %669 = vmatprep.subr.bf16.mxu0 0
  %670 = vmatpush1.bf16.msra.mxu0 %v504
  %671 = vmatprep.subr.bf16.mxu0 0
  %672 = vmatpush1.bf16.msra.mxu0 %v505
  %673 = vmatprep.subr.bf16.mxu0 0
  %674 = vmatpush1.bf16.msra.mxu0 %v506
  %675 = vmatprep.mubr.bf16.mxu0 %v248
  %676 = vmatmul.mubr.bf16.gmra.mrb[0].mxu0 %v247
  %v677 = vpop.f32.mrb[0].mxu0
  %v678 = vadd.f32 %v590, %v677
  %v679 = vpop.f32.mrb[0].mxu0
  %v680 = vpop.f32.mrb[0].mxu0
  %v681 = vadd.f32 %v593, %v680
  %v682 = vpop.f32.mrb[0].mxu0
  %683 = vmatprep.mubr.bf16.mxu0 %v253
  %684 = vmatmul.mubr.bf16.gmra.mrb[0].mxu0 %v252
  %v685 = vpop.f32.mrb[0].mxu0
  %v686 = vadd.f32 %v598, %v685
  %v687 = vpop.f32.mrb[0].mxu0
  %v688 = vpop.f32.mrb[0].mxu0
  %v689 = vadd.f32 %v601, %v688
  %v690 = vpop.f32.mrb[0].mxu0
  %691 = vmatprep.mubr.bf16.mxu0 %v258
  %692 = vmatmul.mubr.bf16.gmra.mrb[0].mxu0 %v257
  %v693 = vpop.f32.mrb[0].mxu0
  %v694 = vadd.f32 %v606, %v693
  %v695 = vpop.f32.mrb[0].mxu0
  %v696 = vpop.f32.mrb[0].mxu0
  %v697 = vadd.f32 %v609, %v696
  %v698 = vpop.f32.mrb[0].mxu0
  %699 = vmatprep.mubr.bf16.mxu0 %v263
  %700 = vmatmul.mubr.bf16.gmra.mrb[0].mxu0 %v262
  %v701 = vpop.f32.mrb[0].mxu0
  %v702 = vadd.f32 %v614, %v701
  %v703 = vpop.f32.mrb[0].mxu0
  %v704 = vpop.f32.mrb[0].mxu0
  %v705 = vadd.f32 %v617, %v704
  %v706 = vpop.f32.mrb[0].mxu0
  %707 = vmatprep.mubr.bf16.mxu0 %v268
  %708 = vmatmul.mubr.bf16.gmra.mrb[0].mxu0 %v267
  %v709 = vpop.f32.mrb[0].mxu0
  %v710 = vadd.f32 %v622, %v709
  %v711 = vpop.f32.mrb[0].mxu0
  %v712 = vpop.f32.mrb[0].mxu0
  %v713 = vadd.f32 %v625, %v712
  %v714 = vpop.f32.mrb[0].mxu0
  %715 = vmatprep.mubr.bf16.mxu0 %v273
  %716 = vmatmul.mubr.bf16.gmra.mrb[0].mxu0 %v272
  %v717 = vpop.f32.mrb[0].mxu0
  %v718 = vadd.f32 %v630, %v717
  %v719 = vpop.f32.mrb[0].mxu0
  %v720 = vpop.f32.mrb[0].mxu0
  %v721 = vadd.f32 %v633, %v720
  %v722 = vpop.f32.mrb[0].mxu0
  %723 = vmatprep.mubr.bf16.mxu0 %v278
  %724 = vmatmul.mubr.bf16.gmra.mrb[0].mxu0 %v277
  %v725 = vpop.f32.mrb[0].mxu0
  %v726 = vadd.f32 %v638, %v725
  %v727 = vpop.f32.mrb[0].mxu0
  %v728 = vpop.f32.mrb[0].mxu0
  %v729 = vpop.f32.mrb[0].mxu0
  %730 = vdwg.mxu0
  %731 = vmatprep.subr.bf16.mxu0 0
  %732 = vmatpush1.bf16.msra.mxu0 %v507
  %733 = vmatprep.subr.bf16.mxu0 0
  %734 = vmatpush1.bf16.msra.mxu0 %v508
  %735 = vmatprep.subr.bf16.mxu0 0
  %736 = vmatpush1.bf16.msra.mxu0 %v509
  %737 = vmatprep.subr.bf16.mxu0 0
  %738 = vmatpush1.bf16.msra.mxu0 %v510
  %739 = vmatprep.subr.bf16.mxu0 0
  %740 = vmatpush1.bf16.msra.mxu0 %v511
  %741 = vmatprep.subr.bf16.mxu0 0
  %742 = vmatpush1.bf16.msra.mxu0 %v512
  %743 = vmatprep.subr.bf16.mxu0 0
  %744 = vmatpush1.bf16.msra.mxu0 %v513
  %745 = vmatprep.subr.bf16.mxu0 0
  %746 = vmatpush1.bf16.msra.mxu0 %v514
  %747 = vmatprep.subr.bf16.mxu0 0
  %748 = vmatpush1.bf16.msra.mxu0 0
  %749 = vmatprep.subr.bf16.mxu0 0
  %750 = vmatpush1.bf16.msra.mxu0 0
  %751 = vmatprep.subr.bf16.mxu0 0
  %752 = vmatpush1.bf16.msra.mxu0 0
  %753 = vmatprep.subr.bf16.mxu0 0
  %754 = vmatpush1.bf16.msra.mxu0 0
  %755 = vmatprep.subr.bf16.mxu0 0
  %756 = vmatpush1.bf16.msra.mxu0 0
  %757 = vmatprep.subr.bf16.mxu0 0
  %758 = vmatpush1.bf16.msra.mxu0 0
  %759 = vmatprep.subr.bf16.mxu0 0
  %760 = vmatpush1.bf16.msra.mxu0 0
  %761 = vmatprep.subr.bf16.mxu0 0
  %762 = vmatpush1.bf16.msra.mxu0 0
  %763 = vmatprep.mubr.bf16.mxu0 0
  %764 = vmatmul.mubr.bf16.gmra.mrb[0].mxu0 %v249
  %v765 = vpop.f32.mrb[0].mxu0
  %v766 = vadd.f32 %v678, %v765
  %v767 = vpop.f32.mrb[0].mxu0
  %v768 = vpop.f32.mrb[0].mxu0
  %v769 = vadd.f32 %v681, %v768
  %v770 = vpop.f32.mrb[0].mxu0
  %771 = vmatprep.mubr.bf16.mxu0 0
  %772 = vmatmul.mubr.bf16.gmra.mrb[0].mxu0 %v254
  %v773 = vpop.f32.mrb[0].mxu0
  %v774 = vadd.f32 %v686, %v773
  %v775 = vpop.f32.mrb[0].mxu0
  %v776 = vpop.f32.mrb[0].mxu0
  %v777 = vadd.f32 %v689, %v776
  %v778 = vpop.f32.mrb[0].mxu0
  %779 = vmatprep.mubr.bf16.mxu0 0
  %780 = vmatmul.mubr.bf16.gmra.mrb[0].mxu0 %v259
  %v781 = vpop.f32.mrb[0].mxu0
  %v782 = vadd.f32 %v694, %v781
  %v783 = vpop.f32.mrb[0].mxu0
  %v784 = vpop.f32.mrb[0].mxu0
  %v785 = vadd.f32 %v697, %v784
  %v786 = vpop.f32.mrb[0].mxu0
  %787 = vmatprep.mubr.bf16.mxu0 0
  %788 = vmatmul.mubr.bf16.gmra.mrb[0].mxu0 %v264
  %v789 = vpop.f32.mrb[0].mxu0
  %v790 = vadd.f32 %v702, %v789
  %v791 = vpop.f32.mrb[0].mxu0
  %v792 = vpop.f32.mrb[0].mxu0
  %v793 = vadd.f32 %v705, %v792
  %v794 = vpop.f32.mrb[0].mxu0
  %795 = vmatprep.mubr.bf16.mxu0 0
  %796 = vmatmul.mubr.bf16.gmra.mrb[0].mxu0 %v269
  %v797 = vpop.f32.mrb[0].mxu0
  %v798 = vadd.f32 %v710, %v797
  %v799 = vpop.f32.mrb[0].mxu0
  %v800 = vpop.f32.mrb[0].mxu0
  %v801 = vadd.f32 %v713, %v800
  %v802 = vpop.f32.mrb[0].mxu0
  %803 = vmatprep.mubr.bf16.mxu0 0
  %804 = vmatmul.mubr.bf16.gmra.mrb[0].mxu0 %v274
  %v805 = vpop.f32.mrb[0].mxu0
  %v806 = vadd.f32 %v718, %v805
  %v807 = vpop.f32.mrb[0].mxu0
  %v808 = vpop.f32.mrb[0].mxu0
  %v809 = vadd.f32 %v721, %v808
  %v810 = vpop.f32.mrb[0].mxu0
  %811 = vmatprep.mubr.bf16.mxu0 0
  %812 = vmatmul.mubr.bf16.gmra.mrb[0].mxu0 %v279
  %v813 = vpop.f32.mrb[0].mxu0
  %v814 = vadd.f32 %v726, %v813
  %v815 = vpop.f32.mrb[0].mxu0
  %v816 = vpop.f32.mrb[0].mxu0
  %v817 = vpop.f32.mrb[0].mxu0
  %818 = vdwg.mxu0
  %v819 = vmul.f32 %v766, 0.01
  %v820 = vmul.f32 %v769, 0.01
  %v821 = vmul.f32 %v774, 0.01
  %v822 = vmul.f32 %v777, 0.01
  %v823 = vmul.f32 %v782, 0.01
  %v824 = vmul.f32 %v785, 0.01
  %v825 = vmul.f32 %v790, 0.01
  %v826 = vmul.f32 %v793, 0.01
  %v827 = vmul.f32 %v798, 0.01
  %v828 = vmul.f32 %v801, 0.01
  %v829 = vmul.f32 %v806, 0.01
  %v830 = vmul.f32 %v809, 0.01
  %v831 = vmul.f32 %v814, 0.01
  %v832 = vmax.f32 %v766, %v819
  %v833 = vmax.f32 %v769, %v820
  %v834 = vmax.f32 %v774, %v821
  %v835 = vmax.f32 %v777, %v822
  %v836 = vmax.f32 %v782, %v823
  %v837 = vmax.f32 %v785, %v824
  %v838 = vmax.f32 %v790, %v825
  %v839 = vmax.f32 %v793, %v826
  %v840 = vmax.f32 %v798, %v827
  %v841 = vmax.f32 %v801, %v828
  %v842 = vmax.f32 %v806, %v829
  %v843 = vmax.f32 %v809, %v830
  %v844 = vmax.f32 %v814, %v831
  %v845 = vpack.c.bf16 %v833, %v832
  %v846 = vpack.c.bf16 %v835, %v834
  %v847 = vpack.c.bf16 %v837, %v836
  %v848 = vpack.c.bf16 %v839, %v838
  %v849 = vpack.c.bf16 %v841, %v840
  %v850 = vpack.c.bf16 %v843, %v842
  %v851 = vpack.c.bf16 %v844, %v844
  %v859 = vunpack.c.l.b16 %v845
  %v860 = vunpack.c.h.b16 %v845
  %v861 = vunpack.c.l.b16 %v846
  %v862 = vunpack.c.h.b16 %v846
  %v863 = vunpack.c.l.b16 %v847
  %v864 = vunpack.c.h.b16 %v847
  %v865 = vunpack.c.l.b16 %v848
  %v866 = vunpack.c.h.b16 %v848
  %v867 = vunpack.c.l.b16 %v849
  %v868 = vunpack.c.h.b16 %v849
  %v869 = vunpack.c.l.b16 %v850
  %v870 = vunpack.c.h.b16 %v850
  %v871 = vunpack.c.l.b16 %v851
  %v872 = vpack.c.b16 %v859, %v859
  %v873 = vpack.c.b16 %v860, %v860
  %v874 = vpack.c.b16 %v861, %v861
  %v875 = vpack.c.b16 %v862, %v862
  %v876 = vpack.c.b16 %v863, %v863
  %v877 = vpack.c.b16 %v864, %v864
  %v878 = vpack.c.b16 %v865, %v865
  %v879 = vpack.c.b16 %v866, %v866
  %v880 = vpack.c.b16 %v867, %v867
  %v881 = vpack.c.b16 %v868, %v868
  %v882 = vpack.c.b16 %v869, %v869
  %v883 = vpack.c.b16 %v870, %v870
  %v884 = vpack.c.b16 %v871, %v871
  %898 = vst [vmem:[%s3] sm:$0xf] %v872
  %899 = vst [vmem:[%s3 + $0x4] sm:$0xf] %v873
  %900 = vst [vmem:[%s3 + $0x8] sm:$0xf] %v874
  %901 = vst [vmem:[%s3 + $0xc] sm:$0xf] %v875
  %902 = vst [vmem:[%s3 + $0x10] sm:$0xf] %v876
  %903 = vst [vmem:[%s3 + $0x14] sm:$0xf] %v877
  %904 = vst [vmem:[%s3 + $0x18] sm:$0xf] %v878
  %905 = vst [vmem:[%s3 + $0x1c] sm:$0xf] %v879
  %906 = vst [vmem:[%s3 + $0x20] sm:$0xf] %v880
  %907 = vst [vmem:[%s3 + $0x24] sm:$0xf] %v881
  %908 = vst [vmem:[%s3 + $0x28] sm:$0xf] %v882
  %909 = vst [vmem:[%s3 + $0x2c] sm:$0xf] %v883
  %910 = vst [vmem:[%s3 + $0x30] sm:$0xf] %v884
  // Predicated region
  $region14: #{cnn_state_encoder_forward.6} parent=0 // pred_check
    _
  $region15: #{cnn_state_encoder_forward.6} parent=0 // pred_check_branch
    %912 = sbr.rel (0) target = $region17
  $region16: #{cnn_state_encoder_forward.6} parent=0 // pred_region
    _
  $region17: #{cnn_state_encoder_forward.6} parent=0 // pred_fallthru
    _
  // Predicated region
  $region18: #{cnn_state_encoder_forward.6} parent=0 // pred_check
    _
  $region19: #{cnn_state_encoder_forward.6} parent=0 // pred_check_branch
    %914 = sbr.rel (0) target = $region21
  $region20: #{cnn_state_encoder_forward.6} parent=0 // pred_region
    _
  $region21: #{cnn_state_encoder_forward.6} parent=0 // pred_fallthru
    _

// kernel: cnn_state_encoder_forward.7
$region0: #{cnn_state_encoder_forward.7}
  #allocation0 [shape = 'u32[]', space=smem, size = 0x4, offset = 0x4, fixed_abs, tag = 'smem constant byte address 0x4 - core index']
  #allocation1 [shape = 'u32[144,128]{1,0:T(1,128)}', space=vmem, size = 0x12000, scoped, tag = 'internal scratch']
  %s0 = inlined_call_operand.vmem [shape: bf16[8,3200], index: 0, kind: input, shape index: {}]
  %s1 = inlined_call_operand.vmem [shape: bf16[3200,128], index: 1, kind: input, shape index: {}]
  %s2 = inlined_call_operand.vmem [shape: f32[1,128], index: 2, kind: input, shape index: {}]
  %s3 = inlined_call_operand.vmem [shape: f32[8,128], index: 3, kind: output, shape index: {}]
  %s4 = sld [smem:[#allocation0]]
  $region22: #{cnn_state_encoder_forward.7} parent=0
    _
  %s6 = ssub.s32 1, %s4
  %s7 = scalar_select 0, %s6, %s4
  // Predicated region
  $region2: #{cnn_state_encoder_forward.7} parent=0 // pred_check
    _
  $region3: #{cnn_state_encoder_forward.7} parent=0 // pred_check_branch
    %9 = sbr.rel (0) target = $region5
  $region4: #{cnn_state_encoder_forward.7} parent=0 // pred_region
    _
  $region5: #{cnn_state_encoder_forward.7} parent=0 // pred_fallthru
    _
  // Predicated region
  $region6: #{cnn_state_encoder_forward.7} parent=0 // pred_check
    _
  $region7: #{cnn_state_encoder_forward.7} parent=0 // pred_check_branch
    %11 = sbr.rel (0) target = $region9
  $region8: #{cnn_state_encoder_forward.7} parent=0 // pred_region
    _
  $region9: #{cnn_state_encoder_forward.7} parent=0 // pred_fallthru
    _
  // Predicated region
  $region10: #{cnn_state_encoder_forward.7} parent=0 // pred_check
    _
  $region11: #{cnn_state_encoder_forward.7} parent=0 // pred_check_branch
    %13 = sbr.rel (0) target = $region13
  $region12: #{cnn_state_encoder_forward.7} parent=0 // pred_region
    _
  $region13: #{cnn_state_encoder_forward.7} parent=0 // pred_fallthru
    _
  %v15 = vld [vmem:[%s0] sm:$0xff]
  %v16 = vld [vmem:[%s0 + $0x8] sm:$0xff]
  %v17 = vld [vmem:[%s0 + $0x10] sm:$0xff]
  %v18 = vld [vmem:[%s0 + $0x18] sm:$0xff]
  %v19 = vld [vmem:[%s0 + $0x20] sm:$0xff]
  %v20 = vld [vmem:[%s0 + $0x28] sm:$0xff]
  %v21 = vld [vmem:[%s0 + $0x30] sm:$0xff]
  %v22 = vld [vmem:[%s0 + $0x38] sm:$0xff]
  %v23 = vld [vmem:[%s0 + $0x40] sm:$0xff]
  %v24 = vld [vmem:[%s0 + $0x48] sm:$0xff]
  %v25 = vld [vmem:[%s0 + $0x50] sm:$0xff]
  %v26 = vld [vmem:[%s0 + $0x58] sm:$0xff]
  %v27 = vld [vmem:[%s0 + $0x60] sm:$0xf]
  %v28 = vld [vmem:[%s1] sm:$0xf]
  %v29 = vld [vmem:[%s1 + $0x4] sm:$0xf]
  %v30 = vld [vmem:[%s1 + $0x8] sm:$0xf]
  %v31 = vld [vmem:[%s1 + $0xc] sm:$0xf]
  %v32 = vld [vmem:[%s1 + $0x10] sm:$0xf]
  %v33 = vld [vmem:[%s1 + $0x14] sm:$0xf]
  %v34 = vld [vmem:[%s1 + $0x18] sm:$0xf]
  %v35 = vld [vmem:[%s1 + $0x1c] sm:$0xf]
  %v36 = vld [vmem:[%s1 + $0x20] sm:$0xf]
  %v37 = vld [vmem:[%s1 + $0x24] sm:$0xf]
  %v38 = vld [vmem:[%s1 + $0x28] sm:$0xf]
  %v39 = vld [vmem:[%s1 + $0x2c] sm:$0xf]
  %v40 = vld [vmem:[%s1 + $0x30] sm:$0xf]
  %v41 = vld [vmem:[%s1 + $0x34] sm:$0xf]
  %v42 = vld [vmem:[%s1 + $0x38] sm:$0xf]
  %v43 = vld [vmem:[%s1 + $0x3c] sm:$0xf]
  %v44 = vld [vmem:[%s1 + $0x40] sm:$0xf]
  %v45 = vld [vmem:[%s1 + $0x44] sm:$0xf]
  %v46 = vld [vmem:[%s1 + $0x48] sm:$0xf]
  %v47 = vld [vmem:[%s1 + $0x4c] sm:$0xf]
  %v48 = vld [vmem:[%s1 + $0x50] sm:$0xf]
  %v49 = vld [vmem:[%s1 + $0x54] sm:$0xf]
  %v50 = vld [vmem:[%s1 + $0x58] sm:$0xf]
  %v51 = vld [vmem:[%s1 + $0x5c] sm:$0xf]
  %v52 = vld [vmem:[%s1 + $0x60] sm:$0xf]
  %v53 = vld [vmem:[%s1 + $0x64] sm:$0xf]
  %v54 = vld [vmem:[%s1 + $0x68] sm:$0xf]
  %v55 = vld [vmem:[%s1 + $0x6c] sm:$0xf]
  %v56 = vld [vmem:[%s1 + $0x70] sm:$0xf]
  %v57 = vld [vmem:[%s1 + $0x74] sm:$0xf]
  %v58 = vld [vmem:[%s1 + $0x78] sm:$0xf]
  %v59 = vld [vmem:[%s1 + $0x7c] sm:$0xf]
  %v60 = vld [vmem:[%s1 + $0x80] sm:$0xf]
  %v61 = vld [vmem:[%s1 + $0x84] sm:$0xf]
  %v62 = vld [vmem:[%s1 + $0x88] sm:$0xf]
  %v63 = vld [vmem:[%s1 + $0x8c] sm:$0xf]
  %v64 = vld [vmem:[%s1 + $0x90] sm:$0xf]
  %v65 = vld [vmem:[%s1 + $0x94] sm:$0xf]
  %v66 = vld [vmem:[%s1 + $0x98] sm:$0xf]
  %v67 = vld [vmem:[%s1 + $0x9c] sm:$0xf]
  %v68 = vld [vmem:[%s1 + $0xa0] sm:$0xf]
  %v69 = vld [vmem:[%s1 + $0xa4] sm:$0xf]
  %v70 = vld [vmem:[%s1 + $0xa8] sm:$0xf]
  %v71 = vld [vmem:[%s1 + $0xac] sm:$0xf]
  %v72 = vld [vmem:[%s1 + $0xb0] sm:$0xf]
  %v73 = vld [vmem:[%s1 + $0xb4] sm:$0xf]
  %v74 = vld [vmem:[%s1 + $0xb8] sm:$0xf]
  %v75 = vld [vmem:[%s1 + $0xbc] sm:$0xf]
  %v76 = vld [vmem:[%s1 + $0xc0] sm:$0xf]
  %v77 = vld [vmem:[%s1 + $0xc4] sm:$0xf]
  %v78 = vld [vmem:[%s1 + $0xc8] sm:$0xf]
  %v79 = vld [vmem:[%s1 + $0xcc] sm:$0xf]
  %v80 = vld [vmem:[%s1 + $0xd0] sm:$0xf]
  %v81 = vld [vmem:[%s1 + $0xd4] sm:$0xf]
  %v82 = vld [vmem:[%s1 + $0xd8] sm:$0xf]
  %v83 = vld [vmem:[%s1 + $0xdc] sm:$0xf]
  %v84 = vld [vmem:[%s1 + $0xe0] sm:$0xf]
  %v85 = vld [vmem:[%s1 + $0xe4] sm:$0xf]
  %v86 = vld [vmem:[%s1 + $0xe8] sm:$0xf]
  %v87 = vld [vmem:[%s1 + $0xec] sm:$0xf]
  %v88 = vld [vmem:[%s1 + $0xf0] sm:$0xf]
  %v89 = vld [vmem:[%s1 + $0xf4] sm:$0xf]
  %v90 = vld [vmem:[%s1 + $0xf8] sm:$0xf]
  %v91 = vld [vmem:[%s1 + $0xfc] sm:$0xf]
  %v92 = vld [vmem:[%s1 + $0x100] sm:$0xf]
  %v93 = vld [vmem:[%s1 + $0x104] sm:$0xf]
  %v94 = vld [vmem:[%s1 + $0x108] sm:$0xf]
  %v95 = vld [vmem:[%s1 + $0x10c] sm:$0xf]
  %v96 = vld [vmem:[%s1 + $0x110] sm:$0xf]
  %v97 = vld [vmem:[%s1 + $0x114] sm:$0xf]
  %v98 = vld [vmem:[%s1 + $0x118] sm:$0xf]
  %v99 = vld [vmem:[%s1 + $0x11c] sm:$0xf]
  %v100 = vld [vmem:[%s1 + $0x120] sm:$0xf]
  %v101 = vld [vmem:[%s1 + $0x124] sm:$0xf]
  %v102 = vld [vmem:[%s1 + $0x128] sm:$0xf]
  %v103 = vld [vmem:[%s1 + $0x12c] sm:$0xf]
  %v104 = vld [vmem:[%s1 + $0x130] sm:$0xf]
  %v105 = vld [vmem:[%s1 + $0x134] sm:$0xf]
  %v106 = vld [vmem:[%s1 + $0x138] sm:$0xf]
  %v107 = vld [vmem:[%s1 + $0x13c] sm:$0xf]
  %v108 = vld [vmem:[%s1 + $0x140] sm:$0xf]
  %v109 = vld [vmem:[%s1 + $0x144] sm:$0xf]
  %v110 = vld [vmem:[%s1 + $0x148] sm:$0xf]
  %v111 = vld [vmem:[%s1 + $0x14c] sm:$0xf]
  %v112 = vld [vmem:[%s1 + $0x150] sm:$0xf]
  %v113 = vld [vmem:[%s1 + $0x154] sm:$0xf]
  %v114 = vld [vmem:[%s1 + $0x158] sm:$0xf]
  %v115 = vld [vmem:[%s1 + $0x15c] sm:$0xf]
  %v116 = vld [vmem:[%s1 + $0x160] sm:$0xf]
  %v117 = vld [vmem:[%s1 + $0x164] sm:$0xf]
  %v118 = vld [vmem:[%s1 + $0x168] sm:$0xf]
  %v119 = vld [vmem:[%s1 + $0x16c] sm:$0xf]
  %v120 = vld [vmem:[%s1 + $0x170] sm:$0xf]
  %v121 = vld [vmem:[%s1 + $0x174] sm:$0xf]
  %v122 = vld [vmem:[%s1 + $0x178] sm:$0xf]
  %v123 = vld [vmem:[%s1 + $0x17c] sm:$0xf]
  %v124 = vld [vmem:[%s1 + $0x180] sm:$0xf]
  %v125 = vld [vmem:[%s1 + $0x184] sm:$0xf]
  %v126 = vld [vmem:[%s1 + $0x188] sm:$0xf]
  %v127 = vld [vmem:[%s1 + $0x18c] sm:$0xf]
  %v128 = vld [vmem:[%s1 + $0x190] sm:$0xf]
  %v129 = vld [vmem:[%s1 + $0x194] sm:$0xf]
  %v130 = vld [vmem:[%s1 + $0x198] sm:$0xf]
  %v131 = vld [vmem:[%s1 + $0x19c] sm:$0xf]
  %v132 = vld [vmem:[%s1 + $0x1a0] sm:$0xf]
  %v133 = vld [vmem:[%s1 + $0x1a4] sm:$0xf]
  %v134 = vld [vmem:[%s1 + $0x1a8] sm:$0xf]
  %v135 = vld [vmem:[%s1 + $0x1ac] sm:$0xf]
  %v136 = vld [vmem:[%s1 + $0x1b0] sm:$0xf]
  %v137 = vld [vmem:[%s1 + $0x1b4] sm:$0xf]
  %v138 = vld [vmem:[%s1 + $0x1b8] sm:$0xf]
  %v139 = vld [vmem:[%s1 + $0x1bc] sm:$0xf]
  %v140 = vld [vmem:[%s1 + $0x1c0] sm:$0xf]
  %v141 = vld [vmem:[%s1 + $0x1c4] sm:$0xf]
  %v142 = vld [vmem:[%s1 + $0x1c8] sm:$0xf]
  %v143 = vld [vmem:[%s1 + $0x1cc] sm:$0xf]
  %v144 = vld [vmem:[%s1 + $0x1d0] sm:$0xf]
  %v145 = vld [vmem:[%s1 + $0x1d4] sm:$0xf]
  %v146 = vld [vmem:[%s1 + $0x1d8] sm:$0xf]
  %v147 = vld [vmem:[%s1 + $0x1dc] sm:$0xf]
  %v148 = vld [vmem:[%s1 + $0x1e0] sm:$0xf]
  %v149 = vld [vmem:[%s1 + $0x1e4] sm:$0xf]
  %v150 = vld [vmem:[%s1 + $0x1e8] sm:$0xf]
  %v151 = vld [vmem:[%s1 + $0x1ec] sm:$0xf]
  %v152 = vld [vmem:[%s1 + $0x1f0] sm:$0xf]
  %v153 = vld [vmem:[%s1 + $0x1f4] sm:$0xf]
  %v154 = vld [vmem:[%s1 + $0x1f8] sm:$0xf]
  %v155 = vld [vmem:[%s1 + $0x1fc] sm:$0xf]
  %v156 = vld [vmem:[%s1 + $0x200] sm:$0xf]
  %v157 = vld [vmem:[%s1 + $0x204] sm:$0xf]
  %v158 = vld [vmem:[%s1 + $0x208] sm:$0xf]
  %v159 = vld [vmem:[%s1 + $0x20c] sm:$0xf]
  %v160 = vld [vmem:[%s1 + $0x210] sm:$0xf]
  %v161 = vld [vmem:[%s1 + $0x214] sm:$0xf]
  %v162 = vld [vmem:[%s1 + $0x218] sm:$0xf]
  %v163 = vld [vmem:[%s1 + $0x21c] sm:$0xf]
  %v164 = vld [vmem:[%s1 + $0x220] sm:$0xf]
  %v165 = vld [vmem:[%s1 + $0x224] sm:$0xf]
  %v166 = vld [vmem:[%s1 + $0x228] sm:$0xf]
  %v167 = vld [vmem:[%s1 + $0x22c] sm:$0xf]
  %v168 = vld [vmem:[%s1 + $0x230] sm:$0xf]
  %v169 = vld [vmem:[%s1 + $0x234] sm:$0xf]
  %v170 = vld [vmem:[%s1 + $0x238] sm:$0xf]
  %v171 = vld [vmem:[%s1 + $0x23c] sm:$0xf]
  %v172 = vld [vmem:[%s1 + $0x240] sm:$0xf]
  %v173 = vld [vmem:[%s1 + $0x244] sm:$0xf]
  %v174 = vld [vmem:[%s1 + $0x248] sm:$0xf]
  %v175 = vld [vmem:[%s1 + $0x24c] sm:$0xf]
  %v176 = vld [vmem:[%s1 + $0x250] sm:$0xf]
  %v177 = vld [vmem:[%s1 + $0x254] sm:$0xf]
  %v178 = vld [vmem:[%s1 + $0x258] sm:$0xf]
  %v179 = vld [vmem:[%s1 + $0x25c] sm:$0xf]
  %v180 = vld [vmem:[%s1 + $0x260] sm:$0xf]
  %v181 = vld [vmem:[%s1 + $0x264] sm:$0xf]
  %v182 = vld [vmem:[%s1 + $0x268] sm:$0xf]
  %v183 = vld [vmem:[%s1 + $0x26c] sm:$0xf]
  %v184 = vld [vmem:[%s1 + $0x270] sm:$0xf]
  %v185 = vld [vmem:[%s1 + $0x274] sm:$0xf]
  %v186 = vld [vmem:[%s1 + $0x278] sm:$0xf]
  %v187 = vld [vmem:[%s1 + $0x27c] sm:$0xf]
  %v188 = vld [vmem:[%s1 + $0x280] sm:$0xf]
  %v189 = vld [vmem:[%s1 + $0x284] sm:$0xf]
  %v190 = vld [vmem:[%s1 + $0x288] sm:$0xf]
  %v191 = vld [vmem:[%s1 + $0x28c] sm:$0xf]
  %v192 = vld [vmem:[%s1 + $0x290] sm:$0xf]
  %v193 = vld [vmem:[%s1 + $0x294] sm:$0xf]
  %v194 = vld [vmem:[%s1 + $0x298] sm:$0xf]
  %v195 = vld [vmem:[%s1 + $0x29c] sm:$0xf]
  %v196 = vld [vmem:[%s1 + $0x2a0] sm:$0xf]
  %v197 = vld [vmem:[%s1 + $0x2a4] sm:$0xf]
  %v198 = vld [vmem:[%s1 + $0x2a8] sm:$0xf]
  %v199 = vld [vmem:[%s1 + $0x2ac] sm:$0xf]
  %v200 = vld [vmem:[%s1 + $0x2b0] sm:$0xf]
  %v201 = vld [vmem:[%s1 + $0x2b4] sm:$0xf]
  %v202 = vld [vmem:[%s1 + $0x2b8] sm:$0xf]
  %v203 = vld [vmem:[%s1 + $0x2bc] sm:$0xf]
  %v204 = vld [vmem:[%s1 + $0x2c0] sm:$0xf]
  %v205 = vld [vmem:[%s1 + $0x2c4] sm:$0xf]
  %v206 = vld [vmem:[%s1 + $0x2c8] sm:$0xf]
  %v207 = vld [vmem:[%s1 + $0x2cc] sm:$0xf]
  %v208 = vld [vmem:[%s1 + $0x2d0] sm:$0xf]
  %v209 = vld [vmem:[%s1 + $0x2d4] sm:$0xf]
  %v210 = vld [vmem:[%s1 + $0x2d8] sm:$0xf]
  %v211 = vld [vmem:[%s1 + $0x2dc] sm:$0xf]
  %v212 = vld [vmem:[%s1 + $0x2e0] sm:$0xf]
  %v213 = vld [vmem:[%s1 + $0x2e4] sm:$0xf]
  %v214 = vld [vmem:[%s1 + $0x2e8] sm:$0xf]
  %v215 = vld [vmem:[%s1 + $0x2ec] sm:$0xf]
  %v216 = vld [vmem:[%s1 + $0x2f0] sm:$0xf]
  %v217 = vld [vmem:[%s1 + $0x2f4] sm:$0xf]
  %v218 = vld [vmem:[%s1 + $0x2f8] sm:$0xf]
  %v219 = vld [vmem:[%s1 + $0x2fc] sm:$0xf]
  %v220 = vld [vmem:[%s1 + $0x300] sm:$0xf]
  %v221 = vld [vmem:[%s1 + $0x304] sm:$0xf]
  %v222 = vld [vmem:[%s1 + $0x308] sm:$0xf]
  %v223 = vld [vmem:[%s1 + $0x30c] sm:$0xf]
  %v224 = vld [vmem:[%s1 + $0x310] sm:$0xf]
  %v225 = vld [vmem:[%s1 + $0x314] sm:$0xf]
  %v226 = vld [vmem:[%s1 + $0x318] sm:$0xf]
  %v227 = vld [vmem:[%s1 + $0x31c] sm:$0xf]
  %v228 = vld [vmem:[%s1 + $0x320] sm:$0xf]
  %v229 = vld [vmem:[%s1 + $0x324] sm:$0xf]
  %v230 = vld [vmem:[%s1 + $0x328] sm:$0xf]
  %v231 = vld [vmem:[%s1 + $0x32c] sm:$0xf]
  %v232 = vld [vmem:[%s1 + $0x330] sm:$0xf]
  %v233 = vld [vmem:[%s1 + $0x334] sm:$0xf]
  %v234 = vld [vmem:[%s1 + $0x338] sm:$0xf]
  %v235 = vld [vmem:[%s1 + $0x33c] sm:$0xf]
  %v236 = vld [vmem:[%s1 + $0x340] sm:$0xf]
  %v237 = vld [vmem:[%s1 + $0x344] sm:$0xf]
  %v238 = vld [vmem:[%s1 + $0x348] sm:$0xf]
  %v239 = vld [vmem:[%s1 + $0x34c] sm:$0xf]
  %v240 = vld [vmem:[%s1 + $0x350] sm:$0xf]
  %v241 = vld [vmem:[%s1 + $0x354] sm:$0xf]
  %v242 = vld [vmem:[%s1 + $0x358] sm:$0xf]
  %v243 = vld [vmem:[%s1 + $0x35c] sm:$0xf]
  %v244 = vld [vmem:[%s1 + $0x360] sm:$0xf]
  %v245 = vld [vmem:[%s1 + $0x364] sm:$0xf]
  %v246 = vld [vmem:[%s1 + $0x368] sm:$0xf]
  %v247 = vld [vmem:[%s1 + $0x36c] sm:$0xf]
  %v248 = vld [vmem:[%s1 + $0x370] sm:$0xf]
  %v249 = vld [vmem:[%s1 + $0x374] sm:$0xf]
  %v250 = vld [vmem:[%s1 + $0x378] sm:$0xf]
  %v251 = vld [vmem:[%s1 + $0x37c] sm:$0xf]
  %v252 = vld [vmem:[%s1 + $0x380] sm:$0xf]
  %v253 = vld [vmem:[%s1 + $0x384] sm:$0xf]
  %v254 = vld [vmem:[%s1 + $0x388] sm:$0xf]
  %v255 = vld [vmem:[%s1 + $0x38c] sm:$0xf]
  %v256 = vld [vmem:[%s1 + $0x390] sm:$0xf]
  %v257 = vld [vmem:[%s1 + $0x394] sm:$0xf]
  %v258 = vld [vmem:[%s1 + $0x398] sm:$0xf]
  %v259 = vld [vmem:[%s1 + $0x39c] sm:$0xf]
  %v260 = vld [vmem:[%s1 + $0x3a0] sm:$0xf]
  %v261 = vld [vmem:[%s1 + $0x3a4] sm:$0xf]
  %v262 = vld [vmem:[%s1 + $0x3a8] sm:$0xf]
  %v263 = vld [vmem:[%s1 + $0x3ac] sm:$0xf]
  %v264 = vld [vmem:[%s1 + $0x3b0] sm:$0xf]
  %v265 = vld [vmem:[%s1 + $0x3b4] sm:$0xf]
  %v266 = vld [vmem:[%s1 + $0x3b8] sm:$0xf]
  %v267 = vld [vmem:[%s1 + $0x3bc] sm:$0xf]
  %v268 = vld [vmem:[%s1 + $0x3c0] sm:$0xf]
  %v269 = vld [vmem:[%s1 + $0x3c4] sm:$0xf]
  %v270 = vld [vmem:[%s1 + $0x3c8] sm:$0xf]
  %v271 = vld [vmem:[%s1 + $0x3cc] sm:$0xf]
  %v272 = vld [vmem:[%s1 + $0x3d0] sm:$0xf]
  %v273 = vld [vmem:[%s1 + $0x3d4] sm:$0xf]
  %v274 = vld [vmem:[%s1 + $0x3d8] sm:$0xf]
  %v275 = vld [vmem:[%s1 + $0x3dc] sm:$0xf]
  %v276 = vld [vmem:[%s1 + $0x3e0] sm:$0xf]
  %v277 = vld [vmem:[%s1 + $0x3e4] sm:$0xf]
  %v278 = vld [vmem:[%s1 + $0x3e8] sm:$0xf]
  %v279 = vld [vmem:[%s1 + $0x3ec] sm:$0xf]
  %v280 = vld [vmem:[%s1 + $0x3f0] sm:$0xf]
  %v281 = vld [vmem:[%s1 + $0x3f4] sm:$0xf]
  %v282 = vld [vmem:[%s1 + $0x3f8] sm:$0xf]
  %v283 = vld [vmem:[%s1 + $0x3fc] sm:$0xf]
  %v284 = vld [vmem:[%s1 + $0x400] sm:$0xf]
  %v285 = vld [vmem:[%s1 + $0x404] sm:$0xf]
  %v286 = vld [vmem:[%s1 + $0x408] sm:$0xf]
  %v287 = vld [vmem:[%s1 + $0x40c] sm:$0xf]
  %v288 = vld [vmem:[%s1 + $0x410] sm:$0xf]
  %v289 = vld [vmem:[%s1 + $0x414] sm:$0xf]
  %v290 = vld [vmem:[%s1 + $0x418] sm:$0xf]
  %v291 = vld [vmem:[%s1 + $0x41c] sm:$0xf]
  %v292 = vld [vmem:[%s1 + $0x420] sm:$0xf]
  %v293 = vld [vmem:[%s1 + $0x424] sm:$0xf]
  %v294 = vld [vmem:[%s1 + $0x428] sm:$0xf]
  %v295 = vld [vmem:[%s1 + $0x42c] sm:$0xf]
  %v296 = vld [vmem:[%s1 + $0x430] sm:$0xf]
  %v297 = vld [vmem:[%s1 + $0x434] sm:$0xf]
  %v298 = vld [vmem:[%s1 + $0x438] sm:$0xf]
  %v299 = vld [vmem:[%s1 + $0x43c] sm:$0xf]
  %v300 = vld [vmem:[%s1 + $0x440] sm:$0xf]
  %v301 = vld [vmem:[%s1 + $0x444] sm:$0xf]
  %v302 = vld [vmem:[%s1 + $0x448] sm:$0xf]
  %v303 = vld [vmem:[%s1 + $0x44c] sm:$0xf]
  %v304 = vld [vmem:[%s1 + $0x450] sm:$0xf]
  %v305 = vld [vmem:[%s1 + $0x454] sm:$0xf]
  %v306 = vld [vmem:[%s1 + $0x458] sm:$0xf]
  %v307 = vld [vmem:[%s1 + $0x45c] sm:$0xf]
  %v308 = vld [vmem:[%s1 + $0x460] sm:$0xf]
  %v309 = vld [vmem:[%s1 + $0x464] sm:$0xf]
  %v310 = vld [vmem:[%s1 + $0x468] sm:$0xf]
  %v311 = vld [vmem:[%s1 + $0x46c] sm:$0xf]
  %v312 = vld [vmem:[%s1 + $0x470] sm:$0xf]
  %v313 = vld [vmem:[%s1 + $0x474] sm:$0xf]
  %v314 = vld [vmem:[%s1 + $0x478] sm:$0xf]
  %v315 = vld [vmem:[%s1 + $0x47c] sm:$0xf]
  %v316 = vld [vmem:[%s1 + $0x480] sm:$0xf]
  %v317 = vld [vmem:[%s1 + $0x484] sm:$0xf]
  %v318 = vld [vmem:[%s1 + $0x488] sm:$0xf]
  %v319 = vld [vmem:[%s1 + $0x48c] sm:$0xf]
  %v320 = vld [vmem:[%s1 + $0x490] sm:$0xf]
  %v321 = vld [vmem:[%s1 + $0x494] sm:$0xf]
  %v322 = vld [vmem:[%s1 + $0x498] sm:$0xf]
  %v323 = vld [vmem:[%s1 + $0x49c] sm:$0xf]
  %v324 = vld [vmem:[%s1 + $0x4a0] sm:$0xf]
  %v325 = vld [vmem:[%s1 + $0x4a4] sm:$0xf]
  %v326 = vld [vmem:[%s1 + $0x4a8] sm:$0xf]
  %v327 = vld [vmem:[%s1 + $0x4ac] sm:$0xf]
  %v328 = vld [vmem:[%s1 + $0x4b0] sm:$0xf]
  %v329 = vld [vmem:[%s1 + $0x4b4] sm:$0xf]
  %v330 = vld [vmem:[%s1 + $0x4b8] sm:$0xf]
  %v331 = vld [vmem:[%s1 + $0x4bc] sm:$0xf]
  %v332 = vld [vmem:[%s1 + $0x4c0] sm:$0xf]
  %v333 = vld [vmem:[%s1 + $0x4c4] sm:$0xf]
  %v334 = vld [vmem:[%s1 + $0x4c8] sm:$0xf]
  %v335 = vld [vmem:[%s1 + $0x4cc] sm:$0xf]
  %v336 = vld [vmem:[%s1 + $0x4d0] sm:$0xf]
  %v337 = vld [vmem:[%s1 + $0x4d4] sm:$0xf]
  %v338 = vld [vmem:[%s1 + $0x4d8] sm:$0xf]
  %v339 = vld [vmem:[%s1 + $0x4dc] sm:$0xf]
  %v340 = vld [vmem:[%s1 + $0x4e0] sm:$0xf]
  %v341 = vld [vmem:[%s1 + $0x4e4] sm:$0xf]
  %v342 = vld [vmem:[%s1 + $0x4e8] sm:$0xf]
  %v343 = vld [vmem:[%s1 + $0x4ec] sm:$0xf]
  %v344 = vld [vmem:[%s1 + $0x4f0] sm:$0xf]
  %v345 = vld [vmem:[%s1 + $0x4f4] sm:$0xf]
  %v346 = vld [vmem:[%s1 + $0x4f8] sm:$0xf]
  %v347 = vld [vmem:[%s1 + $0x4fc] sm:$0xf]
  %v348 = vld [vmem:[%s1 + $0x500] sm:$0xf]
  %v349 = vld [vmem:[%s1 + $0x504] sm:$0xf]
  %v350 = vld [vmem:[%s1 + $0x508] sm:$0xf]
  %v351 = vld [vmem:[%s1 + $0x50c] sm:$0xf]
  %v352 = vld [vmem:[%s1 + $0x510] sm:$0xf]
  %v353 = vld [vmem:[%s1 + $0x514] sm:$0xf]
  %v354 = vld [vmem:[%s1 + $0x518] sm:$0xf]
  %v355 = vld [vmem:[%s1 + $0x51c] sm:$0xf]
  %v356 = vld [vmem:[%s1 + $0x520] sm:$0xf]
  %v357 = vld [vmem:[%s1 + $0x524] sm:$0xf]
  %v358 = vld [vmem:[%s1 + $0x528] sm:$0xf]
  %v359 = vld [vmem:[%s1 + $0x52c] sm:$0xf]
  %v360 = vld [vmem:[%s1 + $0x530] sm:$0xf]
  %v361 = vld [vmem:[%s1 + $0x534] sm:$0xf]
  %v362 = vld [vmem:[%s1 + $0x538] sm:$0xf]
  %v363 = vld [vmem:[%s1 + $0x53c] sm:$0xf]
  %v364 = vld [vmem:[%s1 + $0x540] sm:$0xf]
  %v365 = vld [vmem:[%s1 + $0x544] sm:$0xf]
  %v366 = vld [vmem:[%s1 + $0x548] sm:$0xf]
  %v367 = vld [vmem:[%s1 + $0x54c] sm:$0xf]
  %v368 = vld [vmem:[%s1 + $0x550] sm:$0xf]
  %v369 = vld [vmem:[%s1 + $0x554] sm:$0xf]
  %v370 = vld [vmem:[%s1 + $0x558] sm:$0xf]
  %v371 = vld [vmem:[%s1 + $0x55c] sm:$0xf]
  %v372 = vld [vmem:[%s1 + $0x560] sm:$0xf]
  %v373 = vld [vmem:[%s1 + $0x564] sm:$0xf]
  %v374 = vld [vmem:[%s1 + $0x568] sm:$0xf]
  %v375 = vld [vmem:[%s1 + $0x56c] sm:$0xf]
  %v376 = vld [vmem:[%s1 + $0x570] sm:$0xf]
  %v377 = vld [vmem:[%s1 + $0x574] sm:$0xf]
  %v378 = vld [vmem:[%s1 + $0x578] sm:$0xf]
  %v379 = vld [vmem:[%s1 + $0x57c] sm:$0xf]
  %v380 = vld [vmem:[%s1 + $0x580] sm:$0xf]
  %v381 = vld [vmem:[%s1 + $0x584] sm:$0xf]
  %v382 = vld [vmem:[%s1 + $0x588] sm:$0xf]
  %v383 = vld [vmem:[%s1 + $0x58c] sm:$0xf]
  %v384 = vld [vmem:[%s1 + $0x590] sm:$0xf]
  %v385 = vld [vmem:[%s1 + $0x594] sm:$0xf]
  %v386 = vld [vmem:[%s1 + $0x598] sm:$0xf]
  %v387 = vld [vmem:[%s1 + $0x59c] sm:$0xf]
  %v388 = vld [vmem:[%s1 + $0x5a0] sm:$0xf]
  %v389 = vld [vmem:[%s1 + $0x5a4] sm:$0xf]
  %v390 = vld [vmem:[%s1 + $0x5a8] sm:$0xf]
  %v391 = vld [vmem:[%s1 + $0x5ac] sm:$0xf]
  %v392 = vld [vmem:[%s1 + $0x5b0] sm:$0xf]
  %v393 = vld [vmem:[%s1 + $0x5b4] sm:$0xf]
  %v394 = vld [vmem:[%s1 + $0x5b8] sm:$0xf]
  %v395 = vld [vmem:[%s1 + $0x5bc] sm:$0xf]
  %v396 = vld [vmem:[%s1 + $0x5c0] sm:$0xf]
  %v397 = vld [vmem:[%s1 + $0x5c4] sm:$0xf]
  %v398 = vld [vmem:[%s1 + $0x5c8] sm:$0xf]
  %v399 = vld [vmem:[%s1 + $0x5cc] sm:$0xf]
  %v400 = vld [vmem:[%s1 + $0x5d0] sm:$0xf]
  %v401 = vld [vmem:[%s1 + $0x5d4] sm:$0xf]
  %v402 = vld [vmem:[%s1 + $0x5d8] sm:$0xf]
  %v403 = vld [vmem:[%s1 + $0x5dc] sm:$0xf]
  %v404 = vld [vmem:[%s1 + $0x5e0] sm:$0xf]
  %v405 = vld [vmem:[%s1 + $0x5e4] sm:$0xf]
  %v406 = vld [vmem:[%s1 + $0x5e8] sm:$0xf]
  %v407 = vld [vmem:[%s1 + $0x5ec] sm:$0xf]
  %v408 = vld [vmem:[%s1 + $0x5f0] sm:$0xf]
  %v409 = vld [vmem:[%s1 + $0x5f4] sm:$0xf]
  %v410 = vld [vmem:[%s1 + $0x5f8] sm:$0xf]
  %v411 = vld [vmem:[%s1 + $0x5fc] sm:$0xf]
  %v412 = vld [vmem:[%s1 + $0x600] sm:$0xf]
  %v413 = vld [vmem:[%s1 + $0x604] sm:$0xf]
  %v414 = vld [vmem:[%s1 + $0x608] sm:$0xf]
  %v415 = vld [vmem:[%s1 + $0x60c] sm:$0xf]
  %v416 = vld [vmem:[%s1 + $0x610] sm:$0xf]
  %v417 = vld [vmem:[%s1 + $0x614] sm:$0xf]
  %v418 = vld [vmem:[%s1 + $0x618] sm:$0xf]
  %v419 = vld [vmem:[%s1 + $0x61c] sm:$0xf]
  %v420 = vld [vmem:[%s1 + $0x620] sm:$0xf]
  %v421 = vld [vmem:[%s1 + $0x624] sm:$0xf]
  %v422 = vld [vmem:[%s1 + $0x628] sm:$0xf]
  %v423 = vld [vmem:[%s1 + $0x62c] sm:$0xf]
  %v424 = vld [vmem:[%s1 + $0x630] sm:$0xf]
  %v425 = vld [vmem:[%s1 + $0x634] sm:$0xf]
  %v426 = vld [vmem:[%s1 + $0x638] sm:$0xf]
  %v427 = vld [vmem:[%s1 + $0x63c] sm:$0xf]
  %v428 = vld [vmem:[%s2] sm:$0x1]
  %v430 = vlaneseq
  %v431 = vshrl.u32 %v430, 7
  %v432 = vsub.s32 0, %v431
  %v433 = vrot.slane %v428, %v432
  %v448 = vunpack.c.l.b16 %v15
  %v449 = vunpack.c.h.b16 %v15
  %v450 = vunpack.c.l.b16 %v16
  %v451 = vunpack.c.h.b16 %v16
  %v452 = vunpack.c.l.b16 %v17
  %v453 = vunpack.c.h.b16 %v17
  %v454 = vunpack.c.l.b16 %v18
  %v455 = vunpack.c.h.b16 %v18
  %v456 = vunpack.c.l.b16 %v19
  %v457 = vunpack.c.h.b16 %v19
  %v458 = vunpack.c.l.b16 %v20
  %v459 = vunpack.c.h.b16 %v20
  %v460 = vunpack.c.l.b16 %v21
  %v461 = vunpack.c.h.b16 %v21
  %v462 = vunpack.c.l.b16 %v22
  %v463 = vunpack.c.h.b16 %v22
  %v464 = vunpack.c.l.b16 %v23
  %v465 = vunpack.c.h.b16 %v23
  %v466 = vunpack.c.l.b16 %v24
  %v467 = vunpack.c.h.b16 %v24
  %v468 = vunpack.c.l.b16 %v25
  %v469 = vunpack.c.h.b16 %v25
  %v470 = vunpack.c.l.b16 %v26
  %v471 = vunpack.c.h.b16 %v26
  %v472 = vunpack.c.l.b16 %v27
  %v473 = vpack.c.b16 %v448, %v448
  %v474 = vpack.c.b16 %v449, %v449
  %v475 = vpack.c.b16 %v450, %v450
  %v476 = vpack.c.b16 %v451, %v451
  %v477 = vpack.c.b16 %v452, %v452
  %v478 = vpack.c.b16 %v453, %v453
  %v479 = vpack.c.b16 %v454, %v454
  %v480 = vpack.c.b16 %v455, %v455
  %v481 = vpack.c.b16 %v456, %v456
  %v482 = vpack.c.b16 %v457, %v457
  %v483 = vpack.c.b16 %v458, %v458
  %v484 = vpack.c.b16 %v459, %v459
  %v485 = vpack.c.b16 %v460, %v460
  %v486 = vpack.c.b16 %v461, %v461
  %v487 = vpack.c.b16 %v462, %v462
  %v488 = vpack.c.b16 %v463, %v463
  %v489 = vpack.c.b16 %v464, %v464
  %v490 = vpack.c.b16 %v465, %v465
  %v491 = vpack.c.b16 %v466, %v466
  %v492 = vpack.c.b16 %v467, %v467
  %v493 = vpack.c.b16 %v468, %v468
  %v494 = vpack.c.b16 %v469, %v469
  %v495 = vpack.c.b16 %v470, %v470
  %v496 = vpack.c.b16 %v471, %v471
  %v497 = vpack.c.b16 %v472, %v472
  %v923 = vunpack.c.l.b16 %v28
  %v924 = vunpack.c.l.b16 %v29
  %v925 = vunpack.c.l.b16 %v30
  %v926 = vunpack.c.l.b16 %v31
  %v927 = vunpack.c.l.b16 %v32
  %v928 = vunpack.c.l.b16 %v33
  %v929 = vunpack.c.l.b16 %v34
  %v930 = vunpack.c.l.b16 %v35
  %v931 = vunpack.c.l.b16 %v36
  %v932 = vunpack.c.l.b16 %v37
  %v933 = vunpack.c.l.b16 %v38
  %v934 = vunpack.c.l.b16 %v39
  %v935 = vunpack.c.l.b16 %v40
  %v936 = vunpack.c.l.b16 %v41
  %v937 = vunpack.c.l.b16 %v42
  %v938 = vunpack.c.l.b16 %v43
  %v939 = vunpack.c.l.b16 %v44
  %v940 = vunpack.c.l.b16 %v45
  %v941 = vunpack.c.l.b16 %v46
  %v942 = vunpack.c.l.b16 %v47
  %v943 = vunpack.c.l.b16 %v48
  %v944 = vunpack.c.l.b16 %v49
  %v945 = vunpack.c.l.b16 %v50
  %v946 = vunpack.c.l.b16 %v51
  %v947 = vunpack.c.l.b16 %v52
  %v948 = vunpack.c.l.b16 %v53
  %v949 = vunpack.c.l.b16 %v54
  %v950 = vunpack.c.l.b16 %v55
  %v951 = vunpack.c.l.b16 %v56
  %v952 = vunpack.c.l.b16 %v57
  %v953 = vunpack.c.l.b16 %v58
  %v954 = vunpack.c.l.b16 %v59
  %v955 = vunpack.c.l.b16 %v60
  %v956 = vunpack.c.l.b16 %v61
  %v957 = vunpack.c.l.b16 %v62
  %v958 = vunpack.c.l.b16 %v63
  %v959 = vunpack.c.l.b16 %v64
  %v960 = vunpack.c.l.b16 %v65
  %v961 = vunpack.c.l.b16 %v66
  %v962 = vunpack.c.l.b16 %v67
  %v963 = vunpack.c.l.b16 %v68
  %v964 = vunpack.c.l.b16 %v69
  %v965 = vunpack.c.l.b16 %v70
  %v966 = vunpack.c.l.b16 %v71
  %v967 = vunpack.c.l.b16 %v72
  %v968 = vunpack.c.l.b16 %v73
  %v969 = vunpack.c.l.b16 %v74
  %v970 = vunpack.c.l.b16 %v75
  %v971 = vunpack.c.l.b16 %v76
  %v972 = vunpack.c.l.b16 %v77
  %v973 = vunpack.c.l.b16 %v78
  %v974 = vunpack.c.l.b16 %v79
  %v975 = vunpack.c.l.b16 %v80
  %v976 = vunpack.c.l.b16 %v81
  %v977 = vunpack.c.l.b16 %v82
  %v978 = vunpack.c.l.b16 %v83
  %v979 = vunpack.c.l.b16 %v84
  %v980 = vunpack.c.l.b16 %v85
  %v981 = vunpack.c.l.b16 %v86
  %v982 = vunpack.c.l.b16 %v87
  %v983 = vunpack.c.l.b16 %v88
  %v984 = vunpack.c.l.b16 %v89
  %v985 = vunpack.c.l.b16 %v90
  %v986 = vunpack.c.l.b16 %v91
  %v987 = vunpack.c.l.b16 %v92
  %v988 = vunpack.c.l.b16 %v93
  %v989 = vunpack.c.l.b16 %v94
  %v990 = vunpack.c.l.b16 %v95
  %v991 = vunpack.c.l.b16 %v96
  %v992 = vunpack.c.l.b16 %v97
  %v993 = vunpack.c.l.b16 %v98
  %v994 = vunpack.c.l.b16 %v99
  %v995 = vunpack.c.l.b16 %v100
  %v996 = vunpack.c.l.b16 %v101
  %v997 = vunpack.c.l.b16 %v102
  %v998 = vunpack.c.l.b16 %v103
  %v999 = vunpack.c.l.b16 %v104
  %v1000 = vunpack.c.l.b16 %v105
  %v1001 = vunpack.c.l.b16 %v106
  %v1002 = vunpack.c.l.b16 %v107
  %v1003 = vunpack.c.l.b16 %v108
  %v1004 = vunpack.c.l.b16 %v109
  %v1005 = vunpack.c.l.b16 %v110
  %v1006 = vunpack.c.l.b16 %v111
  %v1007 = vunpack.c.l.b16 %v112
  %v1008 = vunpack.c.l.b16 %v113
  %v1009 = vunpack.c.l.b16 %v114
  %v1010 = vunpack.c.l.b16 %v115
  %v1011 = vunpack.c.l.b16 %v116
  %v1012 = vunpack.c.l.b16 %v117
  %v1013 = vunpack.c.l.b16 %v118
  %v1014 = vunpack.c.l.b16 %v119
  %v1015 = vunpack.c.l.b16 %v120
  %v1016 = vunpack.c.l.b16 %v121
  %v1017 = vunpack.c.l.b16 %v122
  %v1018 = vunpack.c.l.b16 %v123
  %v1019 = vunpack.c.l.b16 %v124
  %v1020 = vunpack.c.l.b16 %v125
  %v1021 = vunpack.c.l.b16 %v126
  %v1022 = vunpack.c.l.b16 %v127
  %v1023 = vunpack.c.l.b16 %v128
  %v1024 = vunpack.c.l.b16 %v129
  %v1025 = vunpack.c.l.b16 %v130
  %v1026 = vunpack.c.l.b16 %v131
  %v1027 = vunpack.c.l.b16 %v132
  %v1028 = vunpack.c.l.b16 %v133
  %v1029 = vunpack.c.l.b16 %v134
  %v1030 = vunpack.c.l.b16 %v135
  %v1031 = vunpack.c.l.b16 %v136
  %v1032 = vunpack.c.l.b16 %v137
  %v1033 = vunpack.c.l.b16 %v138
  %v1034 = vunpack.c.l.b16 %v139
  %v1035 = vunpack.c.l.b16 %v140
  %v1036 = vunpack.c.l.b16 %v141
  %v1037 = vunpack.c.l.b16 %v142
  %v1038 = vunpack.c.l.b16 %v143
  %v1039 = vunpack.c.l.b16 %v144
  %v1040 = vunpack.c.l.b16 %v145
  %v1041 = vunpack.c.l.b16 %v146
  %v1042 = vunpack.c.l.b16 %v147
  %v1043 = vunpack.c.l.b16 %v148
  %v1044 = vunpack.c.l.b16 %v149
  %v1045 = vunpack.c.l.b16 %v150
  %v1046 = vunpack.c.l.b16 %v151
  %v1047 = vunpack.c.l.b16 %v152
  %v1048 = vunpack.c.l.b16 %v153
  %v1049 = vunpack.c.l.b16 %v154
  %v1050 = vunpack.c.l.b16 %v155
  %v1051 = vunpack.c.l.b16 %v156
  %v1052 = vunpack.c.l.b16 %v157
  %v1053 = vunpack.c.l.b16 %v158
  %v1054 = vunpack.c.l.b16 %v159
  %v1055 = vunpack.c.l.b16 %v160
  %v1056 = vunpack.c.l.b16 %v161
  %v1057 = vunpack.c.l.b16 %v162
  %v1058 = vunpack.c.l.b16 %v163
  %v1059 = vunpack.c.l.b16 %v164
  %v1060 = vunpack.c.l.b16 %v165
  %v1061 = vunpack.c.l.b16 %v166
  %v1062 = vunpack.c.l.b16 %v167
  %v1063 = vunpack.c.l.b16 %v168
  %v1064 = vunpack.c.l.b16 %v169
  %v1065 = vunpack.c.l.b16 %v170
  %v1066 = vunpack.c.l.b16 %v171
  %v1067 = vunpack.c.l.b16 %v172
  %v1068 = vunpack.c.l.b16 %v173
  %v1069 = vunpack.c.l.b16 %v174
  %v1070 = vunpack.c.l.b16 %v175
  %v1071 = vunpack.c.l.b16 %v176
  %v1072 = vunpack.c.l.b16 %v177
  %v1073 = vunpack.c.l.b16 %v178
  %v1074 = vunpack.c.l.b16 %v179
  %v1075 = vunpack.c.l.b16 %v180
  %v1076 = vunpack.c.l.b16 %v181
  %v1077 = vunpack.c.l.b16 %v182
  %v1078 = vunpack.c.l.b16 %v183
  %v1079 = vunpack.c.l.b16 %v184
  %v1080 = vunpack.c.l.b16 %v185
  %v1081 = vunpack.c.l.b16 %v186
  %v1082 = vunpack.c.l.b16 %v187
  %v1083 = vunpack.c.l.b16 %v188
  %v1084 = vunpack.c.l.b16 %v189
  %v1085 = vunpack.c.l.b16 %v190
  %v1086 = vunpack.c.l.b16 %v191
  %v1087 = vunpack.c.l.b16 %v192
  %v1088 = vunpack.c.l.b16 %v193
  %v1089 = vunpack.c.l.b16 %v194
  %v1090 = vunpack.c.l.b16 %v195
  %v1091 = vunpack.c.l.b16 %v196
  %v1092 = vunpack.c.l.b16 %v197
  %v1093 = vunpack.c.l.b16 %v198
  %v1094 = vunpack.c.l.b16 %v199
  %v1095 = vunpack.c.l.b16 %v200
  %v1096 = vunpack.c.l.b16 %v201
  %v1097 = vunpack.c.l.b16 %v202
  %v1098 = vunpack.c.l.b16 %v203
  %v1099 = vunpack.c.l.b16 %v204
  %v1100 = vunpack.c.l.b16 %v205
  %v1101 = vunpack.c.l.b16 %v206
  %v1102 = vunpack.c.l.b16 %v207
  %v1103 = vunpack.c.l.b16 %v208
  %v1104 = vunpack.c.l.b16 %v209
  %v1105 = vunpack.c.l.b16 %v210
  %v1106 = vunpack.c.l.b16 %v211
  %v1107 = vunpack.c.l.b16 %v212
  %v1108 = vunpack.c.l.b16 %v213
  %v1109 = vunpack.c.l.b16 %v214
  %v1110 = vunpack.c.l.b16 %v215
  %v1111 = vunpack.c.l.b16 %v216
  %v1112 = vunpack.c.l.b16 %v217
  %v1113 = vunpack.c.l.b16 %v218
  %v1114 = vunpack.c.l.b16 %v219
  %v1115 = vunpack.c.l.b16 %v220
  %v1116 = vunpack.c.l.b16 %v221
  %v1117 = vunpack.c.l.b16 %v222
  %v1118 = vunpack.c.l.b16 %v223
  %v1119 = vunpack.c.l.b16 %v224
  %v1120 = vunpack.c.l.b16 %v225
  %v1121 = vunpack.c.l.b16 %v226
  %v1122 = vunpack.c.l.b16 %v227
  %v1123 = vunpack.c.l.b16 %v228
  %v1124 = vunpack.c.l.b16 %v229
  %v1125 = vunpack.c.l.b16 %v230
  %v1126 = vunpack.c.l.b16 %v231
  %v1127 = vunpack.c.l.b16 %v232
  %v1128 = vunpack.c.l.b16 %v233
  %v1129 = vunpack.c.l.b16 %v234
  %v1130 = vunpack.c.l.b16 %v235
  %v1131 = vunpack.c.l.b16 %v236
  %v1132 = vunpack.c.l.b16 %v237
  %v1133 = vunpack.c.l.b16 %v238
  %v1134 = vunpack.c.l.b16 %v239
  %v1135 = vunpack.c.l.b16 %v240
  %v1136 = vunpack.c.l.b16 %v241
  %v1137 = vunpack.c.l.b16 %v242
  %v1138 = vunpack.c.l.b16 %v243
  %v1139 = vunpack.c.l.b16 %v244
  %v1140 = vunpack.c.l.b16 %v245
  %v1141 = vunpack.c.l.b16 %v246
  %v1142 = vunpack.c.l.b16 %v247
  %v1143 = vunpack.c.l.b16 %v248
  %v1144 = vunpack.c.l.b16 %v249
  %v1145 = vunpack.c.l.b16 %v250
  %v1146 = vunpack.c.l.b16 %v251
  %v1147 = vunpack.c.l.b16 %v252
  %v1148 = vunpack.c.l.b16 %v253
  %v1149 = vunpack.c.l.b16 %v254
  %v1150 = vunpack.c.l.b16 %v255
  %v1151 = vunpack.c.l.b16 %v256
  %v1152 = vunpack.c.l.b16 %v257
  %v1153 = vunpack.c.l.b16 %v258
  %v1154 = vunpack.c.l.b16 %v259
  %v1155 = vunpack.c.l.b16 %v260
  %v1156 = vunpack.c.l.b16 %v261
  %v1157 = vunpack.c.l.b16 %v262
  %v1158 = vunpack.c.l.b16 %v263
  %v1159 = vunpack.c.l.b16 %v264
  %v1160 = vunpack.c.l.b16 %v265
  %v1161 = vunpack.c.l.b16 %v266
  %v1162 = vunpack.c.l.b16 %v267
  %v1163 = vunpack.c.l.b16 %v268
  %v1164 = vunpack.c.l.b16 %v269
  %v1165 = vunpack.c.l.b16 %v270
  %v1166 = vunpack.c.l.b16 %v271
  %v1167 = vunpack.c.l.b16 %v272
  %v1168 = vunpack.c.l.b16 %v273
  %v1169 = vunpack.c.l.b16 %v274
  %v1170 = vunpack.c.l.b16 %v275
  %v1171 = vunpack.c.l.b16 %v276
  %v1172 = vunpack.c.l.b16 %v277
  %v1173 = vunpack.c.l.b16 %v278
  %v1174 = vunpack.c.l.b16 %v279
  %v1175 = vunpack.c.l.b16 %v280
  %v1176 = vunpack.c.l.b16 %v281
  %v1177 = vunpack.c.l.b16 %v282
  %v1178 = vunpack.c.l.b16 %v283
  %v1179 = vunpack.c.l.b16 %v284
  %v1180 = vunpack.c.l.b16 %v285
  %v1181 = vunpack.c.l.b16 %v286
  %v1182 = vunpack.c.l.b16 %v287
  %v1183 = vunpack.c.l.b16 %v288
  %v1184 = vunpack.c.l.b16 %v289
  %v1185 = vunpack.c.l.b16 %v290
  %v1186 = vunpack.c.l.b16 %v291
  %v1187 = vunpack.c.l.b16 %v292
  %v1188 = vunpack.c.l.b16 %v293
  %v1189 = vunpack.c.l.b16 %v294
  %v1190 = vunpack.c.l.b16 %v295
  %v1191 = vunpack.c.l.b16 %v296
  %v1192 = vunpack.c.l.b16 %v297
  %v1193 = vunpack.c.l.b16 %v298
  %v1194 = vunpack.c.l.b16 %v299
  %v1195 = vunpack.c.l.b16 %v300
  %v1196 = vunpack.c.l.b16 %v301
  %v1197 = vunpack.c.l.b16 %v302
  %v1198 = vunpack.c.l.b16 %v303
  %v1199 = vunpack.c.l.b16 %v304
  %v1200 = vunpack.c.l.b16 %v305
  %v1201 = vunpack.c.l.b16 %v306
  %v1202 = vunpack.c.l.b16 %v307
  %v1203 = vunpack.c.l.b16 %v308
  %v1204 = vunpack.c.l.b16 %v309
  %v1205 = vunpack.c.l.b16 %v310
  %v1206 = vunpack.c.l.b16 %v311
  %v1207 = vunpack.c.l.b16 %v312
  %v1208 = vunpack.c.l.b16 %v313
  %v1209 = vunpack.c.l.b16 %v314
  %v1210 = vunpack.c.l.b16 %v315
  %v1211 = vunpack.c.l.b16 %v316
  %v1212 = vunpack.c.l.b16 %v317
  %v1213 = vunpack.c.l.b16 %v318
  %v1214 = vunpack.c.l.b16 %v319
  %v1215 = vunpack.c.l.b16 %v320
  %v1216 = vunpack.c.l.b16 %v321
  %v1217 = vunpack.c.l.b16 %v322
  %v1218 = vunpack.c.l.b16 %v323
  %v1219 = vunpack.c.l.b16 %v324
  %v1220 = vunpack.c.l.b16 %v325
  %v1221 = vunpack.c.l.b16 %v326
  %v1222 = vunpack.c.l.b16 %v327
  %v1223 = vunpack.c.l.b16 %v328
  %v1224 = vunpack.c.l.b16 %v329
  %v1225 = vunpack.c.l.b16 %v330
  %v1226 = vunpack.c.l.b16 %v331
  %v1227 = vunpack.c.l.b16 %v332
  %v1228 = vunpack.c.l.b16 %v333
  %v1229 = vunpack.c.l.b16 %v334
  %v1230 = vunpack.c.l.b16 %v335
  %v1231 = vunpack.c.l.b16 %v336
  %v1232 = vunpack.c.l.b16 %v337
  %v1233 = vunpack.c.l.b16 %v338
  %v1234 = vunpack.c.l.b16 %v339
  %v1235 = vunpack.c.l.b16 %v340
  %v1236 = vunpack.c.l.b16 %v341
  %v1237 = vunpack.c.l.b16 %v342
  %v1238 = vunpack.c.l.b16 %v343
  %v1239 = vunpack.c.l.b16 %v344
  %v1240 = vunpack.c.l.b16 %v345
  %v1241 = vunpack.c.l.b16 %v346
  %v1242 = vunpack.c.l.b16 %v347
  %v1243 = vunpack.c.l.b16 %v348
  %v1244 = vunpack.c.l.b16 %v349
  %v1245 = vunpack.c.l.b16 %v350
  %v1246 = vunpack.c.l.b16 %v351
  %v1247 = vunpack.c.l.b16 %v352
  %v1248 = vunpack.c.l.b16 %v353
  %v1249 = vunpack.c.l.b16 %v354
  %v1250 = vunpack.c.l.b16 %v355
  %v1251 = vunpack.c.l.b16 %v356
  %v1252 = vunpack.c.l.b16 %v357
  %v1253 = vunpack.c.l.b16 %v358
  %v1254 = vunpack.c.l.b16 %v359
  %v1255 = vunpack.c.l.b16 %v360
  %v1256 = vunpack.c.l.b16 %v361
  %v1257 = vunpack.c.l.b16 %v362
  %v1258 = vunpack.c.l.b16 %v363
  %v1259 = vunpack.c.l.b16 %v364
  %v1260 = vunpack.c.l.b16 %v365
  %v1261 = vunpack.c.l.b16 %v366
  %v1262 = vunpack.c.l.b16 %v367
  %v1263 = vunpack.c.l.b16 %v368
  %v1264 = vunpack.c.l.b16 %v369
  %v1265 = vunpack.c.l.b16 %v370
  %v1266 = vunpack.c.l.b16 %v371
  %v1267 = vunpack.c.l.b16 %v372
  %v1268 = vunpack.c.l.b16 %v373
  %v1269 = vunpack.c.l.b16 %v374
  %v1270 = vunpack.c.l.b16 %v375
  %v1271 = vunpack.c.l.b16 %v376
  %v1272 = vunpack.c.l.b16 %v377
  %v1273 = vunpack.c.l.b16 %v378
  %v1274 = vunpack.c.l.b16 %v379
  %v1275 = vunpack.c.l.b16 %v380
  %v1276 = vunpack.c.l.b16 %v381
  %v1277 = vunpack.c.l.b16 %v382
  %v1278 = vunpack.c.l.b16 %v383
  %v1279 = vunpack.c.l.b16 %v384
  %v1280 = vunpack.c.l.b16 %v385
  %v1281 = vunpack.c.l.b16 %v386
  %v1282 = vunpack.c.l.b16 %v387
  %v1283 = vunpack.c.l.b16 %v388
  %v1284 = vunpack.c.l.b16 %v389
  %v1285 = vunpack.c.l.b16 %v390
  %v1286 = vunpack.c.l.b16 %v391
  %v1287 = vunpack.c.l.b16 %v392
  %v1288 = vunpack.c.l.b16 %v393
  %v1289 = vunpack.c.l.b16 %v394
  %v1290 = vunpack.c.l.b16 %v395
  %v1291 = vunpack.c.l.b16 %v396
  %v1292 = vunpack.c.l.b16 %v397
  %v1293 = vunpack.c.l.b16 %v398
  %v1294 = vunpack.c.l.b16 %v399
  %v1295 = vunpack.c.l.b16 %v400
  %v1296 = vunpack.c.l.b16 %v401
  %v1297 = vunpack.c.l.b16 %v402
  %v1298 = vunpack.c.l.b16 %v403
  %v1299 = vunpack.c.l.b16 %v404
  %v1300 = vunpack.c.l.b16 %v405
  %v1301 = vunpack.c.l.b16 %v406
  %v1302 = vunpack.c.l.b16 %v407
  %v1303 = vunpack.c.l.b16 %v408
  %v1304 = vunpack.c.l.b16 %v409
  %v1305 = vunpack.c.l.b16 %v410
  %v1306 = vunpack.c.l.b16 %v411
  %v1307 = vunpack.c.l.b16 %v412
  %v1308 = vunpack.c.l.b16 %v413
  %v1309 = vunpack.c.l.b16 %v414
  %v1310 = vunpack.c.l.b16 %v415
  %v1311 = vunpack.c.l.b16 %v416
  %v1312 = vunpack.c.l.b16 %v417
  %v1313 = vunpack.c.l.b16 %v418
  %v1314 = vunpack.c.l.b16 %v419
  %v1315 = vunpack.c.l.b16 %v420
  %v1316 = vunpack.c.l.b16 %v421
  %v1317 = vunpack.c.l.b16 %v422
  %v1318 = vunpack.c.l.b16 %v423
  %v1319 = vunpack.c.l.b16 %v424
  %v1320 = vunpack.c.l.b16 %v425
  %v1321 = vunpack.c.l.b16 %v426
  %v1322 = vunpack.c.l.b16 %v427
  %v1323 = vpack.c.b16 %v924, %v923
  %v1324 = vpack.c.b16 %v926, %v925
  %v1325 = vpack.c.b16 %v928, %v927
  %v1326 = vpack.c.b16 %v930, %v929
  %v1327 = vpack.c.b16 %v932, %v931
  %v1328 = vpack.c.b16 %v934, %v933
  %v1329 = vpack.c.b16 %v936, %v935
  %v1330 = vpack.c.b16 %v938, %v937
  %v1331 = vpack.c.b16 %v940, %v939
  %v1332 = vpack.c.b16 %v942, %v941
  %v1333 = vpack.c.b16 %v944, %v943
  %v1334 = vpack.c.b16 %v946, %v945
  %v1335 = vpack.c.b16 %v948, %v947
  %v1336 = vpack.c.b16 %v950, %v949
  %v1337 = vpack.c.b16 %v952, %v951
  %v1338 = vpack.c.b16 %v954, %v953
  %v1339 = vpack.c.b16 %v956, %v955
  %v1340 = vpack.c.b16 %v958, %v957
  %v1341 = vpack.c.b16 %v960, %v959
  %v1342 = vpack.c.b16 %v962, %v961
  %v1343 = vpack.c.b16 %v964, %v963
  %v1344 = vpack.c.b16 %v966, %v965
  %v1345 = vpack.c.b16 %v968, %v967
  %v1346 = vpack.c.b16 %v970, %v969
  %v1347 = vpack.c.b16 %v972, %v971
  %v1348 = vpack.c.b16 %v974, %v973
  %v1349 = vpack.c.b16 %v976, %v975
  %v1350 = vpack.c.b16 %v978, %v977
  %v1351 = vpack.c.b16 %v980, %v979
  %v1352 = vpack.c.b16 %v982, %v981
  %v1353 = vpack.c.b16 %v984, %v983
  %v1354 = vpack.c.b16 %v986, %v985
  %v1355 = vpack.c.b16 %v988, %v987
  %v1356 = vpack.c.b16 %v990, %v989
  %v1357 = vpack.c.b16 %v992, %v991
  %v1358 = vpack.c.b16 %v994, %v993
  %v1359 = vpack.c.b16 %v996, %v995
  %v1360 = vpack.c.b16 %v998, %v997
  %v1361 = vpack.c.b16 %v1000, %v999
  %v1362 = vpack.c.b16 %v1002, %v1001
  %v1363 = vpack.c.b16 %v1004, %v1003
  %v1364 = vpack.c.b16 %v1006, %v1005
  %v1365 = vpack.c.b16 %v1008, %v1007
  %v1366 = vpack.c.b16 %v1010, %v1009
  %v1367 = vpack.c.b16 %v1012, %v1011
  %v1368 = vpack.c.b16 %v1014, %v1013
  %v1369 = vpack.c.b16 %v1016, %v1015
  %v1370 = vpack.c.b16 %v1018, %v1017
  %v1371 = vpack.c.b16 %v1020, %v1019
  %v1372 = vpack.c.b16 %v1022, %v1021
  %v1373 = vpack.c.b16 %v1024, %v1023
  %v1374 = vpack.c.b16 %v1026, %v1025
  %v1375 = vpack.c.b16 %v1028, %v1027
  %v1376 = vpack.c.b16 %v1030, %v1029
  %v1377 = vpack.c.b16 %v1032, %v1031
  %v1378 = vpack.c.b16 %v1034, %v1033
  %v1379 = vpack.c.b16 %v1036, %v1035
  %v1380 = vpack.c.b16 %v1038, %v1037
  %v1381 = vpack.c.b16 %v1040, %v1039
  %v1382 = vpack.c.b16 %v1042, %v1041
  %v1383 = vpack.c.b16 %v1044, %v1043
  %v1384 = vpack.c.b16 %v1046, %v1045
  %v1385 = vpack.c.b16 %v1048, %v1047
  %v1386 = vpack.c.b16 %v1050, %v1049
  %v1387 = vpack.c.b16 %v1052, %v1051
  %v1388 = vpack.c.b16 %v1054, %v1053
  %v1389 = vpack.c.b16 %v1056, %v1055
  %v1390 = vpack.c.b16 %v1058, %v1057
  %v1391 = vpack.c.b16 %v1060, %v1059
  %v1392 = vpack.c.b16 %v1062, %v1061
  %v1393 = vpack.c.b16 %v1064, %v1063
  %v1394 = vpack.c.b16 %v1066, %v1065
  %v1395 = vpack.c.b16 %v1068, %v1067
  %v1396 = vpack.c.b16 %v1070, %v1069
  %v1397 = vpack.c.b16 %v1072, %v1071
  %v1398 = vpack.c.b16 %v1074, %v1073
  %v1399 = vpack.c.b16 %v1076, %v1075
  %v1400 = vpack.c.b16 %v1078, %v1077
  %v1401 = vpack.c.b16 %v1080, %v1079
  %v1402 = vpack.c.b16 %v1082, %v1081
  %v1403 = vpack.c.b16 %v1084, %v1083
  %v1404 = vpack.c.b16 %v1086, %v1085
  %v1405 = vpack.c.b16 %v1088, %v1087
  %v1406 = vpack.c.b16 %v1090, %v1089
  %v1407 = vpack.c.b16 %v1092, %v1091
  %v1408 = vpack.c.b16 %v1094, %v1093
  %v1409 = vpack.c.b16 %v1096, %v1095
  %v1410 = vpack.c.b16 %v1098, %v1097
  %v1411 = vpack.c.b16 %v1100, %v1099
  %v1412 = vpack.c.b16 %v1102, %v1101
  %v1413 = vpack.c.b16 %v1104, %v1103
  %v1414 = vpack.c.b16 %v1106, %v1105
  %v1415 = vpack.c.b16 %v1108, %v1107
  %v1416 = vpack.c.b16 %v1110, %v1109
  %v1417 = vpack.c.b16 %v1112, %v1111
  %v1418 = vpack.c.b16 %v1114, %v1113
  %v1419 = vpack.c.b16 %v1116, %v1115
  %v1420 = vpack.c.b16 %v1118, %v1117
  %v1421 = vpack.c.b16 %v1120, %v1119
  %v1422 = vpack.c.b16 %v1122, %v1121
  %v1423 = vpack.c.b16 %v1124, %v1123
  %v1424 = vpack.c.b16 %v1126, %v1125
  %v1425 = vpack.c.b16 %v1128, %v1127
  %v1426 = vpack.c.b16 %v1130, %v1129
  %v1427 = vpack.c.b16 %v1132, %v1131
  %v1428 = vpack.c.b16 %v1134, %v1133
  %v1429 = vpack.c.b16 %v1136, %v1135
  %v1430 = vpack.c.b16 %v1138, %v1137
  %v1431 = vpack.c.b16 %v1140, %v1139
  %v1432 = vpack.c.b16 %v1142, %v1141
  %v1433 = vpack.c.b16 %v1144, %v1143
  %v1434 = vpack.c.b16 %v1146, %v1145
  %v1435 = vpack.c.b16 %v1148, %v1147
  %v1436 = vpack.c.b16 %v1150, %v1149
  %v1437 = vpack.c.b16 %v1152, %v1151
  %v1438 = vpack.c.b16 %v1154, %v1153
  %v1439 = vpack.c.b16 %v1156, %v1155
  %v1440 = vpack.c.b16 %v1158, %v1157
  %v1441 = vpack.c.b16 %v1160, %v1159
  %v1442 = vpack.c.b16 %v1162, %v1161
  %v1443 = vpack.c.b16 %v1164, %v1163
  %v1444 = vpack.c.b16 %v1166, %v1165
  %v1445 = vpack.c.b16 %v1168, %v1167
  %v1446 = vpack.c.b16 %v1170, %v1169
  %v1447 = vpack.c.b16 %v1172, %v1171
  %v1448 = vpack.c.b16 %v1174, %v1173
  %v1449 = vpack.c.b16 %v1176, %v1175
  %v1450 = vpack.c.b16 %v1178, %v1177
  %v1451 = vpack.c.b16 %v1180, %v1179
  %v1452 = vpack.c.b16 %v1182, %v1181
  %v1453 = vpack.c.b16 %v1184, %v1183
  %v1454 = vpack.c.b16 %v1186, %v1185
  %v1455 = vpack.c.b16 %v1188, %v1187
  %v1456 = vpack.c.b16 %v1190, %v1189
  %v1457 = vpack.c.b16 %v1192, %v1191
  %v1458 = vpack.c.b16 %v1194, %v1193
  %v1459 = vpack.c.b16 %v1196, %v1195
  %v1460 = vpack.c.b16 %v1198, %v1197
  %v1461 = vpack.c.b16 %v1200, %v1199
  %v1462 = vpack.c.b16 %v1202, %v1201
  %v1463 = vpack.c.b16 %v1204, %v1203
  %v1464 = vpack.c.b16 %v1206, %v1205
  %v1465 = vpack.c.b16 %v1208, %v1207
  %v1466 = vpack.c.b16 %v1210, %v1209
  %v1467 = vpack.c.b16 %v1212, %v1211
  %v1468 = vpack.c.b16 %v1214, %v1213
  %v1469 = vpack.c.b16 %v1216, %v1215
  %v1470 = vpack.c.b16 %v1218, %v1217
  %v1471 = vpack.c.b16 %v1220, %v1219
  %v1472 = vpack.c.b16 %v1222, %v1221
  %v1473 = vpack.c.b16 %v1224, %v1223
  %v1474 = vpack.c.b16 %v1226, %v1225
  %v1475 = vpack.c.b16 %v1228, %v1227
  %v1476 = vpack.c.b16 %v1230, %v1229
  %v1477 = vpack.c.b16 %v1232, %v1231
  %v1478 = vpack.c.b16 %v1234, %v1233
  %v1479 = vpack.c.b16 %v1236, %v1235
  %v1480 = vpack.c.b16 %v1238, %v1237
  %v1481 = vpack.c.b16 %v1240, %v1239
  %v1482 = vpack.c.b16 %v1242, %v1241
  %v1483 = vpack.c.b16 %v1244, %v1243
  %v1484 = vpack.c.b16 %v1246, %v1245
  %v1485 = vpack.c.b16 %v1248, %v1247
  %v1486 = vpack.c.b16 %v1250, %v1249
  %v1487 = vpack.c.b16 %v1252, %v1251
  %v1488 = vpack.c.b16 %v1254, %v1253
  %v1489 = vpack.c.b16 %v1256, %v1255
  %v1490 = vpack.c.b16 %v1258, %v1257
  %v1491 = vpack.c.b16 %v1260, %v1259
  %v1492 = vpack.c.b16 %v1262, %v1261
  %v1493 = vpack.c.b16 %v1264, %v1263
  %v1494 = vpack.c.b16 %v1266, %v1265
  %v1495 = vpack.c.b16 %v1268, %v1267
  %v1496 = vpack.c.b16 %v1270, %v1269
  %v1497 = vpack.c.b16 %v1272, %v1271
  %v1498 = vpack.c.b16 %v1274, %v1273
  %v1499 = vpack.c.b16 %v1276, %v1275
  %v1500 = vpack.c.b16 %v1278, %v1277
  %v1501 = vpack.c.b16 %v1280, %v1279
  %v1502 = vpack.c.b16 %v1282, %v1281
  %v1503 = vpack.c.b16 %v1284, %v1283
  %v1504 = vpack.c.b16 %v1286, %v1285
  %v1505 = vpack.c.b16 %v1288, %v1287
  %v1506 = vpack.c.b16 %v1290, %v1289
  %v1507 = vpack.c.b16 %v1292, %v1291
  %v1508 = vpack.c.b16 %v1294, %v1293
  %v1509 = vpack.c.b16 %v1296, %v1295
  %v1510 = vpack.c.b16 %v1298, %v1297
  %v1511 = vpack.c.b16 %v1300, %v1299
  %v1512 = vpack.c.b16 %v1302, %v1301
  %v1513 = vpack.c.b16 %v1304, %v1303
  %v1514 = vpack.c.b16 %v1306, %v1305
  %v1515 = vpack.c.b16 %v1308, %v1307
  %v1516 = vpack.c.b16 %v1310, %v1309
  %v1517 = vpack.c.b16 %v1312, %v1311
  %v1518 = vpack.c.b16 %v1314, %v1313
  %v1519 = vpack.c.b16 %v1316, %v1315
  %v1520 = vpack.c.b16 %v1318, %v1317
  %v1521 = vpack.c.b16 %v1320, %v1319
  %v1522 = vpack.c.b16 %v1322, %v1321
  %1723 = vmatprep.subr.bf16.mxu0 0
  %1724 = vmatpush1.bf16.msra.mxu0 %v1323
  %1725 = vmatprep.subr.bf16.mxu0 0
  %1726 = vmatpush1.bf16.msra.mxu0 %v1324
  %1727 = vmatprep.subr.bf16.mxu0 0
  %1728 = vmatpush1.bf16.msra.mxu0 %v1325
  %1729 = vmatprep.subr.bf16.mxu0 0
  %1730 = vmatpush1.bf16.msra.mxu0 %v1326
  %1731 = vmatprep.subr.bf16.mxu0 0
  %1732 = vmatpush1.bf16.msra.mxu0 %v1327
  %1733 = vmatprep.subr.bf16.mxu0 0
  %1734 = vmatpush1.bf16.msra.mxu0 %v1328
  %1735 = vmatprep.subr.bf16.mxu0 0
  %1736 = vmatpush1.bf16.msra.mxu0 %v1329
  %1737 = vmatprep.subr.bf16.mxu0 0
  %1738 = vmatpush1.bf16.msra.mxu0 %v1330
  %1739 = vmatprep.subr.bf16.mxu0 0
  %1740 = vmatpush1.bf16.msra.mxu0 %v1331
  %1741 = vmatprep.subr.bf16.mxu0 0
  %1742 = vmatpush1.bf16.msra.mxu0 %v1332
  %1743 = vmatprep.subr.bf16.mxu0 0
  %1744 = vmatpush1.bf16.msra.mxu0 %v1333
  %1745 = vmatprep.subr.bf16.mxu0 0
  %1746 = vmatpush1.bf16.msra.mxu0 %v1334
  %1747 = vmatprep.subr.bf16.mxu0 0
  %1748 = vmatpush1.bf16.msra.mxu0 %v1335
  %1749 = vmatprep.subr.bf16.mxu0 0
  %1750 = vmatpush1.bf16.msra.mxu0 %v1336
  %1751 = vmatprep.subr.bf16.mxu0 0
  %1752 = vmatpush1.bf16.msra.mxu0 %v1337
  %1753 = vmatprep.subr.bf16.mxu0 0
  %1754 = vmatpush1.bf16.msra.mxu0 %v1338
  %1755 = vmatprep.mubr.bf16.mxu0 %v474
  %1756 = vmatmul.mubr.bf16.gmra.mrb[0].mxu0 %v473
  %v1757 = vpop.f32.mrb[0].mxu0
  %v1758 = vadd.f32 %v433, %v1757
  %v1759 = vpop.f32.mrb[0].mxu0
  %v1760 = vpop.f32.mrb[0].mxu0
  %v1761 = vpop.f32.mrb[0].mxu0
  %1762 = vdwg.mxu0
  %1763 = vmatprep.subr.bf16.mxu0 0
  %1764 = vmatpush1.bf16.msra.mxu0 %v1339
  %1765 = vmatprep.subr.bf16.mxu0 0
  %1766 = vmatpush1.bf16.msra.mxu0 %v1340
  %1767 = vmatprep.subr.bf16.mxu0 0
  %1768 = vmatpush1.bf16.msra.mxu0 %v1341
  %1769 = vmatprep.subr.bf16.mxu0 0
  %1770 = vmatpush1.bf16.msra.mxu0 %v1342
  %1771 = vmatprep.subr.bf16.mxu0 0
  %1772 = vmatpush1.bf16.msra.mxu0 %v1343
  %1773 = vmatprep.subr.bf16.mxu0 0
  %1774 = vmatpush1.bf16.msra.mxu0 %v1344
  %1775 = vmatprep.subr.bf16.mxu0 0
  %1776 = vmatpush1.bf16.msra.mxu0 %v1345
  %1777 = vmatprep.subr.bf16.mxu0 0
  %1778 = vmatpush1.bf16.msra.mxu0 %v1346
  %1779 = vmatprep.subr.bf16.mxu0 0
  %1780 = vmatpush1.bf16.msra.mxu0 %v1347
  %1781 = vmatprep.subr.bf16.mxu0 0
  %1782 = vmatpush1.bf16.msra.mxu0 %v1348
  %1783 = vmatprep.subr.bf16.mxu0 0
  %1784 = vmatpush1.bf16.msra.mxu0 %v1349
  %1785 = vmatprep.subr.bf16.mxu0 0
  %1786 = vmatpush1.bf16.msra.mxu0 %v1350
  %1787 = vmatprep.subr.bf16.mxu0 0
  %1788 = vmatpush1.bf16.msra.mxu0 %v1351
  %1789 = vmatprep.subr.bf16.mxu0 0
  %1790 = vmatpush1.bf16.msra.mxu0 %v1352
  %1791 = vmatprep.subr.bf16.mxu0 0
  %1792 = vmatpush1.bf16.msra.mxu0 %v1353
  %1793 = vmatprep.subr.bf16.mxu0 0
  %1794 = vmatpush1.bf16.msra.mxu0 %v1354
  %1795 = vmatprep.mubr.bf16.mxu0 %v476
  %1796 = vmatmul.mubr.bf16.gmra.mrb[0].mxu0 %v475
  %v1797 = vpop.f32.mrb[0].mxu0
  %v1798 = vadd.f32 %v1758, %v1797
  %v1799 = vpop.f32.mrb[0].mxu0
  %v1800 = vpop.f32.mrb[0].mxu0
  %v1801 = vpop.f32.mrb[0].mxu0
  %1802 = vdwg.mxu0
  %1803 = vmatprep.subr.bf16.mxu0 0
  %1804 = vmatpush1.bf16.msra.mxu0 %v1355
  %1805 = vmatprep.subr.bf16.mxu0 0
  %1806 = vmatpush1.bf16.msra.mxu0 %v1356
  %1807 = vmatprep.subr.bf16.mxu0 0
  %1808 = vmatpush1.bf16.msra.mxu0 %v1357
  %1809 = vmatprep.subr.bf16.mxu0 0
  %1810 = vmatpush1.bf16.msra.mxu0 %v1358
  %1811 = vmatprep.subr.bf16.mxu0 0
  %1812 = vmatpush1.bf16.msra.mxu0 %v1359
  %1813 = vmatprep.subr.bf16.mxu0 0
  %1814 = vmatpush1.bf16.msra.mxu0 %v1360
  %1815 = vmatprep.subr.bf16.mxu0 0
  %1816 = vmatpush1.bf16.msra.mxu0 %v1361
  %1817 = vmatprep.subr.bf16.mxu0 0
  %1818 = vmatpush1.bf16.msra.mxu0 %v1362
  %1819 = vmatprep.subr.bf16.mxu0 0
  %1820 = vmatpush1.bf16.msra.mxu0 %v1363
  %1821 = vmatprep.subr.bf16.mxu0 0
  %1822 = vmatpush1.bf16.msra.mxu0 %v1364
  %1823 = vmatprep.subr.bf16.mxu0 0
  %1824 = vmatpush1.bf16.msra.mxu0 %v1365
  %1825 = vmatprep.subr.bf16.mxu0 0
  %1826 = vmatpush1.bf16.msra.mxu0 %v1366
  %1827 = vmatprep.subr.bf16.mxu0 0
  %1828 = vmatpush1.bf16.msra.mxu0 %v1367
  %1829 = vmatprep.subr.bf16.mxu0 0
  %1830 = vmatpush1.bf16.msra.mxu0 %v1368
  %1831 = vmatprep.subr.bf16.mxu0 0
  %1832 = vmatpush1.bf16.msra.mxu0 %v1369
  %1833 = vmatprep.subr.bf16.mxu0 0
  %1834 = vmatpush1.bf16.msra.mxu0 %v1370
  %1835 = vmatprep.mubr.bf16.mxu0 %v478
  %1836 = vmatmul.mubr.bf16.gmra.mrb[0].mxu0 %v477
  %v1837 = vpop.f32.mrb[0].mxu0
  %v1838 = vadd.f32 %v1798, %v1837
  %v1839 = vpop.f32.mrb[0].mxu0
  %v1840 = vpop.f32.mrb[0].mxu0
  %v1841 = vpop.f32.mrb[0].mxu0
  %1842 = vdwg.mxu0
  %1843 = vmatprep.subr.bf16.mxu0 0
  %1844 = vmatpush1.bf16.msra.mxu0 %v1371
  %1845 = vmatprep.subr.bf16.mxu0 0
  %1846 = vmatpush1.bf16.msra.mxu0 %v1372
  %1847 = vmatprep.subr.bf16.mxu0 0
  %1848 = vmatpush1.bf16.msra.mxu0 %v1373
  %1849 = vmatprep.subr.bf16.mxu0 0
  %1850 = vmatpush1.bf16.msra.mxu0 %v1374
  %1851 = vmatprep.subr.bf16.mxu0 0
  %1852 = vmatpush1.bf16.msra.mxu0 %v1375
  %1853 = vmatprep.subr.bf16.mxu0 0
  %1854 = vmatpush1.bf16.msra.mxu0 %v1376
  %1855 = vmatprep.subr.bf16.mxu0 0
  %1856 = vmatpush1.bf16.msra.mxu0 %v1377
  %1857 = vmatprep.subr.bf16.mxu0 0
  %1858 = vmatpush1.bf16.msra.mxu0 %v1378
  %1859 = vmatprep.subr.bf16.mxu0 0
  %1860 = vmatpush1.bf16.msra.mxu0 %v1379
  %1861 = vmatprep.subr.bf16.mxu0 0
  %1862 = vmatpush1.bf16.msra.mxu0 %v1380
  %1863 = vmatprep.subr.bf16.mxu0 0
  %1864 = vmatpush1.bf16.msra.mxu0 %v1381
  %1865 = vmatprep.subr.bf16.mxu0 0
  %1866 = vmatpush1.bf16.msra.mxu0 %v1382
  %1867 = vmatprep.subr.bf16.mxu0 0
  %1868 = vmatpush1.bf16.msra.mxu0 %v1383
  %1869 = vmatprep.subr.bf16.mxu0 0
  %1870 = vmatpush1.bf16.msra.mxu0 %v1384
  %1871 = vmatprep.subr.bf16.mxu0 0
  %1872 = vmatpush1.bf16.msra.mxu0 %v1385
  %1873 = vmatprep.subr.bf16.mxu0 0
  %1874 = vmatpush1.bf16.msra.mxu0 %v1386
  %1875 = vmatprep.mubr.bf16.mxu0 %v480
  %1876 = vmatmul.mubr.bf16.gmra.mrb[0].mxu0 %v479
  %v1877 = vpop.f32.mrb[0].mxu0
  %v1878 = vadd.f32 %v1838, %v1877
  %v1879 = vpop.f32.mrb[0].mxu0
  %v1880 = vpop.f32.mrb[0].mxu0
  %v1881 = vpop.f32.mrb[0].mxu0
  %1882 = vdwg.mxu0
  %1883 = vmatprep.subr.bf16.mxu0 0
  %1884 = vmatpush1.bf16.msra.mxu0 %v1387
  %1885 = vmatprep.subr.bf16.mxu0 0
  %1886 = vmatpush1.bf16.msra.mxu0 %v1388
  %1887 = vmatprep.subr.bf16.mxu0 0
  %1888 = vmatpush1.bf16.msra.mxu0 %v1389
  %1889 = vmatprep.subr.bf16.mxu0 0
  %1890 = vmatpush1.bf16.msra.mxu0 %v1390
  %1891 = vmatprep.subr.bf16.mxu0 0
  %1892 = vmatpush1.bf16.msra.mxu0 %v1391
  %1893 = vmatprep.subr.bf16.mxu0 0
  %1894 = vmatpush1.bf16.msra.mxu0 %v1392
  %1895 = vmatprep.subr.bf16.mxu0 0
  %1896 = vmatpush1.bf16.msra.mxu0 %v1393
  %1897 = vmatprep.subr.bf16.mxu0 0
  %1898 = vmatpush1.bf16.msra.mxu0 %v1394
  %1899 = vmatprep.subr.bf16.mxu0 0
  %1900 = vmatpush1.bf16.msra.mxu0 %v1395
  %1901 = vmatprep.subr.bf16.mxu0 0
  %1902 = vmatpush1.bf16.msra.mxu0 %v1396
  %1903 = vmatprep.subr.bf16.mxu0 0
  %1904 = vmatpush1.bf16.msra.mxu0 %v1397
  %1905 = vmatprep.subr.bf16.mxu0 0
  %1906 = vmatpush1.bf16.msra.mxu0 %v1398
  %1907 = vmatprep.subr.bf16.mxu0 0
  %1908 = vmatpush1.bf16.msra.mxu0 %v1399
  %1909 = vmatprep.subr.bf16.mxu0 0
  %1910 = vmatpush1.bf16.msra.mxu0 %v1400
  %1911 = vmatprep.subr.bf16.mxu0 0
  %1912 = vmatpush1.bf16.msra.mxu0 %v1401
  %1913 = vmatprep.subr.bf16.mxu0 0
  %1914 = vmatpush1.bf16.msra.mxu0 %v1402
  %1915 = vmatprep.mubr.bf16.mxu0 %v482
  %1916 = vmatmul.mubr.bf16.gmra.mrb[0].mxu0 %v481
  %v1917 = vpop.f32.mrb[0].mxu0
  %v1918 = vadd.f32 %v1878, %v1917
  %v1919 = vpop.f32.mrb[0].mxu0
  %v1920 = vpop.f32.mrb[0].mxu0
  %v1921 = vpop.f32.mrb[0].mxu0
  %1922 = vdwg.mxu0
  %1923 = vmatprep.subr.bf16.mxu0 0
  %1924 = vmatpush1.bf16.msra.mxu0 %v1403
  %1925 = vmatprep.subr.bf16.mxu0 0
  %1926 = vmatpush1.bf16.msra.mxu0 %v1404
  %1927 = vmatprep.subr.bf16.mxu0 0
  %1928 = vmatpush1.bf16.msra.mxu0 %v1405
  %1929 = vmatprep.subr.bf16.mxu0 0
  %1930 = vmatpush1.bf16.msra.mxu0 %v1406
  %1931 = vmatprep.subr.bf16.mxu0 0
  %1932 = vmatpush1.bf16.msra.mxu0 %v1407
  %1933 = vmatprep.subr.bf16.mxu0 0
  %1934 = vmatpush1.bf16.msra.mxu0 %v1408
  %1935 = vmatprep.subr.bf16.mxu0 0
  %1936 = vmatpush1.bf16.msra.mxu0 %v1409
  %1937 = vmatprep.subr.bf16.mxu0 0
  %1938 = vmatpush1.bf16.msra.mxu0 %v1410
  %1939 = vmatprep.subr.bf16.mxu0 0
  %1940 = vmatpush1.bf16.msra.mxu0 %v1411
  %1941 = vmatprep.subr.bf16.mxu0 0
  %1942 = vmatpush1.bf16.msra.mxu0 %v1412
  %1943 = vmatprep.subr.bf16.mxu0 0
  %1944 = vmatpush1.bf16.msra.mxu0 %v1413
  %1945 = vmatprep.subr.bf16.mxu0 0
  %1946 = vmatpush1.bf16.msra.mxu0 %v1414
  %1947 = vmatprep.subr.bf16.mxu0 0
  %1948 = vmatpush1.bf16.msra.mxu0 %v1415
  %1949 = vmatprep.subr.bf16.mxu0 0
  %1950 = vmatpush1.bf16.msra.mxu0 %v1416
  %1951 = vmatprep.subr.bf16.mxu0 0
  %1952 = vmatpush1.bf16.msra.mxu0 %v1417
  %1953 = vmatprep.subr.bf16.mxu0 0
  %1954 = vmatpush1.bf16.msra.mxu0 %v1418
  %1955 = vmatprep.mubr.bf16.mxu0 %v484
  %1956 = vmatmul.mubr.bf16.gmra.mrb[0].mxu0 %v483
  %v1957 = vpop.f32.mrb[0].mxu0
  %v1958 = vadd.f32 %v1918, %v1957
  %v1959 = vpop.f32.mrb[0].mxu0
  %v1960 = vpop.f32.mrb[0].mxu0
  %v1961 = vpop.f32.mrb[0].mxu0
  %1962 = vdwg.mxu0
  %1963 = vmatprep.subr.bf16.mxu0 0
  %1964 = vmatpush1.bf16.msra.mxu0 %v1419
  %1965 = vmatprep.subr.bf16.mxu0 0
  %1966 = vmatpush1.bf16.msra.mxu0 %v1420
  %1967 = vmatprep.subr.bf16.mxu0 0
  %1968 = vmatpush1.bf16.msra.mxu0 %v1421
  %1969 = vmatprep.subr.bf16.mxu0 0
  %1970 = vmatpush1.bf16.msra.mxu0 %v1422
  %1971 = vmatprep.subr.bf16.mxu0 0
  %1972 = vmatpush1.bf16.msra.mxu0 %v1423
  %1973 = vmatprep.subr.bf16.mxu0 0
  %1974 = vmatpush1.bf16.msra.mxu0 %v1424
  %1975 = vmatprep.subr.bf16.mxu0 0
  %1976 = vmatpush1.bf16.msra.mxu0 %v1425
  %1977 = vmatprep.subr.bf16.mxu0 0
  %1978 = vmatpush1.bf16.msra.mxu0 %v1426
  %1979 = vmatprep.subr.bf16.mxu0 0
  %1980 = vmatpush1.bf16.msra.mxu0 %v1427
  %1981 = vmatprep.subr.bf16.mxu0 0
  %1982 = vmatpush1.bf16.msra.mxu0 %v1428
  %1983 = vmatprep.subr.bf16.mxu0 0
  %1984 = vmatpush1.bf16.msra.mxu0 %v1429
  %1985 = vmatprep.subr.bf16.mxu0 0
  %1986 = vmatpush1.bf16.msra.mxu0 %v1430
  %1987 = vmatprep.subr.bf16.mxu0 0
  %1988 = vmatpush1.bf16.msra.mxu0 %v1431
  %1989 = vmatprep.subr.bf16.mxu0 0
  %1990 = vmatpush1.bf16.msra.mxu0 %v1432
  %1991 = vmatprep.subr.bf16.mxu0 0
  %1992 = vmatpush1.bf16.msra.mxu0 %v1433
  %1993 = vmatprep.subr.bf16.mxu0 0
  %1994 = vmatpush1.bf16.msra.mxu0 %v1434
  %1995 = vmatprep.mubr.bf16.mxu0 %v486
  %1996 = vmatmul.mubr.bf16.gmra.mrb[0].mxu0 %v485
  %v1997 = vpop.f32.mrb[0].mxu0
  %v1998 = vadd.f32 %v1958, %v1997
  %v1999 = vpop.f32.mrb[0].mxu0
  %v2000 = vpop.f32.mrb[0].mxu0
  %v2001 = vpop.f32.mrb[0].mxu0
  %2002 = vdwg.mxu0
  %2003 = vmatprep.subr.bf16.mxu0 0
  %2004 = vmatpush1.bf16.msra.mxu0 %v1435
  %2005 = vmatprep.subr.bf16.mxu0 0
  %2006 = vmatpush1.bf16.msra.mxu0 %v1436
  %2007 = vmatprep.subr.bf16.mxu0 0
  %2008 = vmatpush1.bf16.msra.mxu0 %v1437
  %2009 = vmatprep.subr.bf16.mxu0 0
  %2010 = vmatpush1.bf16.msra.mxu0 %v1438
  %2011 = vmatprep.subr.bf16.mxu0 0
  %2012 = vmatpush1.bf16.msra.mxu0 %v1439
  %2013 = vmatprep.subr.bf16.mxu0 0
  %2014 = vmatpush1.bf16.msra.mxu0 %v1440
  %2015 = vmatprep.subr.bf16.mxu0 0
  %2016 = vmatpush1.bf16.msra.mxu0 %v1441
  %2017 = vmatprep.subr.bf16.mxu0 0
  %2018 = vmatpush1.bf16.msra.mxu0 %v1442
  %2019 = vmatprep.subr.bf16.mxu0 0
  %2020 = vmatpush1.bf16.msra.mxu0 %v1443
  %2021 = vmatprep.subr.bf16.mxu0 0
  %2022 = vmatpush1.bf16.msra.mxu0 %v1444
  %2023 = vmatprep.subr.bf16.mxu0 0
  %2024 = vmatpush1.bf16.msra.mxu0 %v1445
  %2025 = vmatprep.subr.bf16.mxu0 0
  %2026 = vmatpush1.bf16.msra.mxu0 %v1446
  %2027 = vmatprep.subr.bf16.mxu0 0
  %2028 = vmatpush1.bf16.msra.mxu0 %v1447
  %2029 = vmatprep.subr.bf16.mxu0 0
  %2030 = vmatpush1.bf16.msra.mxu0 %v1448
  %2031 = vmatprep.subr.bf16.mxu0 0
  %2032 = vmatpush1.bf16.msra.mxu0 %v1449
  %2033 = vmatprep.subr.bf16.mxu0 0
  %2034 = vmatpush1.bf16.msra.mxu0 %v1450
  %2035 = vmatprep.mubr.bf16.mxu0 %v488
  %2036 = vmatmul.mubr.bf16.gmra.mrb[0].mxu0 %v487
  %v2037 = vpop.f32.mrb[0].mxu0
  %v2038 = vadd.f32 %v1998, %v2037
  %v2039 = vpop.f32.mrb[0].mxu0
  %v2040 = vpop.f32.mrb[0].mxu0
  %v2041 = vpop.f32.mrb[0].mxu0
  %2042 = vdwg.mxu0
  %2043 = vmatprep.subr.bf16.mxu0 0
  %2044 = vmatpush1.bf16.msra.mxu0 %v1451
  %2045 = vmatprep.subr.bf16.mxu0 0
  %2046 = vmatpush1.bf16.msra.mxu0 %v1452
  %2047 = vmatprep.subr.bf16.mxu0 0
  %2048 = vmatpush1.bf16.msra.mxu0 %v1453
  %2049 = vmatprep.subr.bf16.mxu0 0
  %2050 = vmatpush1.bf16.msra.mxu0 %v1454
  %2051 = vmatprep.subr.bf16.mxu0 0
  %2052 = vmatpush1.bf16.msra.mxu0 %v1455
  %2053 = vmatprep.subr.bf16.mxu0 0
  %2054 = vmatpush1.bf16.msra.mxu0 %v1456
  %2055 = vmatprep.subr.bf16.mxu0 0
  %2056 = vmatpush1.bf16.msra.mxu0 %v1457
  %2057 = vmatprep.subr.bf16.mxu0 0
  %2058 = vmatpush1.bf16.msra.mxu0 %v1458
  %2059 = vmatprep.subr.bf16.mxu0 0
  %2060 = vmatpush1.bf16.msra.mxu0 %v1459
  %2061 = vmatprep.subr.bf16.mxu0 0
  %2062 = vmatpush1.bf16.msra.mxu0 %v1460
  %2063 = vmatprep.subr.bf16.mxu0 0
  %2064 = vmatpush1.bf16.msra.mxu0 %v1461
  %2065 = vmatprep.subr.bf16.mxu0 0
  %2066 = vmatpush1.bf16.msra.mxu0 %v1462
  %2067 = vmatprep.subr.bf16.mxu0 0
  %2068 = vmatpush1.bf16.msra.mxu0 %v1463
  %2069 = vmatprep.subr.bf16.mxu0 0
  %2070 = vmatpush1.bf16.msra.mxu0 %v1464
  %2071 = vmatprep.subr.bf16.mxu0 0
  %2072 = vmatpush1.bf16.msra.mxu0 %v1465
  %2073 = vmatprep.subr.bf16.mxu0 0
  %2074 = vmatpush1.bf16.msra.mxu0 %v1466
  %2075 = vmatprep.mubr.bf16.mxu0 %v490
  %2076 = vmatmul.mubr.bf16.gmra.mrb[0].mxu0 %v489
  %v2077 = vpop.f32.mrb[0].mxu0
  %v2078 = vadd.f32 %v2038, %v2077
  %v2079 = vpop.f32.mrb[0].mxu0
  %v2080 = vpop.f32.mrb[0].mxu0
  %v2081 = vpop.f32.mrb[0].mxu0
  %2082 = vdwg.mxu0
  %2083 = vmatprep.subr.bf16.mxu0 0
  %2084 = vmatpush1.bf16.msra.mxu0 %v1467
  %2085 = vmatprep.subr.bf16.mxu0 0
  %2086 = vmatpush1.bf16.msra.mxu0 %v1468
  %2087 = vmatprep.subr.bf16.mxu0 0
  %2088 = vmatpush1.bf16.msra.mxu0 %v1469
  %2089 = vmatprep.subr.bf16.mxu0 0
  %2090 = vmatpush1.bf16.msra.mxu0 %v1470
  %2091 = vmatprep.subr.bf16.mxu0 0
  %2092 = vmatpush1.bf16.msra.mxu0 %v1471
  %2093 = vmatprep.subr.bf16.mxu0 0
  %2094 = vmatpush1.bf16.msra.mxu0 %v1472
  %2095 = vmatprep.subr.bf16.mxu0 0
  %2096 = vmatpush1.bf16.msra.mxu0 %v1473
  %2097 = vmatprep.subr.bf16.mxu0 0
  %2098 = vmatpush1.bf16.msra.mxu0 %v1474
  %2099 = vmatprep.subr.bf16.mxu0 0
  %2100 = vmatpush1.bf16.msra.mxu0 %v1475
  %2101 = vmatprep.subr.bf16.mxu0 0
  %2102 = vmatpush1.bf16.msra.mxu0 %v1476
  %2103 = vmatprep.subr.bf16.mxu0 0
  %2104 = vmatpush1.bf16.msra.mxu0 %v1477
  %2105 = vmatprep.subr.bf16.mxu0 0
  %2106 = vmatpush1.bf16.msra.mxu0 %v1478
  %2107 = vmatprep.subr.bf16.mxu0 0
  %2108 = vmatpush1.bf16.msra.mxu0 %v1479
  %2109 = vmatprep.subr.bf16.mxu0 0
  %2110 = vmatpush1.bf16.msra.mxu0 %v1480
  %2111 = vmatprep.subr.bf16.mxu0 0
  %2112 = vmatpush1.bf16.msra.mxu0 %v1481
  %2113 = vmatprep.subr.bf16.mxu0 0
  %2114 = vmatpush1.bf16.msra.mxu0 %v1482
  %2115 = vmatprep.mubr.bf16.mxu0 %v492
  %2116 = vmatmul.mubr.bf16.gmra.mrb[0].mxu0 %v491
  %v2117 = vpop.f32.mrb[0].mxu0
  %v2118 = vadd.f32 %v2078, %v2117
  %v2119 = vpop.f32.mrb[0].mxu0
  %v2120 = vpop.f32.mrb[0].mxu0
  %v2121 = vpop.f32.mrb[0].mxu0
  %2122 = vdwg.mxu0
  %2123 = vmatprep.subr.bf16.mxu0 0
  %2124 = vmatpush1.bf16.msra.mxu0 %v1483
  %2125 = vmatprep.subr.bf16.mxu0 0
  %2126 = vmatpush1.bf16.msra.mxu0 %v1484
  %2127 = vmatprep.subr.bf16.mxu0 0
  %2128 = vmatpush1.bf16.msra.mxu0 %v1485
  %2129 = vmatprep.subr.bf16.mxu0 0
  %2130 = vmatpush1.bf16.msra.mxu0 %v1486
  %2131 = vmatprep.subr.bf16.mxu0 0
  %2132 = vmatpush1.bf16.msra.mxu0 %v1487
  %2133 = vmatprep.subr.bf16.mxu0 0
  %2134 = vmatpush1.bf16.msra.mxu0 %v1488
  %2135 = vmatprep.subr.bf16.mxu0 0
  %2136 = vmatpush1.bf16.msra.mxu0 %v1489
  %2137 = vmatprep.subr.bf16.mxu0 0
  %2138 = vmatpush1.bf16.msra.mxu0 %v1490
  %2139 = vmatprep.subr.bf16.mxu0 0
  %2140 = vmatpush1.bf16.msra.mxu0 %v1491
  %2141 = vmatprep.subr.bf16.mxu0 0
  %2142 = vmatpush1.bf16.msra.mxu0 %v1492
  %2143 = vmatprep.subr.bf16.mxu0 0
  %2144 = vmatpush1.bf16.msra.mxu0 %v1493
  %2145 = vmatprep.subr.bf16.mxu0 0
  %2146 = vmatpush1.bf16.msra.mxu0 %v1494
  %2147 = vmatprep.subr.bf16.mxu0 0
  %2148 = vmatpush1.bf16.msra.mxu0 %v1495
  %2149 = vmatprep.subr.bf16.mxu0 0
  %2150 = vmatpush1.bf16.msra.mxu0 %v1496
  %2151 = vmatprep.subr.bf16.mxu0 0
  %2152 = vmatpush1.bf16.msra.mxu0 %v1497
  %2153 = vmatprep.subr.bf16.mxu0 0
  %2154 = vmatpush1.bf16.msra.mxu0 %v1498
  %2155 = vmatprep.mubr.bf16.mxu0 %v494
  %2156 = vmatmul.mubr.bf16.gmra.mrb[0].mxu0 %v493
  %v2157 = vpop.f32.mrb[0].mxu0
  %v2158 = vadd.f32 %v2118, %v2157
  %v2159 = vpop.f32.mrb[0].mxu0
  %v2160 = vpop.f32.mrb[0].mxu0
  %v2161 = vpop.f32.mrb[0].mxu0
  %2162 = vdwg.mxu0
  %2163 = vmatprep.subr.bf16.mxu0 0
  %2164 = vmatpush1.bf16.msra.mxu0 %v1499
  %2165 = vmatprep.subr.bf16.mxu0 0
  %2166 = vmatpush1.bf16.msra.mxu0 %v1500
  %2167 = vmatprep.subr.bf16.mxu0 0
  %2168 = vmatpush1.bf16.msra.mxu0 %v1501
  %2169 = vmatprep.subr.bf16.mxu0 0
  %2170 = vmatpush1.bf16.msra.mxu0 %v1502
  %2171 = vmatprep.subr.bf16.mxu0 0
  %2172 = vmatpush1.bf16.msra.mxu0 %v1503
  %2173 = vmatprep.subr.bf16.mxu0 0
  %2174 = vmatpush1.bf16.msra.mxu0 %v1504
  %2175 = vmatprep.subr.bf16.mxu0 0
  %2176 = vmatpush1.bf16.msra.mxu0 %v1505
  %2177 = vmatprep.subr.bf16.mxu0 0
  %2178 = vmatpush1.bf16.msra.mxu0 %v1506
  %2179 = vmatprep.subr.bf16.mxu0 0
  %2180 = vmatpush1.bf16.msra.mxu0 %v1507
  %2181 = vmatprep.subr.bf16.mxu0 0
  %2182 = vmatpush1.bf16.msra.mxu0 %v1508
  %2183 = vmatprep.subr.bf16.mxu0 0
  %2184 = vmatpush1.bf16.msra.mxu0 %v1509
  %2185 = vmatprep.subr.bf16.mxu0 0
  %2186 = vmatpush1.bf16.msra.mxu0 %v1510
  %2187 = vmatprep.subr.bf16.mxu0 0
  %2188 = vmatpush1.bf16.msra.mxu0 %v1511
  %2189 = vmatprep.subr.bf16.mxu0 0
  %2190 = vmatpush1.bf16.msra.mxu0 %v1512
  %2191 = vmatprep.subr.bf16.mxu0 0
  %2192 = vmatpush1.bf16.msra.mxu0 %v1513
  %2193 = vmatprep.subr.bf16.mxu0 0
  %2194 = vmatpush1.bf16.msra.mxu0 %v1514
  %2195 = vmatprep.mubr.bf16.mxu0 %v496
  %2196 = vmatmul.mubr.bf16.gmra.mrb[0].mxu0 %v495
  %v2197 = vpop.f32.mrb[0].mxu0
  %v2198 = vadd.f32 %v2158, %v2197
  %v2199 = vpop.f32.mrb[0].mxu0
  %v2200 = vpop.f32.mrb[0].mxu0
  %v2201 = vpop.f32.mrb[0].mxu0
  %2202 = vdwg.mxu0
  %2203 = vmatprep.subr.bf16.mxu0 0
  %2204 = vmatpush1.bf16.msra.mxu0 %v1515
  %2205 = vmatprep.subr.bf16.mxu0 0
  %2206 = vmatpush1.bf16.msra.mxu0 %v1516
  %2207 = vmatprep.subr.bf16.mxu0 0
  %2208 = vmatpush1.bf16.msra.mxu0 %v1517
  %2209 = vmatprep.subr.bf16.mxu0 0
  %2210 = vmatpush1.bf16.msra.mxu0 %v1518
  %2211 = vmatprep.subr.bf16.mxu0 0
  %2212 = vmatpush1.bf16.msra.mxu0 %v1519
  %2213 = vmatprep.subr.bf16.mxu0 0
  %2214 = vmatpush1.bf16.msra.mxu0 %v1520
  %2215 = vmatprep.subr.bf16.mxu0 0
  %2216 = vmatpush1.bf16.msra.mxu0 %v1521
  %2217 = vmatprep.subr.bf16.mxu0 0
  %2218 = vmatpush1.bf16.msra.mxu0 %v1522
  %2219 = vmatprep.subr.bf16.mxu0 0
  %2220 = vmatpush1.bf16.msra.mxu0 0
  %2221 = vmatprep.subr.bf16.mxu0 0
  %2222 = vmatpush1.bf16.msra.mxu0 0
  %2223 = vmatprep.subr.bf16.mxu0 0
  %2224 = vmatpush1.bf16.msra.mxu0 0
  %2225 = vmatprep.subr.bf16.mxu0 0
  %2226 = vmatpush1.bf16.msra.mxu0 0
  %2227 = vmatprep.subr.bf16.mxu0 0
  %2228 = vmatpush1.bf16.msra.mxu0 0
  %2229 = vmatprep.subr.bf16.mxu0 0
  %2230 = vmatpush1.bf16.msra.mxu0 0
  %2231 = vmatprep.subr.bf16.mxu0 0
  %2232 = vmatpush1.bf16.msra.mxu0 0
  %2233 = vmatprep.subr.bf16.mxu0 0
  %2234 = vmatpush1.bf16.msra.mxu0 0
  %2235 = vmatprep.mubr.bf16.mxu0 0
  %2236 = vmatmul.mubr.bf16.gmra.mrb[0].mxu0 %v497
  %v2237 = vpop.f32.mrb[0].mxu0
  %v2238 = vadd.f32 %v2198, %v2237
  %v2239 = vpop.f32.mrb[0].mxu0
  %v2240 = vpop.f32.mrb[0].mxu0
  %v2241 = vpop.f32.mrb[0].mxu0
  %2242 = vdwg.mxu0
  %v2243 = vmul.f32 %v2238, 0.01
  %v2244 = vmax.f32 %v2238, %v2243
  %2245 = vst [vmem:[%s3] sm:$0xff] %v2244
  // Predicated region
  $region14: #{cnn_state_encoder_forward.7} parent=0 // pred_check
    _
  $region15: #{cnn_state_encoder_forward.7} parent=0 // pred_check_branch
    %2247 = sbr.rel (0) target = $region17
  $region16: #{cnn_state_encoder_forward.7} parent=0 // pred_region
    _
  $region17: #{cnn_state_encoder_forward.7} parent=0 // pred_fallthru
    _
  // Predicated region
  $region18: #{cnn_state_encoder_forward.7} parent=0 // pred_check
    _
  $region19: #{cnn_state_encoder_forward.7} parent=0 // pred_check_branch
    %2249 = sbr.rel (0) target = $region21
  $region20: #{cnn_state_encoder_forward.7} parent=0 // pred_region
    _
  $region21: #{cnn_state_encoder_forward.7} parent=0 // pred_fallthru
    _

</llo_original>
